<compile_context>
chip_gen: v7x
topology: tpu7x:2x2x1
jax: 0.10.0
libtpu: 0.0.40
codegen_flags: <defaults>
</compile_context>

<pallas_src>
import jax
import jax.numpy as jnp
from jax import lax
from jax.experimental import pallas as pl
from jax.experimental.pallas import tpu as pltpu

# Compatibility shim for the compiler-params class name.
_CompilerParams = getattr(pltpu, "CompilerParams", None) or getattr(
    pltpu, "TPUCompilerParams", None)


# ----------------------------------------------------------------------------
# Fused Pallas kernel (one image per grid step)
# ----------------------------------------------------------------------------
def speccnn_kernel(x_ref, w1_ref, s1_ref, w2_ref, s2_ref,
                   fw1_ref, fb1_ref, fw2_ref, fb2_ref, out_ref):
    """Fused SpecCNN forward for one image.

    x_ref  : (1, H+2, W+2)    zero-padded input image (Cin == 1)
    w1_ref : (C1, 9)          conv1 weight * BN1 scale, tap-major (t = 3*kh+kw)
    s1_ref : (C1, 1)          BN1 shift   ((bias - mean) * scale + beta)
    w2_ref : (9, C2, C1)      conv2 weight * BN2 scale, one (C2, C1) matrix per tap
    s2_ref : (C2, 1)          BN2 shift
    fw1_ref: (C2, W//4, C2)   fc1 weight as [in-channel, in-width, out]
    fb1_ref: (1, C2)          fc1 bias
    fw2_ref: (C2, NCLS)       fc2 weight (transposed torch layout)
    fb2_ref: (1, NCLS)        fc2 bias
    out_ref: (1, 1, NCLS)     logits for this image
    """
    f32 = jnp.float32
    C1 = w1_ref.shape[0]
    C2 = w2_ref.shape[1]
    H = x_ref.shape[1] - 2
    W = x_ref.shape[2] - 2
    HP = H // 2                       # rows after pool1
    Wh = W // 2                       # cols after pool1
    Wq = W // 4                       # cols after pool2
    # The classifier hard-codes an input height of 5 (5 // 4 == 1).
    assert HP == 2, "fused kernel assumes pooled height 2 -> 1"

    x = x_ref[0]                      # (H+2, W+2), stays in vregs/VMEM
    w1 = w1_ref[...]                  # (C1, 9)

    # ---- conv1 (BN scale folded into w1) ------------------------------------
    # Only output rows 0 .. 2*HP-1 are needed (row H-1 is dropped by floor pool).
    conv1_rows = []
    for y in range(2 * HP):
        acc = jnp.zeros((C1, W), f32)
        for dh in range(3):
            xr = x[y + dh:y + dh + 1, :]                  # (1, W+2)
            for dw in range(3):
                t = 3 * dh + dw
                acc = acc + w1[:, t:t + 1] * xr[:, dw:dw + W]
        conv1_rows.append(acc)                            # (C1, W)

    # ---- pool1 (2x2, stride 2) + BN shift + ReLU ----------------------------
    # W-downsampling = even/odd column selection via 0/1 matrices on the MXU.
    # Output is (C1, Wh+2): columns 0 and Wh+1 are exactly zero and double as
    # conv2's zero padding.
    wi = lax.broadcasted_iota(jnp.int32, (W, Wh + 2), 0)
    ji = lax.broadcasted_iota(jnp.int32, (W, Wh + 2), 1)
    sel1_e = jnp.where(wi == 2 * ji - 2, 1.0, 0.0)        # picks col 2*(j-1)
    sel1_o = jnp.where(wi == 2 * ji - 1, 1.0, 0.0)        # picks col 2*(j-1)+1

    p1 = []                                               # pooled, padded rows
    for py in range(HP):
        h = jnp.maximum(conv1_rows[2 * py], conv1_rows[2 * py + 1])
        h = jnp.maximum(h + s1_ref[...], 0.0)             # (C1, W)
        e = jnp.dot(h, sel1_e, preferred_element_type=f32)
        o = jnp.dot(h, sel1_o, preferred_element_type=f32)
        p1.append(jnp.maximum(e, o))                      # (C1, Wh+2)

    # ---- conv2 (BN scale folded into w2) ------------------------------------
    conv2_rows = []
    for y in range(HP):
        acc = jnp.zeros((C2, Wh), f32)
        for dh in range(3):
            r = y + dh - 1                                # pooled input row
            if r < 0 or r >= HP:
                continue                                  # zero-pad row: skip
            src = p1[r]                                   # (C1, Wh+2)
            for dw in range(3):
                acc = acc + jnp.dot(w2_ref[3 * dh + dw], src[:, dw:dw + Wh],
                                    preferred_element_type=f32)
        conv2_rows.append(acc)                            # (C2, Wh)

    # ---- pool2 (2x2, stride 2) + BN shift + ReLU ----------------------------
    wi2 = lax.broadcasted_iota(jnp.int32, (Wh, Wq), 0)
    ji2 = lax.broadcasted_iota(jnp.int32, (Wh, Wq), 1)
    sel2_e = jnp.where(wi2 == 2 * ji2, 1.0, 0.0)
    sel2_o = jnp.where(wi2 == 2 * ji2 + 1, 1.0, 0.0)

    h2 = jnp.maximum(conv2_rows[0], conv2_rows[1])        # (C2, Wh)
    p2 = jnp.maximum(jnp.dot(h2, sel2_e, preferred_element_type=f32),
                     jnp.dot(h2, sel2_o, preferred_element_type=f32))
    p2 = jnp.maximum(p2 + s2_ref[...], 0.0)               # (C2, Wq)

    # ---- classifier: fc1 + ReLU + fc2 (Dropout = identity at inference) -----
    z = jnp.zeros((1, C2), f32)
    for c in range(C2):                                   # contract (channel, W)
        z = z + jnp.dot(p2[c:c + 1, :], fw1_ref[c],
                        preferred_element_type=f32)
    z = jnp.maximum(z + fb1_ref[...], 0.0)                # (1, C2)
    logits = jnp.dot(z, fw2_ref[...],
                     preferred_element_type=f32) + fb2_ref[...]
    out_ref[0] = logits


# ----------------------------------------------------------------------------
# One-time parameter preparation (hoisted out of the hot path)
# ----------------------------------------------------------------------------
def prepare_params(p, eps=1e-5):
    """Fold BN into conv weights/shifts and pack weights into kernel layouts."""
    f32 = jnp.float32
    C1 = p["conv1_w"].shape[0]
    C2 = p["conv2_w"].shape[0]
    ncls = p["fc2_w"].shape[0]
    Wq = p["fc1_w"].shape[1] // C2                 # 100 for the (5, 400) input

    scale1 = p["bn1_gamma"] / jnp.sqrt(p["bn1_var"] + eps)
    shift1 = (p["conv1_b"] - p["bn1_mean"]) * scale1 + p["bn1_beta"]
    scale2 = p["bn2_gamma"] / jnp.sqrt(p["bn2_var"] + eps)
    shift2 = (p["conv2_b"] - p["bn2_mean"]) * scale2 + p["bn2_beta"]

    w1 = (p["conv1_w"].reshape(C1, 9) * scale1[:, None]).astype(f32)
    w2 = jnp.transpose(p["conv2_w"] * scale2[:, None, None, None],
                       (2, 3, 0, 1)).reshape(9, C2, C1).astype(f32)
    fw1 = jnp.transpose(p["fc1_w"].reshape(C2, C2, Wq), (1, 2, 0)).astype(f32)

    return {
        "w1": w1,                                         # (C1, 9)
        "s1": shift1.reshape(C1, 1).astype(f32),          # (C1, 1)
        "w2": w2,                                         # (9, C2, C1)
        "s2": shift2.reshape(C2, 1).astype(f32),          # (C2, 1)
        "fw1": fw1,                                       # (C2, Wq, C2)
        "fb1": p["fc1_b"].reshape(1, C2).astype(f32),     # (1, C2)
        "fw2": p["fc2_w"].T.astype(f32),                  # (C2, ncls)
        "fb2": p["fc2_b"].reshape(1, ncls).astype(f32),   # (1, ncls)
    }


# ----------------------------------------------------------------------------
# Forward pass (single pallas_call)
# ----------------------------------------------------------------------------
def spec_cnn_forward(x_nchw, prep):
    N, Cin, H, W = x_nchw.shape
    assert Cin == 1
    C1 = prep["w1"].shape[0]
    C2 = prep["w2"].shape[1]
    ncls = prep["fw2"].shape[1]
    Wq = prep["fw1"].shape[1]

    # Only per-call input prep: squeeze the singleton channel and zero-pad the
    # (H, W) borders for the padding=1 convolution.
    xpad = jnp.pad(x_nchw.reshape(N, H, W), ((0, 0), (1, 1), (1, 1)))

    compiler_params = None
    if _CompilerParams is not None:
        compiler_params = _CompilerParams(dimension_semantics=("parallel",))

    out = pl.pallas_call(
        speccnn_kernel,
        out_shape=jax.ShapeDtypeStruct((N, 1, ncls), jnp.float32),
        grid=(N,),
        in_specs=[
            pl.BlockSpec((1, H + 2, W + 2), lambda n: (n, 0, 0)),
            pl.BlockSpec((C1, 9), lambda n: (0, 0)),
            pl.BlockSpec((C1, 1), lambda n: (0, 0)),
            pl.BlockSpec((9, C2, C1), lambda n: (0, 0, 0)),
            pl.BlockSpec((C2, 1), lambda n: (0, 0)),
            pl.BlockSpec((C2, Wq, C2), lambda n: (0, 0, 0)),
            pl.BlockSpec((1, C2), lambda n: (0, 0)),
            pl.BlockSpec((C2, ncls), lambda n: (0, 0)),
            pl.BlockSpec((1, ncls), lambda n: (0, 0)),
        ],
        out_specs=pl.BlockSpec((1, 1, ncls), lambda n: (n, 0, 0)),
        compiler_params=compiler_params,
    )(xpad.astype(jnp.float32), prep["w1"], prep["s1"], prep["w2"],
      prep["s2"], prep["fw1"], prep["fb1"], prep["fw2"], prep["fb2"])
    return out.reshape(N, ncls)


# ----------------------------------------------------------------------------
# Pure-XLA reference (exact PyTorch inference semantics) and parameter init
# ----------------------------------------------------------------------------
def reference_forward(x_nchw, p, eps=1e-5):
    def conv3x3_bn_relu(x_nhwc, w, b, gamma, beta, mean, var):
        N, H, W, Cin = x_nhwc.shape
        Cout = w.shape[0]
        xpad = jnp.pad(x_nhwc, ((0, 0), (1, 1), (1, 1), (0, 0)))
        cols = [xpad[:, dh:dh + H, dw:dw + W, :]
                for dh in range(3) for dw in range(3)]
        patches = jnp.concatenate(cols, axis=-1).reshape(N, H * W, 9 * Cin)
        wmat = jnp.transpose(w, (2, 3, 1, 0)).reshape(9 * Cin, Cout)
        y = patches @ wmat + b
        y = (y - mean) * (gamma / jnp.sqrt(var + eps)) + beta
        return jnp.maximum(y, 0.0).reshape(N, H, W, Cout)

    def maxpool2x2(x_nhwc):
        N, H, W, C = x_nhwc.shape
        H2, W2 = H // 2, W // 2
        x = x_nhwc[:, :2 * H2, :2 * W2, :].reshape(N, H2, 2, W2, 2, C)
        return jnp.max(x, axis=(2, 4))

    x = jnp.transpose(x_nchw, (0, 2, 3, 1))
    x = conv3x3_bn_relu(x, p["conv1_w"], p["conv1_b"], p["bn1_gamma"],
                        p["bn1_beta"], p["bn1_mean"], p["bn1_var"])
    x = maxpool2x2(x)
    x = conv3x3_bn_relu(x, p["conv2_w"], p["conv2_b"], p["bn2_gamma"],
                        p["bn2_beta"], p["bn2_mean"], p["bn2_var"])
    x = maxpool2x2(x)
    N = x.shape[0]
    flat = jnp.transpose(x, (0, 3, 1, 2)).reshape(N, -1)   # torch x.view(N, -1)
    z = jnp.maximum(flat @ p["fc1_w"].T + p["fc1_b"], 0.0)
    return z @ p["fc2_w"].T + p["fc2_b"]


def init_params(key, base_filters=8, num_classes=6):
    ks = jax.random.split(key, 16)
    bf = base_filters
    fc_in = bf * 2 * (5 // 4) * (400 // 4)
    f32 = jnp.float32
    return {
        "conv1_w": 0.1 * jax.random.normal(ks[0], (bf, 1, 3, 3), f32),
        "conv1_b": 0.1 * jax.random.normal(ks[1], (bf,), f32),
        "bn1_gamma": 1.0 + 0.1 * jax.random.normal(ks[2], (bf,), f32),
        "bn1_beta": 0.1 * jax.random.normal(ks[3], (bf,), f32),
        "bn1_mean": 0.1 * jax.random.normal(ks[4], (bf,), f32),
        "bn1_var": jax.random.uniform(ks[5], (bf,), f32, 0.5, 1.5),
        "conv2_w": 0.1 * jax.random.normal(ks[6], (bf * 2, bf, 3, 3), f32),
        "conv2_b": 0.1 * jax.random.normal(ks[7], (bf * 2,), f32),
        "bn2_gamma": 1.0 + 0.1 * jax.random.normal(ks[8], (bf * 2,), f32),
        "bn2_beta": 0.1 * jax.random.normal(ks[9], (bf * 2,), f32),
        "bn2_mean": 0.1 * jax.random.normal(ks[10], (bf * 2,), f32),
        "bn2_var": jax.random.uniform(ks[11], (bf * 2,), f32, 0.5, 1.5),
        "fc1_w": 0.05 * jax.random.normal(ks[12], (bf * 2, fc_in), f32),
        "fc1_b": 0.05 * jax.random.normal(ks[13], (bf * 2,), f32),
        "fc2_w": 0.05 * jax.random.normal(ks[14], (num_classes, bf * 2), f32),
        "fc2_b": 0.05 * jax.random.normal(ks[15], (num_classes,), f32),
    }


if __name__ == "__main__":
    # The module's classifier hard-codes an input spatial size of (5, 400) via
    # Linear(base_filters*2 * (5//4) * (400//4), ...). Use a small base_filters.
    base_filters, num_classes = 8, 6
    key = jax.random.PRNGKey(0)
    k_params, k_x = jax.random.split(key)

    params = init_params(k_params, base_filters, num_classes)
    x = jax.random.normal(k_x, (2, 1, 5, 400), jnp.float32)   # NCHW, like PyTorch

    prep = prepare_params(params)          # one-time weight prep (hoisted)
    fwd = jax.jit(spec_cnn_forward)
    out = jax.block_until_ready(fwd(x, prep))

    assert out.shape == (2, num_classes), out.shape
    assert bool(jnp.all(jnp.isfinite(out)))

    # Numerical check against a pure-XLA reference with PyTorch semantics.
    ref = jax.block_until_ready(jax.jit(reference_forward)(x, params))
    max_err = float(jnp.max(jnp.abs(out - ref)))
    assert max_err < 2e-3, f"kernel vs reference mismatch: max|err| = {max_err}"

    print("KERNEL_OK")
</pallas_src>

<mosaic_0001>
module attributes {stable_mosaic.version = 11 : i64} {
  func.func @speccnn_kernel(%arg0: i32, %arg1: memref<1x7x402xf32, #tpu.memory_space<vmem>>, %arg2: memref<8x9xf32, #tpu.memory_space<vmem>>, %arg3: memref<8x1xf32, #tpu.memory_space<vmem>>, %arg4: memref<9x16x8xf32, #tpu.memory_space<vmem>>, %arg5: memref<16x1xf32, #tpu.memory_space<vmem>>, %arg6: memref<16x100x16xf32, #tpu.memory_space<vmem>>, %arg7: memref<1x16xf32, #tpu.memory_space<vmem>>, %arg8: memref<16x6xf32, #tpu.memory_space<vmem>>, %arg9: memref<1x6xf32, #tpu.memory_space<vmem>>, %arg10: memref<1x1x6xf32, #tpu.memory_space<vmem>>) attributes {dimension_semantics = [#tpu.dimension_semantics<parallel>], iteration_bounds = array<i64: 2>, scalar_prefetch = 0 : i64, scratch_operands = 0 : i64, tpu.core_type = #tpu.core_type<tc>, window_params = [{transform_indices = @transform_0, window_bounds = array<i64: 1, 7, 402>}, {pipeline_mode = #tpu.pipeline_mode<synchronous>, transform_indices = @transform_1, window_bounds = array<i64: 8, 9>}, {pipeline_mode = #tpu.pipeline_mode<synchronous>, transform_indices = @transform_2, window_bounds = array<i64: 8, 1>}, {pipeline_mode = #tpu.pipeline_mode<synchronous>, transform_indices = @transform_3, window_bounds = array<i64: 9, 16, 8>}, {pipeline_mode = #tpu.pipeline_mode<synchronous>, transform_indices = @transform_4, window_bounds = array<i64: 16, 1>}, {pipeline_mode = #tpu.pipeline_mode<synchronous>, transform_indices = @transform_5, window_bounds = array<i64: 16, 100, 16>}, {pipeline_mode = #tpu.pipeline_mode<synchronous>, transform_indices = @transform_6, window_bounds = array<i64: 1, 16>}, {pipeline_mode = #tpu.pipeline_mode<synchronous>, transform_indices = @transform_7, window_bounds = array<i64: 16, 6>}, {pipeline_mode = #tpu.pipeline_mode<synchronous>, transform_indices = @transform_8, window_bounds = array<i64: 1, 6>}, {transform_indices = @transform_9, window_bounds = array<i64: 1, 1, 6>}]} {
    %c0 = arith.constant 0 : index
    %c0_0 = arith.constant 0 : index
    %c0_1 = arith.constant 0 : index
    %0 = vector.load %arg1[%c0, %c0_0, %c0_1] : memref<1x7x402xf32, #tpu.memory_space<vmem>>, vector<1x7x402xf32>
    %1 = vector.shape_cast %0 : vector<1x7x402xf32> to vector<7x402xf32>
    %c0_2 = arith.constant 0 : index
    %c0_3 = arith.constant 0 : index
    %2 = vector.load %arg2[%c0_2, %c0_3] : memref<8x9xf32, #tpu.memory_space<vmem>>, vector<8x9xf32>
    %cst = arith.constant 0.000000e+00 : f32
    %3 = vector.broadcast %cst : f32 to vector<8x400xf32>
    %4 = vector.extract_strided_slice %1 {offsets = [0, 0], sizes = [1, 402], strides = [1, 1]} : vector<7x402xf32> to vector<1x402xf32>
    %5 = vector.extract_strided_slice %2 {offsets = [0, 0], sizes = [8, 1], strides = [1, 1]} : vector<8x9xf32> to vector<8x1xf32>
    %6 = vector.extract_strided_slice %4 {offsets = [0, 0], sizes = [1, 400], strides = [1, 1]} : vector<1x402xf32> to vector<1x400xf32>
    %7 = vector.broadcast %5 : vector<8x1xf32> to vector<8x400xf32>
    %8 = vector.broadcast %6 : vector<1x400xf32> to vector<8x400xf32>
    %9 = arith.mulf %7, %8 : vector<8x400xf32>
    %10 = arith.addf %3, %9 : vector<8x400xf32>
    %11 = vector.extract_strided_slice %2 {offsets = [0, 1], sizes = [8, 1], strides = [1, 1]} : vector<8x9xf32> to vector<8x1xf32>
    %12 = vector.extract_strided_slice %4 {offsets = [0, 1], sizes = [1, 400], strides = [1, 1]} : vector<1x402xf32> to vector<1x400xf32>
    %13 = vector.broadcast %11 : vector<8x1xf32> to vector<8x400xf32>
    %14 = vector.broadcast %12 : vector<1x400xf32> to vector<8x400xf32>
    %15 = arith.mulf %13, %14 : vector<8x400xf32>
    %16 = arith.addf %10, %15 : vector<8x400xf32>
    %17 = vector.extract_strided_slice %2 {offsets = [0, 2], sizes = [8, 1], strides = [1, 1]} : vector<8x9xf32> to vector<8x1xf32>
    %18 = vector.extract_strided_slice %4 {offsets = [0, 2], sizes = [1, 400], strides = [1, 1]} : vector<1x402xf32> to vector<1x400xf32>
    %19 = vector.broadcast %17 : vector<8x1xf32> to vector<8x400xf32>
    %20 = vector.broadcast %18 : vector<1x400xf32> to vector<8x400xf32>
    %21 = arith.mulf %19, %20 : vector<8x400xf32>
    %22 = arith.addf %16, %21 : vector<8x400xf32>
    %23 = vector.extract_strided_slice %1 {offsets = [1, 0], sizes = [1, 402], strides = [1, 1]} : vector<7x402xf32> to vector<1x402xf32>
    %24 = vector.extract_strided_slice %2 {offsets = [0, 3], sizes = [8, 1], strides = [1, 1]} : vector<8x9xf32> to vector<8x1xf32>
    %25 = vector.extract_strided_slice %23 {offsets = [0, 0], sizes = [1, 400], strides = [1, 1]} : vector<1x402xf32> to vector<1x400xf32>
    %26 = vector.broadcast %24 : vector<8x1xf32> to vector<8x400xf32>
    %27 = vector.broadcast %25 : vector<1x400xf32> to vector<8x400xf32>
    %28 = arith.mulf %26, %27 : vector<8x400xf32>
    %29 = arith.addf %22, %28 : vector<8x400xf32>
    %30 = vector.extract_strided_slice %2 {offsets = [0, 4], sizes = [8, 1], strides = [1, 1]} : vector<8x9xf32> to vector<8x1xf32>
    %31 = vector.extract_strided_slice %23 {offsets = [0, 1], sizes = [1, 400], strides = [1, 1]} : vector<1x402xf32> to vector<1x400xf32>
    %32 = vector.broadcast %30 : vector<8x1xf32> to vector<8x400xf32>
    %33 = vector.broadcast %31 : vector<1x400xf32> to vector<8x400xf32>
    %34 = arith.mulf %32, %33 : vector<8x400xf32>
    %35 = arith.addf %29, %34 : vector<8x400xf32>
    %36 = vector.extract_strided_slice %2 {offsets = [0, 5], sizes = [8, 1], strides = [1, 1]} : vector<8x9xf32> to vector<8x1xf32>
    %37 = vector.extract_strided_slice %23 {offsets = [0, 2], sizes = [1, 400], strides = [1, 1]} : vector<1x402xf32> to vector<1x400xf32>
    %38 = vector.broadcast %36 : vector<8x1xf32> to vector<8x400xf32>
    %39 = vector.broadcast %37 : vector<1x400xf32> to vector<8x400xf32>
    %40 = arith.mulf %38, %39 : vector<8x400xf32>
    %41 = arith.addf %35, %40 : vector<8x400xf32>
    %42 = vector.extract_strided_slice %1 {offsets = [2, 0], sizes = [1, 402], strides = [1, 1]} : vector<7x402xf32> to vector<1x402xf32>
    %43 = vector.extract_strided_slice %2 {offsets = [0, 6], sizes = [8, 1], strides = [1, 1]} : vector<8x9xf32> to vector<8x1xf32>
    %44 = vector.extract_strided_slice %42 {offsets = [0, 0], sizes = [1, 400], strides = [1, 1]} : vector<1x402xf32> to vector<1x400xf32>
    %45 = vector.broadcast %43 : vector<8x1xf32> to vector<8x400xf32>
    %46 = vector.broadcast %44 : vector<1x400xf32> to vector<8x400xf32>
    %47 = arith.mulf %45, %46 : vector<8x400xf32>
    %48 = arith.addf %41, %47 : vector<8x400xf32>
    %49 = vector.extract_strided_slice %2 {offsets = [0, 7], sizes = [8, 1], strides = [1, 1]} : vector<8x9xf32> to vector<8x1xf32>
    %50 = vector.extract_strided_slice %42 {offsets = [0, 1], sizes = [1, 400], strides = [1, 1]} : vector<1x402xf32> to vector<1x400xf32>
    %51 = vector.broadcast %49 : vector<8x1xf32> to vector<8x400xf32>
    %52 = vector.broadcast %50 : vector<1x400xf32> to vector<8x400xf32>
    %53 = arith.mulf %51, %52 : vector<8x400xf32>
    %54 = arith.addf %48, %53 : vector<8x400xf32>
    %55 = vector.extract_strided_slice %2 {offsets = [0, 8], sizes = [8, 1], strides = [1, 1]} : vector<8x9xf32> to vector<8x1xf32>
    %56 = vector.extract_strided_slice %42 {offsets = [0, 2], sizes = [1, 400], strides = [1, 1]} : vector<1x402xf32> to vector<1x400xf32>
    %57 = vector.broadcast %55 : vector<8x1xf32> to vector<8x400xf32>
    %58 = vector.broadcast %56 : vector<1x400xf32> to vector<8x400xf32>
    %59 = arith.mulf %57, %58 : vector<8x400xf32>
    %60 = arith.addf %54, %59 : vector<8x400xf32>
    %cst_4 = arith.constant 0.000000e+00 : f32
    %61 = vector.broadcast %cst_4 : f32 to vector<8x400xf32>
    %62 = vector.extract_strided_slice %1 {offsets = [1, 0], sizes = [1, 402], strides = [1, 1]} : vector<7x402xf32> to vector<1x402xf32>
    %63 = vector.extract_strided_slice %2 {offsets = [0, 0], sizes = [8, 1], strides = [1, 1]} : vector<8x9xf32> to vector<8x1xf32>
    %64 = vector.extract_strided_slice %62 {offsets = [0, 0], sizes = [1, 400], strides = [1, 1]} : vector<1x402xf32> to vector<1x400xf32>
    %65 = vector.broadcast %63 : vector<8x1xf32> to vector<8x400xf32>
    %66 = vector.broadcast %64 : vector<1x400xf32> to vector<8x400xf32>
    %67 = arith.mulf %65, %66 : vector<8x400xf32>
    %68 = arith.addf %61, %67 : vector<8x400xf32>
    %69 = vector.extract_strided_slice %2 {offsets = [0, 1], sizes = [8, 1], strides = [1, 1]} : vector<8x9xf32> to vector<8x1xf32>
    %70 = vector.extract_strided_slice %62 {offsets = [0, 1], sizes = [1, 400], strides = [1, 1]} : vector<1x402xf32> to vector<1x400xf32>
    %71 = vector.broadcast %69 : vector<8x1xf32> to vector<8x400xf32>
    %72 = vector.broadcast %70 : vector<1x400xf32> to vector<8x400xf32>
    %73 = arith.mulf %71, %72 : vector<8x400xf32>
    %74 = arith.addf %68, %73 : vector<8x400xf32>
    %75 = vector.extract_strided_slice %2 {offsets = [0, 2], sizes = [8, 1], strides = [1, 1]} : vector<8x9xf32> to vector<8x1xf32>
    %76 = vector.extract_strided_slice %62 {offsets = [0, 2], sizes = [1, 400], strides = [1, 1]} : vector<1x402xf32> to vector<1x400xf32>
    %77 = vector.broadcast %75 : vector<8x1xf32> to vector<8x400xf32>
    %78 = vector.broadcast %76 : vector<1x400xf32> to vector<8x400xf32>
    %79 = arith.mulf %77, %78 : vector<8x400xf32>
    %80 = arith.addf %74, %79 : vector<8x400xf32>
    %81 = vector.extract_strided_slice %1 {offsets = [2, 0], sizes = [1, 402], strides = [1, 1]} : vector<7x402xf32> to vector<1x402xf32>
    %82 = vector.extract_strided_slice %2 {offsets = [0, 3], sizes = [8, 1], strides = [1, 1]} : vector<8x9xf32> to vector<8x1xf32>
    %83 = vector.extract_strided_slice %81 {offsets = [0, 0], sizes = [1, 400], strides = [1, 1]} : vector<1x402xf32> to vector<1x400xf32>
    %84 = vector.broadcast %82 : vector<8x1xf32> to vector<8x400xf32>
    %85 = vector.broadcast %83 : vector<1x400xf32> to vector<8x400xf32>
    %86 = arith.mulf %84, %85 : vector<8x400xf32>
    %87 = arith.addf %80, %86 : vector<8x400xf32>
    %88 = vector.extract_strided_slice %2 {offsets = [0, 4], sizes = [8, 1], strides = [1, 1]} : vector<8x9xf32> to vector<8x1xf32>
    %89 = vector.extract_strided_slice %81 {offsets = [0, 1], sizes = [1, 400], strides = [1, 1]} : vector<1x402xf32> to vector<1x400xf32>
    %90 = vector.broadcast %88 : vector<8x1xf32> to vector<8x400xf32>
    %91 = vector.broadcast %89 : vector<1x400xf32> to vector<8x400xf32>
    %92 = arith.mulf %90, %91 : vector<8x400xf32>
    %93 = arith.addf %87, %92 : vector<8x400xf32>
    %94 = vector.extract_strided_slice %2 {offsets = [0, 5], sizes = [8, 1], strides = [1, 1]} : vector<8x9xf32> to vector<8x1xf32>
    %95 = vector.extract_strided_slice %81 {offsets = [0, 2], sizes = [1, 400], strides = [1, 1]} : vector<1x402xf32> to vector<1x400xf32>
    %96 = vector.broadcast %94 : vector<8x1xf32> to vector<8x400xf32>
    %97 = vector.broadcast %95 : vector<1x400xf32> to vector<8x400xf32>
    %98 = arith.mulf %96, %97 : vector<8x400xf32>
    %99 = arith.addf %93, %98 : vector<8x400xf32>
    %100 = vector.extract_strided_slice %1 {offsets = [3, 0], sizes = [1, 402], strides = [1, 1]} : vector<7x402xf32> to vector<1x402xf32>
    %101 = vector.extract_strided_slice %2 {offsets = [0, 6], sizes = [8, 1], strides = [1, 1]} : vector<8x9xf32> to vector<8x1xf32>
    %102 = vector.extract_strided_slice %100 {offsets = [0, 0], sizes = [1, 400], strides = [1, 1]} : vector<1x402xf32> to vector<1x400xf32>
    %103 = vector.broadcast %101 : vector<8x1xf32> to vector<8x400xf32>
    %104 = vector.broadcast %102 : vector<1x400xf32> to vector<8x400xf32>
    %105 = arith.mulf %103, %104 : vector<8x400xf32>
    %106 = arith.addf %99, %105 : vector<8x400xf32>
    %107 = vector.extract_strided_slice %2 {offsets = [0, 7], sizes = [8, 1], strides = [1, 1]} : vector<8x9xf32> to vector<8x1xf32>
    %108 = vector.extract_strided_slice %100 {offsets = [0, 1], sizes = [1, 400], strides = [1, 1]} : vector<1x402xf32> to vector<1x400xf32>
    %109 = vector.broadcast %107 : vector<8x1xf32> to vector<8x400xf32>
    %110 = vector.broadcast %108 : vector<1x400xf32> to vector<8x400xf32>
    %111 = arith.mulf %109, %110 : vector<8x400xf32>
    %112 = arith.addf %106, %111 : vector<8x400xf32>
    %113 = vector.extract_strided_slice %2 {offsets = [0, 8], sizes = [8, 1], strides = [1, 1]} : vector<8x9xf32> to vector<8x1xf32>
    %114 = vector.extract_strided_slice %100 {offsets = [0, 2], sizes = [1, 400], strides = [1, 1]} : vector<1x402xf32> to vector<1x400xf32>
    %115 = vector.broadcast %113 : vector<8x1xf32> to vector<8x400xf32>
    %116 = vector.broadcast %114 : vector<1x400xf32> to vector<8x400xf32>
    %117 = arith.mulf %115, %116 : vector<8x400xf32>
    %118 = arith.addf %112, %117 : vector<8x400xf32>
    %cst_5 = arith.constant 0.000000e+00 : f32
    %119 = vector.broadcast %cst_5 : f32 to vector<8x400xf32>
    %120 = vector.extract_strided_slice %1 {offsets = [2, 0], sizes = [1, 402], strides = [1, 1]} : vector<7x402xf32> to vector<1x402xf32>
    %121 = vector.extract_strided_slice %2 {offsets = [0, 0], sizes = [8, 1], strides = [1, 1]} : vector<8x9xf32> to vector<8x1xf32>
    %122 = vector.extract_strided_slice %120 {offsets = [0, 0], sizes = [1, 400], strides = [1, 1]} : vector<1x402xf32> to vector<1x400xf32>
    %123 = vector.broadcast %121 : vector<8x1xf32> to vector<8x400xf32>
    %124 = vector.broadcast %122 : vector<1x400xf32> to vector<8x400xf32>
    %125 = arith.mulf %123, %124 : vector<8x400xf32>
    %126 = arith.addf %119, %125 : vector<8x400xf32>
    %127 = vector.extract_strided_slice %2 {offsets = [0, 1], sizes = [8, 1], strides = [1, 1]} : vector<8x9xf32> to vector<8x1xf32>
    %128 = vector.extract_strided_slice %120 {offsets = [0, 1], sizes = [1, 400], strides = [1, 1]} : vector<1x402xf32> to vector<1x400xf32>
    %129 = vector.broadcast %127 : vector<8x1xf32> to vector<8x400xf32>
    %130 = vector.broadcast %128 : vector<1x400xf32> to vector<8x400xf32>
    %131 = arith.mulf %129, %130 : vector<8x400xf32>
    %132 = arith.addf %126, %131 : vector<8x400xf32>
    %133 = vector.extract_strided_slice %2 {offsets = [0, 2], sizes = [8, 1], strides = [1, 1]} : vector<8x9xf32> to vector<8x1xf32>
    %134 = vector.extract_strided_slice %120 {offsets = [0, 2], sizes = [1, 400], strides = [1, 1]} : vector<1x402xf32> to vector<1x400xf32>
    %135 = vector.broadcast %133 : vector<8x1xf32> to vector<8x400xf32>
    %136 = vector.broadcast %134 : vector<1x400xf32> to vector<8x400xf32>
    %137 = arith.mulf %135, %136 : vector<8x400xf32>
    %138 = arith.addf %132, %137 : vector<8x400xf32>
    %139 = vector.extract_strided_slice %1 {offsets = [3, 0], sizes = [1, 402], strides = [1, 1]} : vector<7x402xf32> to vector<1x402xf32>
    %140 = vector.extract_strided_slice %2 {offsets = [0, 3], sizes = [8, 1], strides = [1, 1]} : vector<8x9xf32> to vector<8x1xf32>
    %141 = vector.extract_strided_slice %139 {offsets = [0, 0], sizes = [1, 400], strides = [1, 1]} : vector<1x402xf32> to vector<1x400xf32>
    %142 = vector.broadcast %140 : vector<8x1xf32> to vector<8x400xf32>
    %143 = vector.broadcast %141 : vector<1x400xf32> to vector<8x400xf32>
    %144 = arith.mulf %142, %143 : vector<8x400xf32>
    %145 = arith.addf %138, %144 : vector<8x400xf32>
    %146 = vector.extract_strided_slice %2 {offsets = [0, 4], sizes = [8, 1], strides = [1, 1]} : vector<8x9xf32> to vector<8x1xf32>
    %147 = vector.extract_strided_slice %139 {offsets = [0, 1], sizes = [1, 400], strides = [1, 1]} : vector<1x402xf32> to vector<1x400xf32>
    %148 = vector.broadcast %146 : vector<8x1xf32> to vector<8x400xf32>
    %149 = vector.broadcast %147 : vector<1x400xf32> to vector<8x400xf32>
    %150 = arith.mulf %148, %149 : vector<8x400xf32>
    %151 = arith.addf %145, %150 : vector<8x400xf32>
    %152 = vector.extract_strided_slice %2 {offsets = [0, 5], sizes = [8, 1], strides = [1, 1]} : vector<8x9xf32> to vector<8x1xf32>
    %153 = vector.extract_strided_slice %139 {offsets = [0, 2], sizes = [1, 400], strides = [1, 1]} : vector<1x402xf32> to vector<1x400xf32>
    %154 = vector.broadcast %152 : vector<8x1xf32> to vector<8x400xf32>
    %155 = vector.broadcast %153 : vector<1x400xf32> to vector<8x400xf32>
    %156 = arith.mulf %154, %155 : vector<8x400xf32>
    %157 = arith.addf %151, %156 : vector<8x400xf32>
    %158 = vector.extract_strided_slice %1 {offsets = [4, 0], sizes = [1, 402], strides = [1, 1]} : vector<7x402xf32> to vector<1x402xf32>
    %159 = vector.extract_strided_slice %2 {offsets = [0, 6], sizes = [8, 1], strides = [1, 1]} : vector<8x9xf32> to vector<8x1xf32>
    %160 = vector.extract_strided_slice %158 {offsets = [0, 0], sizes = [1, 400], strides = [1, 1]} : vector<1x402xf32> to vector<1x400xf32>
    %161 = vector.broadcast %159 : vector<8x1xf32> to vector<8x400xf32>
    %162 = vector.broadcast %160 : vector<1x400xf32> to vector<8x400xf32>
    %163 = arith.mulf %161, %162 : vector<8x400xf32>
    %164 = arith.addf %157, %163 : vector<8x400xf32>
    %165 = vector.extract_strided_slice %2 {offsets = [0, 7], sizes = [8, 1], strides = [1, 1]} : vector<8x9xf32> to vector<8x1xf32>
    %166 = vector.extract_strided_slice %158 {offsets = [0, 1], sizes = [1, 400], strides = [1, 1]} : vector<1x402xf32> to vector<1x400xf32>
    %167 = vector.broadcast %165 : vector<8x1xf32> to vector<8x400xf32>
    %168 = vector.broadcast %166 : vector<1x400xf32> to vector<8x400xf32>
    %169 = arith.mulf %167, %168 : vector<8x400xf32>
    %170 = arith.addf %164, %169 : vector<8x400xf32>
    %171 = vector.extract_strided_slice %2 {offsets = [0, 8], sizes = [8, 1], strides = [1, 1]} : vector<8x9xf32> to vector<8x1xf32>
    %172 = vector.extract_strided_slice %158 {offsets = [0, 2], sizes = [1, 400], strides = [1, 1]} : vector<1x402xf32> to vector<1x400xf32>
    %173 = vector.broadcast %171 : vector<8x1xf32> to vector<8x400xf32>
    %174 = vector.broadcast %172 : vector<1x400xf32> to vector<8x400xf32>
    %175 = arith.mulf %173, %174 : vector<8x400xf32>
    %176 = arith.addf %170, %175 : vector<8x400xf32>
    %cst_6 = arith.constant 0.000000e+00 : f32
    %177 = vector.broadcast %cst_6 : f32 to vector<8x400xf32>
    %178 = vector.extract_strided_slice %1 {offsets = [3, 0], sizes = [1, 402], strides = [1, 1]} : vector<7x402xf32> to vector<1x402xf32>
    %179 = vector.extract_strided_slice %2 {offsets = [0, 0], sizes = [8, 1], strides = [1, 1]} : vector<8x9xf32> to vector<8x1xf32>
    %180 = vector.extract_strided_slice %178 {offsets = [0, 0], sizes = [1, 400], strides = [1, 1]} : vector<1x402xf32> to vector<1x400xf32>
    %181 = vector.broadcast %179 : vector<8x1xf32> to vector<8x400xf32>
    %182 = vector.broadcast %180 : vector<1x400xf32> to vector<8x400xf32>
    %183 = arith.mulf %181, %182 : vector<8x400xf32>
    %184 = arith.addf %177, %183 : vector<8x400xf32>
    %185 = vector.extract_strided_slice %2 {offsets = [0, 1], sizes = [8, 1], strides = [1, 1]} : vector<8x9xf32> to vector<8x1xf32>
    %186 = vector.extract_strided_slice %178 {offsets = [0, 1], sizes = [1, 400], strides = [1, 1]} : vector<1x402xf32> to vector<1x400xf32>
    %187 = vector.broadcast %185 : vector<8x1xf32> to vector<8x400xf32>
    %188 = vector.broadcast %186 : vector<1x400xf32> to vector<8x400xf32>
    %189 = arith.mulf %187, %188 : vector<8x400xf32>
    %190 = arith.addf %184, %189 : vector<8x400xf32>
    %191 = vector.extract_strided_slice %2 {offsets = [0, 2], sizes = [8, 1], strides = [1, 1]} : vector<8x9xf32> to vector<8x1xf32>
    %192 = vector.extract_strided_slice %178 {offsets = [0, 2], sizes = [1, 400], strides = [1, 1]} : vector<1x402xf32> to vector<1x400xf32>
    %193 = vector.broadcast %191 : vector<8x1xf32> to vector<8x400xf32>
    %194 = vector.broadcast %192 : vector<1x400xf32> to vector<8x400xf32>
    %195 = arith.mulf %193, %194 : vector<8x400xf32>
    %196 = arith.addf %190, %195 : vector<8x400xf32>
    %197 = vector.extract_strided_slice %1 {offsets = [4, 0], sizes = [1, 402], strides = [1, 1]} : vector<7x402xf32> to vector<1x402xf32>
    %198 = vector.extract_strided_slice %2 {offsets = [0, 3], sizes = [8, 1], strides = [1, 1]} : vector<8x9xf32> to vector<8x1xf32>
    %199 = vector.extract_strided_slice %197 {offsets = [0, 0], sizes = [1, 400], strides = [1, 1]} : vector<1x402xf32> to vector<1x400xf32>
    %200 = vector.broadcast %198 : vector<8x1xf32> to vector<8x400xf32>
    %201 = vector.broadcast %199 : vector<1x400xf32> to vector<8x400xf32>
    %202 = arith.mulf %200, %201 : vector<8x400xf32>
    %203 = arith.addf %196, %202 : vector<8x400xf32>
    %204 = vector.extract_strided_slice %2 {offsets = [0, 4], sizes = [8, 1], strides = [1, 1]} : vector<8x9xf32> to vector<8x1xf32>
    %205 = vector.extract_strided_slice %197 {offsets = [0, 1], sizes = [1, 400], strides = [1, 1]} : vector<1x402xf32> to vector<1x400xf32>
    %206 = vector.broadcast %204 : vector<8x1xf32> to vector<8x400xf32>
    %207 = vector.broadcast %205 : vector<1x400xf32> to vector<8x400xf32>
    %208 = arith.mulf %206, %207 : vector<8x400xf32>
    %209 = arith.addf %203, %208 : vector<8x400xf32>
    %210 = vector.extract_strided_slice %2 {offsets = [0, 5], sizes = [8, 1], strides = [1, 1]} : vector<8x9xf32> to vector<8x1xf32>
    %211 = vector.extract_strided_slice %197 {offsets = [0, 2], sizes = [1, 400], strides = [1, 1]} : vector<1x402xf32> to vector<1x400xf32>
    %212 = vector.broadcast %210 : vector<8x1xf32> to vector<8x400xf32>
    %213 = vector.broadcast %211 : vector<1x400xf32> to vector<8x400xf32>
    %214 = arith.mulf %212, %213 : vector<8x400xf32>
    %215 = arith.addf %209, %214 : vector<8x400xf32>
    %216 = vector.extract_strided_slice %1 {offsets = [5, 0], sizes = [1, 402], strides = [1, 1]} : vector<7x402xf32> to vector<1x402xf32>
    %217 = vector.extract_strided_slice %2 {offsets = [0, 6], sizes = [8, 1], strides = [1, 1]} : vector<8x9xf32> to vector<8x1xf32>
    %218 = vector.extract_strided_slice %216 {offsets = [0, 0], sizes = [1, 400], strides = [1, 1]} : vector<1x402xf32> to vector<1x400xf32>
    %219 = vector.broadcast %217 : vector<8x1xf32> to vector<8x400xf32>
    %220 = vector.broadcast %218 : vector<1x400xf32> to vector<8x400xf32>
    %221 = arith.mulf %219, %220 : vector<8x400xf32>
    %222 = arith.addf %215, %221 : vector<8x400xf32>
    %223 = vector.extract_strided_slice %2 {offsets = [0, 7], sizes = [8, 1], strides = [1, 1]} : vector<8x9xf32> to vector<8x1xf32>
    %224 = vector.extract_strided_slice %216 {offsets = [0, 1], sizes = [1, 400], strides = [1, 1]} : vector<1x402xf32> to vector<1x400xf32>
    %225 = vector.broadcast %223 : vector<8x1xf32> to vector<8x400xf32>
    %226 = vector.broadcast %224 : vector<1x400xf32> to vector<8x400xf32>
    %227 = arith.mulf %225, %226 : vector<8x400xf32>
    %228 = arith.addf %222, %227 : vector<8x400xf32>
    %229 = vector.extract_strided_slice %2 {offsets = [0, 8], sizes = [8, 1], strides = [1, 1]} : vector<8x9xf32> to vector<8x1xf32>
    %230 = vector.extract_strided_slice %216 {offsets = [0, 2], sizes = [1, 400], strides = [1, 1]} : vector<1x402xf32> to vector<1x400xf32>
    %231 = vector.broadcast %229 : vector<8x1xf32> to vector<8x400xf32>
    %232 = vector.broadcast %230 : vector<1x400xf32> to vector<8x400xf32>
    %233 = arith.mulf %231, %232 : vector<8x400xf32>
    %234 = arith.addf %228, %233 : vector<8x400xf32>
    %235 = tpu.iota {dimensions = array<i32: 0>} : vector<400x202xi32>
    %236 = tpu.iota {dimensions = array<i32: 1>} : vector<400x202xi32>
    %c2_i32 = arith.constant 2 : i32
    %237 = vector.broadcast %c2_i32 : i32 to vector<400x202xi32>
    %238 = arith.muli %237, %236 : vector<400x202xi32>
    %c2_i32_7 = arith.constant 2 : i32
    %239 = vector.broadcast %c2_i32_7 : i32 to vector<400x202xi32>
    %240 = arith.subi %238, %239 : vector<400x202xi32>
    %241 = arith.cmpi eq, %235, %240 : vector<400x202xi32>
    %cst_8 = arith.constant 1.000000e+00 : f32
    %cst_9 = arith.constant 0.000000e+00 : f32
    %242 = vector.broadcast %cst_8 : f32 to vector<400x202xf32>
    %243 = vector.broadcast %cst_9 : f32 to vector<400x202xf32>
    %244 = arith.select %241, %242, %243 : vector<400x202xi1>, vector<400x202xf32>
    %c2_i32_10 = arith.constant 2 : i32
    %245 = vector.broadcast %c2_i32_10 : i32 to vector<400x202xi32>
    %246 = arith.muli %245, %236 : vector<400x202xi32>
    %c1_i32 = arith.constant 1 : i32
    %247 = vector.broadcast %c1_i32 : i32 to vector<400x202xi32>
    %248 = arith.subi %246, %247 : vector<400x202xi32>
    %249 = arith.cmpi eq, %235, %248 : vector<400x202xi32>
    %cst_11 = arith.constant 1.000000e+00 : f32
    %cst_12 = arith.constant 0.000000e+00 : f32
    %250 = vector.broadcast %cst_11 : f32 to vector<400x202xf32>
    %251 = vector.broadcast %cst_12 : f32 to vector<400x202xf32>
    %252 = arith.select %249, %250, %251 : vector<400x202xi1>, vector<400x202xf32>
    %253 = arith.maximumf %60, %118 : vector<8x400xf32>
    %c0_13 = arith.constant 0 : index
    %c0_14 = arith.constant 0 : index
    %254 = vector.load %arg3[%c0_13, %c0_14] : memref<8x1xf32, #tpu.memory_space<vmem>>, vector<8x1xf32>
    %255 = vector.broadcast %254 : vector<8x1xf32> to vector<8x400xf32>
    %256 = arith.addf %253, %255 : vector<8x400xf32>
    %cst_15 = arith.constant 0.000000e+00 : f32
    %257 = vector.broadcast %cst_15 : f32 to vector<8x400xf32>
    %258 = arith.maximumf %256, %257 : vector<8x400xf32>
    %cst_16 = arith.constant dense<0.000000e+00> : vector<8x202xf32>
    %259 = tpu.matmul %258, %244, %cst_16 {dimension_numbers = #tpu.dot_dimension_numbers<[1], [0], [0], [1], [0, 0, 1, 1], [], []>} : vector<8x400xf32>, vector<400x202xf32>, vector<8x202xf32> -> vector<8x202xf32>
    %cst_17 = arith.constant dense<0.000000e+00> : vector<8x202xf32>
    %260 = tpu.matmul %258, %252, %cst_17 {dimension_numbers = #tpu.dot_dimension_numbers<[1], [0], [0], [1], [0, 0, 1, 1], [], []>} : vector<8x400xf32>, vector<400x202xf32>, vector<8x202xf32> -> vector<8x202xf32>
    %261 = arith.maximumf %259, %260 : vector<8x202xf32>
    %262 = arith.maximumf %176, %234 : vector<8x400xf32>
    %c0_18 = arith.constant 0 : index
    %c0_19 = arith.constant 0 : index
    %263 = vector.load %arg3[%c0_18, %c0_19] : memref<8x1xf32, #tpu.memory_space<vmem>>, vector<8x1xf32>
    %264 = vector.broadcast %263 : vector<8x1xf32> to vector<8x400xf32>
    %265 = arith.addf %262, %264 : vector<8x400xf32>
    %cst_20 = arith.constant 0.000000e+00 : f32
    %266 = vector.broadcast %cst_20 : f32 to vector<8x400xf32>
    %267 = arith.maximumf %265, %266 : vector<8x400xf32>
    %cst_21 = arith.constant dense<0.000000e+00> : vector<8x202xf32>
    %268 = tpu.matmul %267, %244, %cst_21 {dimension_numbers = #tpu.dot_dimension_numbers<[1], [0], [0], [1], [0, 0, 1, 1], [], []>} : vector<8x400xf32>, vector<400x202xf32>, vector<8x202xf32> -> vector<8x202xf32>
    %cst_22 = arith.constant dense<0.000000e+00> : vector<8x202xf32>
    %269 = tpu.matmul %267, %252, %cst_22 {dimension_numbers = #tpu.dot_dimension_numbers<[1], [0], [0], [1], [0, 0, 1, 1], [], []>} : vector<8x400xf32>, vector<400x202xf32>, vector<8x202xf32> -> vector<8x202xf32>
    %270 = arith.maximumf %268, %269 : vector<8x202xf32>
    %cst_23 = arith.constant 0.000000e+00 : f32
    %271 = vector.broadcast %cst_23 : f32 to vector<16x200xf32>
    %c3 = arith.constant 3 : index
    %c0_24 = arith.constant 0 : index
    %c0_25 = arith.constant 0 : index
    %272 = vector.load %arg4[%c3, %c0_24, %c0_25] : memref<9x16x8xf32, #tpu.memory_space<vmem>>, vector<1x16x8xf32>
    %273 = vector.shape_cast %272 : vector<1x16x8xf32> to vector<16x8xf32>
    %274 = vector.extract_strided_slice %261 {offsets = [0, 0], sizes = [8, 200], strides = [1, 1]} : vector<8x202xf32> to vector<8x200xf32>
    %cst_26 = arith.constant dense<0.000000e+00> : vector<16x200xf32>
    %275 = tpu.matmul %273, %274, %cst_26 {dimension_numbers = #tpu.dot_dimension_numbers<[1], [0], [0], [1], [0, 0, 1, 1], [], []>} : vector<16x8xf32>, vector<8x200xf32>, vector<16x200xf32> -> vector<16x200xf32>
    %276 = arith.addf %271, %275 : vector<16x200xf32>
    %c4 = arith.constant 4 : index
    %c0_27 = arith.constant 0 : index
    %c0_28 = arith.constant 0 : index
    %277 = vector.load %arg4[%c4, %c0_27, %c0_28] : memref<9x16x8xf32, #tpu.memory_space<vmem>>, vector<1x16x8xf32>
    %278 = vector.shape_cast %277 : vector<1x16x8xf32> to vector<16x8xf32>
    %279 = vector.extract_strided_slice %261 {offsets = [0, 1], sizes = [8, 200], strides = [1, 1]} : vector<8x202xf32> to vector<8x200xf32>
    %cst_29 = arith.constant dense<0.000000e+00> : vector<16x200xf32>
    %280 = tpu.matmul %278, %279, %cst_29 {dimension_numbers = #tpu.dot_dimension_numbers<[1], [0], [0], [1], [0, 0, 1, 1], [], []>} : vector<16x8xf32>, vector<8x200xf32>, vector<16x200xf32> -> vector<16x200xf32>
    %281 = arith.addf %276, %280 : vector<16x200xf32>
    %c5 = arith.constant 5 : index
    %c0_30 = arith.constant 0 : index
    %c0_31 = arith.constant 0 : index
    %282 = vector.load %arg4[%c5, %c0_30, %c0_31] : memref<9x16x8xf32, #tpu.memory_space<vmem>>, vector<1x16x8xf32>
    %283 = vector.shape_cast %282 : vector<1x16x8xf32> to vector<16x8xf32>
    %284 = vector.extract_strided_slice %261 {offsets = [0, 2], sizes = [8, 200], strides = [1, 1]} : vector<8x202xf32> to vector<8x200xf32>
    %cst_32 = arith.constant dense<0.000000e+00> : vector<16x200xf32>
    %285 = tpu.matmul %283, %284, %cst_32 {dimension_numbers = #tpu.dot_dimension_numbers<[1], [0], [0], [1], [0, 0, 1, 1], [], []>} : vector<16x8xf32>, vector<8x200xf32>, vector<16x200xf32> -> vector<16x200xf32>
    %286 = arith.addf %281, %285 : vector<16x200xf32>
    %c6 = arith.constant 6 : index
    %c0_33 = arith.constant 0 : index
    %c0_34 = arith.constant 0 : index
    %287 = vector.load %arg4[%c6, %c0_33, %c0_34] : memref<9x16x8xf32, #tpu.memory_space<vmem>>, vector<1x16x8xf32>
    %288 = vector.shape_cast %287 : vector<1x16x8xf32> to vector<16x8xf32>
    %289 = vector.extract_strided_slice %270 {offsets = [0, 0], sizes = [8, 200], strides = [1, 1]} : vector<8x202xf32> to vector<8x200xf32>
    %cst_35 = arith.constant dense<0.000000e+00> : vector<16x200xf32>
    %290 = tpu.matmul %288, %289, %cst_35 {dimension_numbers = #tpu.dot_dimension_numbers<[1], [0], [0], [1], [0, 0, 1, 1], [], []>} : vector<16x8xf32>, vector<8x200xf32>, vector<16x200xf32> -> vector<16x200xf32>
    %291 = arith.addf %286, %290 : vector<16x200xf32>
    %c7 = arith.constant 7 : index
    %c0_36 = arith.constant 0 : index
    %c0_37 = arith.constant 0 : index
    %292 = vector.load %arg4[%c7, %c0_36, %c0_37] : memref<9x16x8xf32, #tpu.memory_space<vmem>>, vector<1x16x8xf32>
    %293 = vector.shape_cast %292 : vector<1x16x8xf32> to vector<16x8xf32>
    %294 = vector.extract_strided_slice %270 {offsets = [0, 1], sizes = [8, 200], strides = [1, 1]} : vector<8x202xf32> to vector<8x200xf32>
    %cst_38 = arith.constant dense<0.000000e+00> : vector<16x200xf32>
    %295 = tpu.matmul %293, %294, %cst_38 {dimension_numbers = #tpu.dot_dimension_numbers<[1], [0], [0], [1], [0, 0, 1, 1], [], []>} : vector<16x8xf32>, vector<8x200xf32>, vector<16x200xf32> -> vector<16x200xf32>
    %296 = arith.addf %291, %295 : vector<16x200xf32>
    %c8 = arith.constant 8 : index
    %c0_39 = arith.constant 0 : index
    %c0_40 = arith.constant 0 : index
    %297 = vector.load %arg4[%c8, %c0_39, %c0_40] : memref<9x16x8xf32, #tpu.memory_space<vmem>>, vector<1x16x8xf32>
    %298 = vector.shape_cast %297 : vector<1x16x8xf32> to vector<16x8xf32>
    %299 = vector.extract_strided_slice %270 {offsets = [0, 2], sizes = [8, 200], strides = [1, 1]} : vector<8x202xf32> to vector<8x200xf32>
    %cst_41 = arith.constant dense<0.000000e+00> : vector<16x200xf32>
    %300 = tpu.matmul %298, %299, %cst_41 {dimension_numbers = #tpu.dot_dimension_numbers<[1], [0], [0], [1], [0, 0, 1, 1], [], []>} : vector<16x8xf32>, vector<8x200xf32>, vector<16x200xf32> -> vector<16x200xf32>
    %301 = arith.addf %296, %300 : vector<16x200xf32>
    %cst_42 = arith.constant 0.000000e+00 : f32
    %302 = vector.broadcast %cst_42 : f32 to vector<16x200xf32>
    %c0_43 = arith.constant 0 : index
    %c0_44 = arith.constant 0 : index
    %c0_45 = arith.constant 0 : index
    %303 = vector.load %arg4[%c0_43, %c0_44, %c0_45] : memref<9x16x8xf32, #tpu.memory_space<vmem>>, vector<1x16x8xf32>
    %304 = vector.shape_cast %303 : vector<1x16x8xf32> to vector<16x8xf32>
    %305 = vector.extract_strided_slice %261 {offsets = [0, 0], sizes = [8, 200], strides = [1, 1]} : vector<8x202xf32> to vector<8x200xf32>
    %cst_46 = arith.constant dense<0.000000e+00> : vector<16x200xf32>
    %306 = tpu.matmul %304, %305, %cst_46 {dimension_numbers = #tpu.dot_dimension_numbers<[1], [0], [0], [1], [0, 0, 1, 1], [], []>} : vector<16x8xf32>, vector<8x200xf32>, vector<16x200xf32> -> vector<16x200xf32>
    %307 = arith.addf %302, %306 : vector<16x200xf32>
    %c1 = arith.constant 1 : index
    %c0_47 = arith.constant 0 : index
    %c0_48 = arith.constant 0 : index
    %308 = vector.load %arg4[%c1, %c0_47, %c0_48] : memref<9x16x8xf32, #tpu.memory_space<vmem>>, vector<1x16x8xf32>
    %309 = vector.shape_cast %308 : vector<1x16x8xf32> to vector<16x8xf32>
    %310 = vector.extract_strided_slice %261 {offsets = [0, 1], sizes = [8, 200], strides = [1, 1]} : vector<8x202xf32> to vector<8x200xf32>
    %cst_49 = arith.constant dense<0.000000e+00> : vector<16x200xf32>
    %311 = tpu.matmul %309, %310, %cst_49 {dimension_numbers = #tpu.dot_dimension_numbers<[1], [0], [0], [1], [0, 0, 1, 1], [], []>} : vector<16x8xf32>, vector<8x200xf32>, vector<16x200xf32> -> vector<16x200xf32>
    %312 = arith.addf %307, %311 : vector<16x200xf32>
    %c2 = arith.constant 2 : index
    %c0_50 = arith.constant 0 : index
    %c0_51 = arith.constant 0 : index
    %313 = vector.load %arg4[%c2, %c0_50, %c0_51] : memref<9x16x8xf32, #tpu.memory_space<vmem>>, vector<1x16x8xf32>
    %314 = vector.shape_cast %313 : vector<1x16x8xf32> to vector<16x8xf32>
    %315 = vector.extract_strided_slice %261 {offsets = [0, 2], sizes = [8, 200], strides = [1, 1]} : vector<8x202xf32> to vector<8x200xf32>
    %cst_52 = arith.constant dense<0.000000e+00> : vector<16x200xf32>
    %316 = tpu.matmul %314, %315, %cst_52 {dimension_numbers = #tpu.dot_dimension_numbers<[1], [0], [0], [1], [0, 0, 1, 1], [], []>} : vector<16x8xf32>, vector<8x200xf32>, vector<16x200xf32> -> vector<16x200xf32>
    %317 = arith.addf %312, %316 : vector<16x200xf32>
    %c3_53 = arith.constant 3 : index
    %c0_54 = arith.constant 0 : index
    %c0_55 = arith.constant 0 : index
    %318 = vector.load %arg4[%c3_53, %c0_54, %c0_55] : memref<9x16x8xf32, #tpu.memory_space<vmem>>, vector<1x16x8xf32>
    %319 = vector.shape_cast %318 : vector<1x16x8xf32> to vector<16x8xf32>
    %320 = vector.extract_strided_slice %270 {offsets = [0, 0], sizes = [8, 200], strides = [1, 1]} : vector<8x202xf32> to vector<8x200xf32>
    %cst_56 = arith.constant dense<0.000000e+00> : vector<16x200xf32>
    %321 = tpu.matmul %319, %320, %cst_56 {dimension_numbers = #tpu.dot_dimension_numbers<[1], [0], [0], [1], [0, 0, 1, 1], [], []>} : vector<16x8xf32>, vector<8x200xf32>, vector<16x200xf32> -> vector<16x200xf32>
    %322 = arith.addf %317, %321 : vector<16x200xf32>
    %c4_57 = arith.constant 4 : index
    %c0_58 = arith.constant 0 : index
    %c0_59 = arith.constant 0 : index
    %323 = vector.load %arg4[%c4_57, %c0_58, %c0_59] : memref<9x16x8xf32, #tpu.memory_space<vmem>>, vector<1x16x8xf32>
    %324 = vector.shape_cast %323 : vector<1x16x8xf32> to vector<16x8xf32>
    %325 = vector.extract_strided_slice %270 {offsets = [0, 1], sizes = [8, 200], strides = [1, 1]} : vector<8x202xf32> to vector<8x200xf32>
    %cst_60 = arith.constant dense<0.000000e+00> : vector<16x200xf32>
    %326 = tpu.matmul %324, %325, %cst_60 {dimension_numbers = #tpu.dot_dimension_numbers<[1], [0], [0], [1], [0, 0, 1, 1], [], []>} : vector<16x8xf32>, vector<8x200xf32>, vector<16x200xf32> -> vector<16x200xf32>
    %327 = arith.addf %322, %326 : vector<16x200xf32>
    %c5_61 = arith.constant 5 : index
    %c0_62 = arith.constant 0 : index
    %c0_63 = arith.constant 0 : index
    %328 = vector.load %arg4[%c5_61, %c0_62, %c0_63] : memref<9x16x8xf32, #tpu.memory_space<vmem>>, vector<1x16x8xf32>
    %329 = vector.shape_cast %328 : vector<1x16x8xf32> to vector<16x8xf32>
    %330 = vector.extract_strided_slice %270 {offsets = [0, 2], sizes = [8, 200], strides = [1, 1]} : vector<8x202xf32> to vector<8x200xf32>
    %cst_64 = arith.constant dense<0.000000e+00> : vector<16x200xf32>
    %331 = tpu.matmul %329, %330, %cst_64 {dimension_numbers = #tpu.dot_dimension_numbers<[1], [0], [0], [1], [0, 0, 1, 1], [], []>} : vector<16x8xf32>, vector<8x200xf32>, vector<16x200xf32> -> vector<16x200xf32>
    %332 = arith.addf %327, %331 : vector<16x200xf32>
    %333 = tpu.iota {dimensions = array<i32: 0>} : vector<200x100xi32>
    %334 = tpu.iota {dimensions = array<i32: 1>} : vector<200x100xi32>
    %c2_i32_65 = arith.constant 2 : i32
    %335 = vector.broadcast %c2_i32_65 : i32 to vector<200x100xi32>
    %336 = arith.muli %335, %334 : vector<200x100xi32>
    %337 = arith.cmpi eq, %333, %336 : vector<200x100xi32>
    %cst_66 = arith.constant 1.000000e+00 : f32
    %cst_67 = arith.constant 0.000000e+00 : f32
    %338 = vector.broadcast %cst_66 : f32 to vector<200x100xf32>
    %339 = vector.broadcast %cst_67 : f32 to vector<200x100xf32>
    %340 = arith.select %337, %338, %339 : vector<200x100xi1>, vector<200x100xf32>
    %c2_i32_68 = arith.constant 2 : i32
    %341 = vector.broadcast %c2_i32_68 : i32 to vector<200x100xi32>
    %342 = arith.muli %341, %334 : vector<200x100xi32>
    %c1_i32_69 = arith.constant 1 : i32
    %343 = vector.broadcast %c1_i32_69 : i32 to vector<200x100xi32>
    %344 = arith.addi %342, %343 : vector<200x100xi32>
    %345 = arith.cmpi eq, %333, %344 : vector<200x100xi32>
    %cst_70 = arith.constant 1.000000e+00 : f32
    %cst_71 = arith.constant 0.000000e+00 : f32
    %346 = vector.broadcast %cst_70 : f32 to vector<200x100xf32>
    %347 = vector.broadcast %cst_71 : f32 to vector<200x100xf32>
    %348 = arith.select %345, %346, %347 : vector<200x100xi1>, vector<200x100xf32>
    %349 = arith.maximumf %301, %332 : vector<16x200xf32>
    %cst_72 = arith.constant dense<0.000000e+00> : vector<16x100xf32>
    %350 = tpu.matmul %349, %340, %cst_72 {dimension_numbers = #tpu.dot_dimension_numbers<[1], [0], [0], [1], [0, 0, 1, 1], [], []>} : vector<16x200xf32>, vector<200x100xf32>, vector<16x100xf32> -> vector<16x100xf32>
    %cst_73 = arith.constant dense<0.000000e+00> : vector<16x100xf32>
    %351 = tpu.matmul %349, %348, %cst_73 {dimension_numbers = #tpu.dot_dimension_numbers<[1], [0], [0], [1], [0, 0, 1, 1], [], []>} : vector<16x200xf32>, vector<200x100xf32>, vector<16x100xf32> -> vector<16x100xf32>
    %352 = arith.maximumf %350, %351 : vector<16x100xf32>
    %c0_74 = arith.constant 0 : index
    %c0_75 = arith.constant 0 : index
    %353 = vector.load %arg5[%c0_74, %c0_75] : memref<16x1xf32, #tpu.memory_space<vmem>>, vector<16x1xf32>
    %354 = vector.broadcast %353 : vector<16x1xf32> to vector<16x100xf32>
    %355 = arith.addf %352, %354 : vector<16x100xf32>
    %cst_76 = arith.constant 0.000000e+00 : f32
    %356 = vector.broadcast %cst_76 : f32 to vector<16x100xf32>
    %357 = arith.maximumf %355, %356 : vector<16x100xf32>
    %cst_77 = arith.constant 0.000000e+00 : f32
    %358 = vector.broadcast %cst_77 : f32 to vector<1x16xf32>
    %359 = vector.extract_strided_slice %357 {offsets = [0, 0], sizes = [1, 100], strides = [1, 1]} : vector<16x100xf32> to vector<1x100xf32>
    %c0_78 = arith.constant 0 : index
    %c0_79 = arith.constant 0 : index
    %c0_80 = arith.constant 0 : index
    %360 = vector.load %arg6[%c0_78, %c0_79, %c0_80] : memref<16x100x16xf32, #tpu.memory_space<vmem>>, vector<1x100x16xf32>
    %361 = vector.shape_cast %360 : vector<1x100x16xf32> to vector<100x16xf32>
    %cst_81 = arith.constant dense<0.000000e+00> : vector<1x16xf32>
    %362 = tpu.matmul %359, %361, %cst_81 {dimension_numbers = #tpu.dot_dimension_numbers<[1], [0], [0], [1], [0, 0, 1, 1], [], []>} : vector<1x100xf32>, vector<100x16xf32>, vector<1x16xf32> -> vector<1x16xf32>
    %363 = arith.addf %358, %362 : vector<1x16xf32>
    %364 = vector.extract_strided_slice %357 {offsets = [1, 0], sizes = [1, 100], strides = [1, 1]} : vector<16x100xf32> to vector<1x100xf32>
    %c1_82 = arith.constant 1 : index
    %c0_83 = arith.constant 0 : index
    %c0_84 = arith.constant 0 : index
    %365 = vector.load %arg6[%c1_82, %c0_83, %c0_84] : memref<16x100x16xf32, #tpu.memory_space<vmem>>, vector<1x100x16xf32>
    %366 = vector.shape_cast %365 : vector<1x100x16xf32> to vector<100x16xf32>
    %cst_85 = arith.constant dense<0.000000e+00> : vector<1x16xf32>
    %367 = tpu.matmul %364, %366, %cst_85 {dimension_numbers = #tpu.dot_dimension_numbers<[1], [0], [0], [1], [0, 0, 1, 1], [], []>} : vector<1x100xf32>, vector<100x16xf32>, vector<1x16xf32> -> vector<1x16xf32>
    %368 = arith.addf %363, %367 : vector<1x16xf32>
    %369 = vector.extract_strided_slice %357 {offsets = [2, 0], sizes = [1, 100], strides = [1, 1]} : vector<16x100xf32> to vector<1x100xf32>
    %c2_86 = arith.constant 2 : index
    %c0_87 = arith.constant 0 : index
    %c0_88 = arith.constant 0 : index
    %370 = vector.load %arg6[%c2_86, %c0_87, %c0_88] : memref<16x100x16xf32, #tpu.memory_space<vmem>>, vector<1x100x16xf32>
    %371 = vector.shape_cast %370 : vector<1x100x16xf32> to vector<100x16xf32>
    %cst_89 = arith.constant dense<0.000000e+00> : vector<1x16xf32>
    %372 = tpu.matmul %369, %371, %cst_89 {dimension_numbers = #tpu.dot_dimension_numbers<[1], [0], [0], [1], [0, 0, 1, 1], [], []>} : vector<1x100xf32>, vector<100x16xf32>, vector<1x16xf32> -> vector<1x16xf32>
    %373 = arith.addf %368, %372 : vector<1x16xf32>
    %374 = vector.extract_strided_slice %357 {offsets = [3, 0], sizes = [1, 100], strides = [1, 1]} : vector<16x100xf32> to vector<1x100xf32>
    %c3_90 = arith.constant 3 : index
    %c0_91 = arith.constant 0 : index
    %c0_92 = arith.constant 0 : index
    %375 = vector.load %arg6[%c3_90, %c0_91, %c0_92] : memref<16x100x16xf32, #tpu.memory_space<vmem>>, vector<1x100x16xf32>
    %376 = vector.shape_cast %375 : vector<1x100x16xf32> to vector<100x16xf32>
    %cst_93 = arith.constant dense<0.000000e+00> : vector<1x16xf32>
    %377 = tpu.matmul %374, %376, %cst_93 {dimension_numbers = #tpu.dot_dimension_numbers<[1], [0], [0], [1], [0, 0, 1, 1], [], []>} : vector<1x100xf32>, vector<100x16xf32>, vector<1x16xf32> -> vector<1x16xf32>
    %378 = arith.addf %373, %377 : vector<1x16xf32>
    %379 = vector.extract_strided_slice %357 {offsets = [4, 0], sizes = [1, 100], strides = [1, 1]} : vector<16x100xf32> to vector<1x100xf32>
    %c4_94 = arith.constant 4 : index
    %c0_95 = arith.constant 0 : index
    %c0_96 = arith.constant 0 : index
    %380 = vector.load %arg6[%c4_94, %c0_95, %c0_96] : memref<16x100x16xf32, #tpu.memory_space<vmem>>, vector<1x100x16xf32>
    %381 = vector.shape_cast %380 : vector<1x100x16xf32> to vector<100x16xf32>
    %cst_97 = arith.constant dense<0.000000e+00> : vector<1x16xf32>
    %382 = tpu.matmul %379, %381, %cst_97 {dimension_numbers = #tpu.dot_dimension_numbers<[1], [0], [0], [1], [0, 0, 1, 1], [], []>} : vector<1x100xf32>, vector<100x16xf32>, vector<1x16xf32> -> vector<1x16xf32>
    %383 = arith.addf %378, %382 : vector<1x16xf32>
    %384 = vector.extract_strided_slice %357 {offsets = [5, 0], sizes = [1, 100], strides = [1, 1]} : vector<16x100xf32> to vector<1x100xf32>
    %c5_98 = arith.constant 5 : index
    %c0_99 = arith.constant 0 : index
    %c0_100 = arith.constant 0 : index
    %385 = vector.load %arg6[%c5_98, %c0_99, %c0_100] : memref<16x100x16xf32, #tpu.memory_space<vmem>>, vector<1x100x16xf32>
    %386 = vector.shape_cast %385 : vector<1x100x16xf32> to vector<100x16xf32>
    %cst_101 = arith.constant dense<0.000000e+00> : vector<1x16xf32>
    %387 = tpu.matmul %384, %386, %cst_101 {dimension_numbers = #tpu.dot_dimension_numbers<[1], [0], [0], [1], [0, 0, 1, 1], [], []>} : vector<1x100xf32>, vector<100x16xf32>, vector<1x16xf32> -> vector<1x16xf32>
    %388 = arith.addf %383, %387 : vector<1x16xf32>
    %389 = vector.extract_strided_slice %357 {offsets = [6, 0], sizes = [1, 100], strides = [1, 1]} : vector<16x100xf32> to vector<1x100xf32>
    %c6_102 = arith.constant 6 : index
    %c0_103 = arith.constant 0 : index
    %c0_104 = arith.constant 0 : index
    %390 = vector.load %arg6[%c6_102, %c0_103, %c0_104] : memref<16x100x16xf32, #tpu.memory_space<vmem>>, vector<1x100x16xf32>
    %391 = vector.shape_cast %390 : vector<1x100x16xf32> to vector<100x16xf32>
    %cst_105 = arith.constant dense<0.000000e+00> : vector<1x16xf32>
    %392 = tpu.matmul %389, %391, %cst_105 {dimension_numbers = #tpu.dot_dimension_numbers<[1], [0], [0], [1], [0, 0, 1, 1], [], []>} : vector<1x100xf32>, vector<100x16xf32>, vector<1x16xf32> -> vector<1x16xf32>
    %393 = arith.addf %388, %392 : vector<1x16xf32>
    %394 = vector.extract_strided_slice %357 {offsets = [7, 0], sizes = [1, 100], strides = [1, 1]} : vector<16x100xf32> to vector<1x100xf32>
    %c7_106 = arith.constant 7 : index
    %c0_107 = arith.constant 0 : index
    %c0_108 = arith.constant 0 : index
    %395 = vector.load %arg6[%c7_106, %c0_107, %c0_108] : memref<16x100x16xf32, #tpu.memory_space<vmem>>, vector<1x100x16xf32>
    %396 = vector.shape_cast %395 : vector<1x100x16xf32> to vector<100x16xf32>
    %cst_109 = arith.constant dense<0.000000e+00> : vector<1x16xf32>
    %397 = tpu.matmul %394, %396, %cst_109 {dimension_numbers = #tpu.dot_dimension_numbers<[1], [0], [0], [1], [0, 0, 1, 1], [], []>} : vector<1x100xf32>, vector<100x16xf32>, vector<1x16xf32> -> vector<1x16xf32>
    %398 = arith.addf %393, %397 : vector<1x16xf32>
    %399 = vector.extract_strided_slice %357 {offsets = [8, 0], sizes = [1, 100], strides = [1, 1]} : vector<16x100xf32> to vector<1x100xf32>
    %c8_110 = arith.constant 8 : index
    %c0_111 = arith.constant 0 : index
    %c0_112 = arith.constant 0 : index
    %400 = vector.load %arg6[%c8_110, %c0_111, %c0_112] : memref<16x100x16xf32, #tpu.memory_space<vmem>>, vector<1x100x16xf32>
    %401 = vector.shape_cast %400 : vector<1x100x16xf32> to vector<100x16xf32>
    %cst_113 = arith.constant dense<0.000000e+00> : vector<1x16xf32>
    %402 = tpu.matmul %399, %401, %cst_113 {dimension_numbers = #tpu.dot_dimension_numbers<[1], [0], [0], [1], [0, 0, 1, 1], [], []>} : vector<1x100xf32>, vector<100x16xf32>, vector<1x16xf32> -> vector<1x16xf32>
    %403 = arith.addf %398, %402 : vector<1x16xf32>
    %404 = vector.extract_strided_slice %357 {offsets = [9, 0], sizes = [1, 100], strides = [1, 1]} : vector<16x100xf32> to vector<1x100xf32>
    %c9 = arith.constant 9 : index
    %c0_114 = arith.constant 0 : index
    %c0_115 = arith.constant 0 : index
    %405 = vector.load %arg6[%c9, %c0_114, %c0_115] : memref<16x100x16xf32, #tpu.memory_space<vmem>>, vector<1x100x16xf32>
    %406 = vector.shape_cast %405 : vector<1x100x16xf32> to vector<100x16xf32>
    %cst_116 = arith.constant dense<0.000000e+00> : vector<1x16xf32>
    %407 = tpu.matmul %404, %406, %cst_116 {dimension_numbers = #tpu.dot_dimension_numbers<[1], [0], [0], [1], [0, 0, 1, 1], [], []>} : vector<1x100xf32>, vector<100x16xf32>, vector<1x16xf32> -> vector<1x16xf32>
    %408 = arith.addf %403, %407 : vector<1x16xf32>
    %409 = vector.extract_strided_slice %357 {offsets = [10, 0], sizes = [1, 100], strides = [1, 1]} : vector<16x100xf32> to vector<1x100xf32>
    %c10 = arith.constant 10 : index
    %c0_117 = arith.constant 0 : index
    %c0_118 = arith.constant 0 : index
    %410 = vector.load %arg6[%c10, %c0_117, %c0_118] : memref<16x100x16xf32, #tpu.memory_space<vmem>>, vector<1x100x16xf32>
    %411 = vector.shape_cast %410 : vector<1x100x16xf32> to vector<100x16xf32>
    %cst_119 = arith.constant dense<0.000000e+00> : vector<1x16xf32>
    %412 = tpu.matmul %409, %411, %cst_119 {dimension_numbers = #tpu.dot_dimension_numbers<[1], [0], [0], [1], [0, 0, 1, 1], [], []>} : vector<1x100xf32>, vector<100x16xf32>, vector<1x16xf32> -> vector<1x16xf32>
    %413 = arith.addf %408, %412 : vector<1x16xf32>
    %414 = vector.extract_strided_slice %357 {offsets = [11, 0], sizes = [1, 100], strides = [1, 1]} : vector<16x100xf32> to vector<1x100xf32>
    %c11 = arith.constant 11 : index
    %c0_120 = arith.constant 0 : index
    %c0_121 = arith.constant 0 : index
    %415 = vector.load %arg6[%c11, %c0_120, %c0_121] : memref<16x100x16xf32, #tpu.memory_space<vmem>>, vector<1x100x16xf32>
    %416 = vector.shape_cast %415 : vector<1x100x16xf32> to vector<100x16xf32>
    %cst_122 = arith.constant dense<0.000000e+00> : vector<1x16xf32>
    %417 = tpu.matmul %414, %416, %cst_122 {dimension_numbers = #tpu.dot_dimension_numbers<[1], [0], [0], [1], [0, 0, 1, 1], [], []>} : vector<1x100xf32>, vector<100x16xf32>, vector<1x16xf32> -> vector<1x16xf32>
    %418 = arith.addf %413, %417 : vector<1x16xf32>
    %419 = vector.extract_strided_slice %357 {offsets = [12, 0], sizes = [1, 100], strides = [1, 1]} : vector<16x100xf32> to vector<1x100xf32>
    %c12 = arith.constant 12 : index
    %c0_123 = arith.constant 0 : index
    %c0_124 = arith.constant 0 : index
    %420 = vector.load %arg6[%c12, %c0_123, %c0_124] : memref<16x100x16xf32, #tpu.memory_space<vmem>>, vector<1x100x16xf32>
    %421 = vector.shape_cast %420 : vector<1x100x16xf32> to vector<100x16xf32>
    %cst_125 = arith.constant dense<0.000000e+00> : vector<1x16xf32>
    %422 = tpu.matmul %419, %421, %cst_125 {dimension_numbers = #tpu.dot_dimension_numbers<[1], [0], [0], [1], [0, 0, 1, 1], [], []>} : vector<1x100xf32>, vector<100x16xf32>, vector<1x16xf32> -> vector<1x16xf32>
    %423 = arith.addf %418, %422 : vector<1x16xf32>
    %424 = vector.extract_strided_slice %357 {offsets = [13, 0], sizes = [1, 100], strides = [1, 1]} : vector<16x100xf32> to vector<1x100xf32>
    %c13 = arith.constant 13 : index
    %c0_126 = arith.constant 0 : index
    %c0_127 = arith.constant 0 : index
    %425 = vector.load %arg6[%c13, %c0_126, %c0_127] : memref<16x100x16xf32, #tpu.memory_space<vmem>>, vector<1x100x16xf32>
    %426 = vector.shape_cast %425 : vector<1x100x16xf32> to vector<100x16xf32>
    %cst_128 = arith.constant dense<0.000000e+00> : vector<1x16xf32>
    %427 = tpu.matmul %424, %426, %cst_128 {dimension_numbers = #tpu.dot_dimension_numbers<[1], [0], [0], [1], [0, 0, 1, 1], [], []>} : vector<1x100xf32>, vector<100x16xf32>, vector<1x16xf32> -> vector<1x16xf32>
    %428 = arith.addf %423, %427 : vector<1x16xf32>
    %429 = vector.extract_strided_slice %357 {offsets = [14, 0], sizes = [1, 100], strides = [1, 1]} : vector<16x100xf32> to vector<1x100xf32>
    %c14 = arith.constant 14 : index
    %c0_129 = arith.constant 0 : index
    %c0_130 = arith.constant 0 : index
    %430 = vector.load %arg6[%c14, %c0_129, %c0_130] : memref<16x100x16xf32, #tpu.memory_space<vmem>>, vector<1x100x16xf32>
    %431 = vector.shape_cast %430 : vector<1x100x16xf32> to vector<100x16xf32>
    %cst_131 = arith.constant dense<0.000000e+00> : vector<1x16xf32>
    %432 = tpu.matmul %429, %431, %cst_131 {dimension_numbers = #tpu.dot_dimension_numbers<[1], [0], [0], [1], [0, 0, 1, 1], [], []>} : vector<1x100xf32>, vector<100x16xf32>, vector<1x16xf32> -> vector<1x16xf32>
    %433 = arith.addf %428, %432 : vector<1x16xf32>
    %434 = vector.extract_strided_slice %357 {offsets = [15, 0], sizes = [1, 100], strides = [1, 1]} : vector<16x100xf32> to vector<1x100xf32>
    %c15 = arith.constant 15 : index
    %c0_132 = arith.constant 0 : index
    %c0_133 = arith.constant 0 : index
    %435 = vector.load %arg6[%c15, %c0_132, %c0_133] : memref<16x100x16xf32, #tpu.memory_space<vmem>>, vector<1x100x16xf32>
    %436 = vector.shape_cast %435 : vector<1x100x16xf32> to vector<100x16xf32>
    %cst_134 = arith.constant dense<0.000000e+00> : vector<1x16xf32>
    %437 = tpu.matmul %434, %436, %cst_134 {dimension_numbers = #tpu.dot_dimension_numbers<[1], [0], [0], [1], [0, 0, 1, 1], [], []>} : vector<1x100xf32>, vector<100x16xf32>, vector<1x16xf32> -> vector<1x16xf32>
    %438 = arith.addf %433, %437 : vector<1x16xf32>
    %c0_135 = arith.constant 0 : index
    %c0_136 = arith.constant 0 : index
    %439 = vector.load %arg7[%c0_135, %c0_136] : memref<1x16xf32, #tpu.memory_space<vmem>>, vector<1x16xf32>
    %440 = arith.addf %438, %439 : vector<1x16xf32>
    %cst_137 = arith.constant 0.000000e+00 : f32
    %441 = vector.broadcast %cst_137 : f32 to vector<1x16xf32>
    %442 = arith.maximumf %440, %441 : vector<1x16xf32>
    %c0_138 = arith.constant 0 : index
    %c0_139 = arith.constant 0 : index
    %443 = vector.load %arg8[%c0_138, %c0_139] : memref<16x6xf32, #tpu.memory_space<vmem>>, vector<16x6xf32>
    %cst_140 = arith.constant dense<0.000000e+00> : vector<1x6xf32>
    %444 = tpu.matmul %442, %443, %cst_140 {dimension_numbers = #tpu.dot_dimension_numbers<[1], [0], [0], [1], [0, 0, 1, 1], [], []>} : vector<1x16xf32>, vector<16x6xf32>, vector<1x6xf32> -> vector<1x6xf32>
    %c0_141 = arith.constant 0 : index
    %c0_142 = arith.constant 0 : index
    %445 = vector.load %arg9[%c0_141, %c0_142] : memref<1x6xf32, #tpu.memory_space<vmem>>, vector<1x6xf32>
    %446 = arith.addf %444, %445 : vector<1x6xf32>
    %c0_143 = arith.constant 0 : index
    %c0_144 = arith.constant 0 : index
    %c0_145 = arith.constant 0 : index
    %447 = vector.load %arg10[%c0_143, %c0_144, %c0_145] : memref<1x1x6xf32, #tpu.memory_space<vmem>>, vector<1x1x6xf32>
    %448 = vector.shape_cast %447 : vector<1x1x6xf32> to vector<1x6xf32>
    %449 = vector.shape_cast %446 : vector<1x6xf32> to vector<1x1x6xf32>
    tpu.vector_store %arg10[%c0_143, %c0_144, %c0_145], %449 {strides = array<i32>} : memref<1x1x6xf32, #tpu.memory_space<vmem>>, vector<1x1x6xf32>,
    return
  }
  func.func @transform_0(%arg0: i32) -> (i32, i32, i32) {
    %c0_i32 = arith.constant 0 : i32
    %c0_i32_0 = arith.constant 0 : i32
    %c0_i32_1 = arith.constant 0 : i32
    return %arg0, %c0_i32, %c0_i32_0 : i32, i32, i32
  }
  func.func @transform_1(%arg0: i32) -> (i32, i32) {
    %c0_i32 = arith.constant 0 : i32
    %c0_i32_0 = arith.constant 0 : i32
    %c0_i32_1 = arith.constant 0 : i32
    return %c0_i32, %c0_i32_0 : i32, i32
  }
  func.func @transform_2(%arg0: i32) -> (i32, i32) {
    %c0_i32 = arith.constant 0 : i32
    %c0_i32_0 = arith.constant 0 : i32
    %c0_i32_1 = arith.constant 0 : i32
    return %c0_i32, %c0_i32_0 : i32, i32
  }
  func.func @transform_3(%arg0: i32) -> (i32, i32, i32) {
    %c0_i32 = arith.constant 0 : i32
    %c0_i32_0 = arith.constant 0 : i32
    %c0_i32_1 = arith.constant 0 : i32
    %c0_i32_2 = arith.constant 0 : i32
    return %c0_i32, %c0_i32_0, %c0_i32_1 : i32, i32, i32
  }
  func.func @transform_4(%arg0: i32) -> (i32, i32) {
    %c0_i32 = arith.constant 0 : i32
    %c0_i32_0 = arith.constant 0 : i32
    %c0_i32_1 = arith.constant 0 : i32
    return %c0_i32, %c0_i32_0 : i32, i32
  }
  func.func @transform_5(%arg0: i32) -> (i32, i32, i32) {
    %c0_i32 = arith.constant 0 : i32
    %c0_i32_0 = arith.constant 0 : i32
    %c0_i32_1 = arith.constant 0 : i32
    %c0_i32_2 = arith.constant 0 : i32
    return %c0_i32, %c0_i32_0, %c0_i32_1 : i32, i32, i32
  }
  func.func @transform_6(%arg0: i32) -> (i32, i32) {
    %c0_i32 = arith.constant 0 : i32
    %c0_i32_0 = arith.constant 0 : i32
    %c0_i32_1 = arith.constant 0 : i32
    return %c0_i32, %c0_i32_0 : i32, i32
  }
  func.func @transform_7(%arg0: i32) -> (i32, i32) {
    %c0_i32 = arith.constant 0 : i32
    %c0_i32_0 = arith.constant 0 : i32
    %c0_i32_1 = arith.constant 0 : i32
    return %c0_i32, %c0_i32_0 : i32, i32
  }
  func.func @transform_8(%arg0: i32) -> (i32, i32) {
    %c0_i32 = arith.constant 0 : i32
    %c0_i32_0 = arith.constant 0 : i32
    %c0_i32_1 = arith.constant 0 : i32
    return %c0_i32, %c0_i32_0 : i32, i32
  }
  func.func @transform_9(%arg0: i32) -> (i32, i32, i32) {
    %c0_i32 = arith.constant 0 : i32
    %c0_i32_0 = arith.constant 0 : i32
    %c0_i32_1 = arith.constant 0 : i32
    return %arg0, %c0_i32, %c0_i32_0 : i32, i32, i32
  }
}

</mosaic_0001>

<llo_original>
// kernel: spec_cnn_forward.1
$region0: #{spec_cnn_forward.1}
  #allocation0 [shape = 'u32[]', space=smem, size = 0x4, offset = 0x4, fixed_abs, tag = 'smem constant byte address 0x4 - core index']
  #allocation1 [shape = 'u32[144,128]{1,0:T(1,128)}', space=vmem, size = 0x12000, scoped, tag = 'internal scratch']
  %s0 = inlined_call_operand.vmem [shape: f32[2,7,402], index: 0, kind: input, shape index: {}]
  %s1 = inlined_call_operand.vmem [shape: f32[8,9], index: 1, kind: input, shape index: {}]
  %s2 = inlined_call_operand.vmem [shape: f32[8,1], index: 2, kind: input, shape index: {}]
  %s3 = inlined_call_operand.vmem [shape: f32[9,16,8], index: 3, kind: input, shape index: {}]
  %s4 = inlined_call_operand.vmem [shape: f32[16,1], index: 4, kind: input, shape index: {}]
  %s5 = inlined_call_operand.vmem [shape: f32[16,100,16], index: 5, kind: input, shape index: {}]
  %s6 = inlined_call_operand.vmem [shape: f32[1,16], index: 6, kind: input, shape index: {}]
  %s7 = inlined_call_operand.vmem [shape: f32[16,6], index: 7, kind: input, shape index: {}]
  %s8 = inlined_call_operand.vmem [shape: f32[1,6], index: 8, kind: input, shape index: {}]
  %s9 = inlined_call_operand.hbm [shape: f32[2,1,6], index: 9, kind: output, shape index: {}]
  %s10 = sld [smem:[#allocation0]]
  $region69: #{spec_cnn_forward.1} parent=0
    _
  %s12 = ssub.s32 1, %s10
  %s13 = scalar_select 0, %s12, %s10
  $region1: #{spec_cnn_forward.1} parent=0
    #allocation2 [shape = 'u8[1024]{0}', space=vmem, size = 0x400, scoped, tag = 'output window, operand 0']
    #allocation3 [shape = 's32[2]{0}', space=sflag, size = 0x8, scoped, tag = 'scoped memory for spec_cnn_forward.1']
    %14 = vsyncpa [#allocation3], 0
    %s15 = scalar_lea.sflag [#allocation3], 1
    %16 = vsyncpa %s15, 0
    loop: start=0, step=1, limit=4
    $region2: #{spec_cnn_forward.1} parent=1 // loop_pre_header
      _
    $region3: #{spec_cnn_forward.1} parent=1 // loop_header
      %s18 = sphi 0, %s22
      %p19 = scmp.ge.s32.totalorder %s18, 4
      %s28 = sphi 0, %s30
      %s31 = sphi 0, %s28
      %s32 = sphi 0, %s31
      %s48 = sphi 0, %s32
      %s52 = sphi 0, %s52
      %s54 = sphi 0, %s52
      %s55 = sphi 0, %s54
      %s69 = sphi 0, %s55
      %s73 = sphi 0, %s73
      %s75 = sphi 0, %s73
      %s76 = sphi 0, %s75
      %s90 = sphi 0, %s76
      %s94 = sphi 0, %s94
      %s96 = sphi 0, %s94
      %s97 = sphi 0, %s96
      %s111 = sphi 0, %s97
      %s115 = sphi 0, %s115
      %s117 = sphi 0, %s115
      %s118 = sphi 0, %s117
      %s132 = sphi 0, %s118
      %s136 = sphi 0, %s136
      %s138 = sphi 0, %s136
      %s139 = sphi 0, %s138
      %s153 = sphi 0, %s139
      %s157 = sphi 0, %s157
      %s159 = sphi 0, %s157
      %s160 = sphi 0, %s159
      %s174 = sphi 0, %s160
      %s178 = sphi 0, %s178
      %s180 = sphi 0, %s178
      %s181 = sphi 0, %s180
      %s195 = sphi 0, %s181
      %s199 = sphi 0, %s199
      %s201 = sphi 0, %s199
      %s202 = sphi 0, %s201
      %s216 = sphi 0, %s202
      %s222 = sphi 0, %s224
      %s225 = sphi 0, %s222
      %s226 = sphi 0, %s225
      %s242 = sphi 0, %s226
    $region4: #{spec_cnn_forward.1} parent=1 // loop_header_branch
      %21 = sbr.rel (%p19) target = $region8
    $region5: #{spec_cnn_forward.1} parent=1 // loop_body
      %s23 = ssub.s32 %s18, 1
      %s24 = ssub.s32 %s18, 2
      %s25 = sadd.s32 %s18, 1
      %s26 = ssub.s32 %s18, %s25
      %p27 = scmp.eq.s32.totalorder %s26, 0
      %s29 = sadd.s32 %s28, 1
      %s30 = scalar_select %p27, %s28, %s29
      %p33 = pneg %p27
      %p34 = scmp.eq.s32.totalorder %s18, 1
      %p35 = por %p33, %p34
      %p36 = scmp.ne.s32.totalorder %s28, %s31
      %p37 = scmp.eq.s32.totalorder %s18, 0
      %p38 = por %p36, %p37
      %p39 = scmp.ne.s32.totalorder %s28, %s31
      %p40 = scmp.eq.s32.totalorder %s23, 1
      %p41 = por %p39, %p40
      %p42 = scmp.ne.s32.totalorder %s31, %s32
      %p43 = scmp.eq.s32.totalorder %s23, 0
      %p44 = por %p42, %p43
      %p45 = scmp.ne.s32.totalorder %s31, %s32
      %p46 = scmp.eq.s32.totalorder %s24, 1
      %p47 = por %p45, %p46
      %p49 = scmp.ne.s32.totalorder %s32, %s48
      %p50 = scmp.eq.s32.totalorder %s24, 0
      %p51 = por %p49, %p50
      %s53 = sadd.s32 %s52, 1
      %p56 = scmp.eq.s32.totalorder %s18, 1
      %p57 = scmp.ne.s32.totalorder %s52, %s54
      %p58 = scmp.eq.s32.totalorder %s18, 0
      %p59 = por %p57, %p58
      %p60 = scmp.ne.s32.totalorder %s52, %s54
      %p61 = scmp.eq.s32.totalorder %s23, 1
      %p62 = por %p60, %p61
      %p63 = scmp.ne.s32.totalorder %s54, %s55
      %p64 = scmp.eq.s32.totalorder %s23, 0
      %p65 = por %p63, %p64
      %p66 = scmp.ne.s32.totalorder %s54, %s55
      %p67 = scmp.eq.s32.totalorder %s24, 1
      %p68 = por %p66, %p67
      %p70 = scmp.ne.s32.totalorder %s55, %s69
      %p71 = scmp.eq.s32.totalorder %s24, 0
      %p72 = por %p70, %p71
      %s74 = sadd.s32 %s73, 1
      %p77 = scmp.eq.s32.totalorder %s18, 1
      %p78 = scmp.ne.s32.totalorder %s73, %s75
      %p79 = scmp.eq.s32.totalorder %s18, 0
      %p80 = por %p78, %p79
      %p81 = scmp.ne.s32.totalorder %s73, %s75
      %p82 = scmp.eq.s32.totalorder %s23, 1
      %p83 = por %p81, %p82
      %p84 = scmp.ne.s32.totalorder %s75, %s76
      %p85 = scmp.eq.s32.totalorder %s23, 0
      %p86 = por %p84, %p85
      %p87 = scmp.ne.s32.totalorder %s75, %s76
      %p88 = scmp.eq.s32.totalorder %s24, 1
      %p89 = por %p87, %p88
      %p91 = scmp.ne.s32.totalorder %s76, %s90
      %p92 = scmp.eq.s32.totalorder %s24, 0
      %p93 = por %p91, %p92
      %s95 = sadd.s32 %s94, 1
      %p98 = scmp.eq.s32.totalorder %s18, 1
      %p99 = scmp.ne.s32.totalorder %s94, %s96
      %p100 = scmp.eq.s32.totalorder %s18, 0
      %p101 = por %p99, %p100
      %p102 = scmp.ne.s32.totalorder %s94, %s96
      %p103 = scmp.eq.s32.totalorder %s23, 1
      %p104 = por %p102, %p103
      %p105 = scmp.ne.s32.totalorder %s96, %s97
      %p106 = scmp.eq.s32.totalorder %s23, 0
      %p107 = por %p105, %p106
      %p108 = scmp.ne.s32.totalorder %s96, %s97
      %p109 = scmp.eq.s32.totalorder %s24, 1
      %p110 = por %p108, %p109
      %p112 = scmp.ne.s32.totalorder %s97, %s111
      %p113 = scmp.eq.s32.totalorder %s24, 0
      %p114 = por %p112, %p113
      %s116 = sadd.s32 %s115, 1
      %p119 = scmp.eq.s32.totalorder %s18, 1
      %p120 = scmp.ne.s32.totalorder %s115, %s117
      %p121 = scmp.eq.s32.totalorder %s18, 0
      %p122 = por %p120, %p121
      %p123 = scmp.ne.s32.totalorder %s115, %s117
      %p124 = scmp.eq.s32.totalorder %s23, 1
      %p125 = por %p123, %p124
      %p126 = scmp.ne.s32.totalorder %s117, %s118
      %p127 = scmp.eq.s32.totalorder %s23, 0
      %p128 = por %p126, %p127
      %p129 = scmp.ne.s32.totalorder %s117, %s118
      %p130 = scmp.eq.s32.totalorder %s24, 1
      %p131 = por %p129, %p130
      %p133 = scmp.ne.s32.totalorder %s118, %s132
      %p134 = scmp.eq.s32.totalorder %s24, 0
      %p135 = por %p133, %p134
      %s137 = sadd.s32 %s136, 1
      %p140 = scmp.eq.s32.totalorder %s18, 1
      %p141 = scmp.ne.s32.totalorder %s136, %s138
      %p142 = scmp.eq.s32.totalorder %s18, 0
      %p143 = por %p141, %p142
      %p144 = scmp.ne.s32.totalorder %s136, %s138
      %p145 = scmp.eq.s32.totalorder %s23, 1
      %p146 = por %p144, %p145
      %p147 = scmp.ne.s32.totalorder %s138, %s139
      %p148 = scmp.eq.s32.totalorder %s23, 0
      %p149 = por %p147, %p148
      %p150 = scmp.ne.s32.totalorder %s138, %s139
      %p151 = scmp.eq.s32.totalorder %s24, 1
      %p152 = por %p150, %p151
      %p154 = scmp.ne.s32.totalorder %s139, %s153
      %p155 = scmp.eq.s32.totalorder %s24, 0
      %p156 = por %p154, %p155
      %s158 = sadd.s32 %s157, 1
      %p161 = scmp.eq.s32.totalorder %s18, 1
      %p162 = scmp.ne.s32.totalorder %s157, %s159
      %p163 = scmp.eq.s32.totalorder %s18, 0
      %p164 = por %p162, %p163
      %p165 = scmp.ne.s32.totalorder %s157, %s159
      %p166 = scmp.eq.s32.totalorder %s23, 1
      %p167 = por %p165, %p166
      %p168 = scmp.ne.s32.totalorder %s159, %s160
      %p169 = scmp.eq.s32.totalorder %s23, 0
      %p170 = por %p168, %p169
      %p171 = scmp.ne.s32.totalorder %s159, %s160
      %p172 = scmp.eq.s32.totalorder %s24, 1
      %p173 = por %p171, %p172
      %p175 = scmp.ne.s32.totalorder %s160, %s174
      %p176 = scmp.eq.s32.totalorder %s24, 0
      %p177 = por %p175, %p176
      %s179 = sadd.s32 %s178, 1
      %p182 = scmp.eq.s32.totalorder %s18, 1
      %p183 = scmp.ne.s32.totalorder %s178, %s180
      %p184 = scmp.eq.s32.totalorder %s18, 0
      %p185 = por %p183, %p184
      %p186 = scmp.ne.s32.totalorder %s178, %s180
      %p187 = scmp.eq.s32.totalorder %s23, 1
      %p188 = por %p186, %p187
      %p189 = scmp.ne.s32.totalorder %s180, %s181
      %p190 = scmp.eq.s32.totalorder %s23, 0
      %p191 = por %p189, %p190
      %p192 = scmp.ne.s32.totalorder %s180, %s181
      %p193 = scmp.eq.s32.totalorder %s24, 1
      %p194 = por %p192, %p193
      %p196 = scmp.ne.s32.totalorder %s181, %s195
      %p197 = scmp.eq.s32.totalorder %s24, 0
      %p198 = por %p196, %p197
      %s200 = sadd.s32 %s199, 1
      %p203 = scmp.eq.s32.totalorder %s18, 1
      %p204 = scmp.ne.s32.totalorder %s199, %s201
      %p205 = scmp.eq.s32.totalorder %s18, 0
      %p206 = por %p204, %p205
      %p207 = scmp.ne.s32.totalorder %s199, %s201
      %p208 = scmp.eq.s32.totalorder %s23, 1
      %p209 = por %p207, %p208
      %p210 = scmp.ne.s32.totalorder %s201, %s202
      %p211 = scmp.eq.s32.totalorder %s23, 0
      %p212 = por %p210, %p211
      %p213 = scmp.ne.s32.totalorder %s201, %s202
      %p214 = scmp.eq.s32.totalorder %s24, 1
      %p215 = por %p213, %p214
      %p217 = scmp.ne.s32.totalorder %s202, %s216
      %p218 = scmp.eq.s32.totalorder %s24, 0
      %p219 = por %p217, %p218
      %s220 = ssub.s32 %s18, %s25
      %p221 = scmp.eq.s32.totalorder %s220, 0
      %s223 = sadd.s32 %s222, 1
      %s224 = scalar_select %p221, %s222, %s223
      %p227 = pneg %p221
      %p228 = scmp.eq.s32.totalorder %s18, 1
      %p229 = por %p227, %p228
      %p230 = scmp.ne.s32.totalorder %s222, %s225
      %p231 = scmp.eq.s32.totalorder %s18, 0
      %p232 = por %p230, %p231
      %p233 = scmp.ne.s32.totalorder %s222, %s225
      %p234 = scmp.eq.s32.totalorder %s23, 1
      %p235 = por %p233, %p234
      %p236 = scmp.ne.s32.totalorder %s225, %s226
      %p237 = scmp.eq.s32.totalorder %s23, 0
      %p238 = por %p236, %p237
      %p239 = scmp.ne.s32.totalorder %s225, %s226
      %p240 = scmp.eq.s32.totalorder %s24, 1
      %p241 = por %p239, %p240
      %p243 = scmp.ne.s32.totalorder %s226, %s242
      %p244 = scmp.eq.s32.totalorder %s24, 0
      %p245 = por %p243, %p244
      %p246 = scmp.le.s32.totalorder 1, %s18
      %p247 = scmp.lt.s32.totalorder %s18, 3
      %p248 = pnand %p246, %p247
      %p249 = pneg %p248
      // Predicated region
      $region9: #{spec_cnn_forward.1} parent=5 // pred_check
        _
      $region10: #{spec_cnn_forward.1} parent=5 // pred_check_branch
        %251 = sbr.rel (%p248) target = $region12
      $region11: #{spec_cnn_forward.1} parent=5 // pred_region
        %s252 = ssub.s32 %s18, 1
        // Predicated region
        $region13: #{spec_cnn_forward.1} parent=11 // pred_check
          %p253 = pneg %p65
        $region14: #{spec_cnn_forward.1} parent=11 // pred_check_branch
          %255 = sbr.rel (%p253) target = $region16
        $region15: #{spec_cnn_forward.1} parent=11 // pred_region
          _
        $region16: #{spec_cnn_forward.1} parent=11 // pred_fallthru
          _
        // Predicated region
        $region17: #{spec_cnn_forward.1} parent=11 // pred_check
          %p256 = pneg %p86
        $region18: #{spec_cnn_forward.1} parent=11 // pred_check_branch
          %258 = sbr.rel (%p256) target = $region20
        $region19: #{spec_cnn_forward.1} parent=11 // pred_region
          _
        $region20: #{spec_cnn_forward.1} parent=11 // pred_fallthru
          _
        // Predicated region
        $region21: #{spec_cnn_forward.1} parent=11 // pred_check
          %p259 = pneg %p107
        $region22: #{spec_cnn_forward.1} parent=11 // pred_check_branch
          %261 = sbr.rel (%p259) target = $region24
        $region23: #{spec_cnn_forward.1} parent=11 // pred_region
          _
        $region24: #{spec_cnn_forward.1} parent=11 // pred_fallthru
          _
        // Predicated region
        $region25: #{spec_cnn_forward.1} parent=11 // pred_check
          %p262 = pneg %p128
        $region26: #{spec_cnn_forward.1} parent=11 // pred_check_branch
          %264 = sbr.rel (%p262) target = $region28
        $region27: #{spec_cnn_forward.1} parent=11 // pred_region
          _
        $region28: #{spec_cnn_forward.1} parent=11 // pred_fallthru
          _
        // Predicated region
        $region29: #{spec_cnn_forward.1} parent=11 // pred_check
          %p265 = pneg %p149
        $region30: #{spec_cnn_forward.1} parent=11 // pred_check_branch
          %267 = sbr.rel (%p265) target = $region32
        $region31: #{spec_cnn_forward.1} parent=11 // pred_region
          _
        $region32: #{spec_cnn_forward.1} parent=11 // pred_fallthru
          _
        // Predicated region
        $region33: #{spec_cnn_forward.1} parent=11 // pred_check
          %p268 = pneg %p170
        $region34: #{spec_cnn_forward.1} parent=11 // pred_check_branch
          %270 = sbr.rel (%p268) target = $region36
        $region35: #{spec_cnn_forward.1} parent=11 // pred_region
          _
        $region36: #{spec_cnn_forward.1} parent=11 // pred_fallthru
          _
        // Predicated region
        $region37: #{spec_cnn_forward.1} parent=11 // pred_check
          %p271 = pneg %p191
        $region38: #{spec_cnn_forward.1} parent=11 // pred_check_branch
          %273 = sbr.rel (%p271) target = $region40
        $region39: #{spec_cnn_forward.1} parent=11 // pred_region
          _
        $region40: #{spec_cnn_forward.1} parent=11 // pred_fallthru
          _
        // Predicated region
        $region41: #{spec_cnn_forward.1} parent=11 // pred_check
          %p274 = pneg %p212
        $region42: #{spec_cnn_forward.1} parent=11 // pred_check_branch
          %276 = sbr.rel (%p274) target = $region44
        $region43: #{spec_cnn_forward.1} parent=11 // pred_region
          _
        $region44: #{spec_cnn_forward.1} parent=11 // pred_fallthru
          _
      $region12: #{spec_cnn_forward.1} parent=5 // pred_fallthru
        _
      %p277 = scmp.lt.s32.totalorder %s18, 2
      // Predicated region
      $region45: #{spec_cnn_forward.1} parent=5 // pred_check
        %p278 = pneg %p277
      $region46: #{spec_cnn_forward.1} parent=5 // pred_check_branch
        %280 = sbr.rel (%p278) target = $region48
      $region47: #{spec_cnn_forward.1} parent=5 // pred_region
        // Predicated region
        $region49: #{spec_cnn_forward.1} parent=47 // pred_check
          %p281 = pneg %p38
        $region50: #{spec_cnn_forward.1} parent=47 // pred_check_branch
          %283 = sbr.rel (%p281) target = $region52
        $region51: #{spec_cnn_forward.1} parent=47 // pred_region
          %p284 = scmp.lt.s32.totalorder %s18, 1
          %s285 = scalar_select %p284, %s18, 1
          %s286 = smul.addr %s285, 4
          %s287 = smul.addr %s286, 8
          %s288 = scalar_lea.vmem %s0, %s287
        $region52: #{spec_cnn_forward.1} parent=47 // pred_fallthru
          _
      $region48: #{spec_cnn_forward.1} parent=5 // pred_fallthru
        _
      %p289 = scmp.le.s32.totalorder 1, %s18
      %p290 = scmp.lt.s32.totalorder %s18, 3
      %p291 = pnand %p289, %p290
      %p292 = pneg %p291
      // Predicated region
      $region53: #{spec_cnn_forward.1} parent=5 // pred_check
        _
      $region54: #{spec_cnn_forward.1} parent=5 // pred_check_branch
        %294 = sbr.rel (%p291) target = $region56
      $region55: #{spec_cnn_forward.1} parent=5 // pred_region
        %s295 = ssub.s32 %s18, 1
        %p296 = scmp.lt.s32.totalorder %s23, 1
        %s297 = scalar_select %p296, %s23, 1
        %s298 = smul.addr %s297, 4
        %s299 = smul.addr %s298, 8
        %s300 = scalar_lea.vmem %s0, %s299
        %p301 = pneg %p44
        %p302 = pneg %p41
        %p303 = pneg %p65
        %p304 = pneg %p62
        %p305 = pneg %p86
        %p306 = pneg %p83
        %p307 = pneg %p107
        %p308 = pneg %p104
        %p309 = pneg %p128
        %p310 = pneg %p125
        %p311 = pneg %p149
        %p312 = pneg %p146
        %p313 = pneg %p170
        %p314 = pneg %p167
        %p315 = pneg %p191
        %p316 = pneg %p188
        %p317 = pneg %p212
        %p318 = pneg %p209
        %p319 = pneg %p238
        %p320 = pneg %p235
        %s321 = sand.u32 %s225, 1
        %s322 = scalar_lea.sflag [#allocation3], %s321
        %s323 = sand.u32 %s225, 1
        %s324 = scalar_lea.vmem [#allocation2], %s323
        %p325 = scmp.lt.s32.totalorder %s23, 1
        %s326 = scalar_select %p325, %s23, 1
        %s327 = smul.addr %s326, 4
        %s328 = smul.addr %s327, 8
        %s329 = scalar_lea.vmem %s0, %s328
        %v330 = vld [vmem:[%s329] sm:$0x7f]
        %v331 = vld [vmem:[%s329 + $0x8] sm:$0x7f]
        %v332 = vld [vmem:[%s329 + $0x10] sm:$0x7f]
        %v333 = vld [vmem:[%s329 + $0x18] sm:$0x7f]
        %v334 = vld [vmem:[%s1] sm:$0xff]
        %336 = vset.pattern.permute.xlu0 0
        %337 = vperm.xlu0 %336, %v334
        %v338 = vpop.permute.xlu0 %337
        %v340 = vlaneseq
        %v341 = vshrl.u32 %v340, 7
        %v342 = vsub.s32 0, %v341
        %v343 = vrot.slane %v330, %v342
        %v344 = vlaneseq
        %v345 = vshrl.u32 %v344, 7
        %v346 = vsub.s32 0, %v345
        %v347 = vrot.slane %v331, %v346
        %v348 = vlaneseq
        %v349 = vshrl.u32 %v348, 7
        %v350 = vsub.s32 0, %v349
        %v351 = vrot.slane %v332, %v350
        %v352 = vlaneseq
        %v353 = vshrl.u32 %v352, 7
        %v354 = vsub.s32 0, %v353
        %v355 = vrot.slane %v333, %v354
        %v356 = vmul.f32 %v338, %v343
        %v357 = vmul.f32 %v338, %v347
        %v358 = vmul.f32 %v338, %v351
        %v359 = vmul.f32 %v338, %v355
        %v360 = vadd.f32 %v356, 0.0
        %v361 = vadd.f32 %v357, 0.0
        %v362 = vadd.f32 %v358, 0.0
        %v363 = vadd.f32 %v359, 0.0
        %364 = vset.pattern.permute.xlu0 1
        %365 = vperm.xlu0 %364, %v334
        %v366 = vpop.permute.xlu0 %365
        %v368 = vmul.f32 %v366, %v343
        %v369 = vmul.f32 %v366, %v347
        %v370 = vmul.f32 %v366, %v351
        %v371 = vmul.f32 %v366, %v355
        %376 = vrot.lane.b32.xlu0 %v368, 127
        %v377 = vpop.permute.xlu0 %376
        %378 = vrot.lane.b32.xlu0 %v369, 127
        %v379 = vpop.permute.xlu0 %378
        %380 = vrot.lane.b32.xlu0 %v370, 127
        %v381 = vpop.permute.xlu0 %380
        %382 = vrot.lane.b32.xlu0 %v371, 127
        %v383 = vpop.permute.xlu0 %382
        %vm384 = vcmask 1039360
        %v385 = vsel %vm384, %v377, %v379
        %v386 = vsel %vm384, %v379, %v381
        %v387 = vsel %vm384, %v381, %v383
        %v392 = vadd.f32 %v360, %v385
        %v393 = vadd.f32 %v361, %v386
        %v394 = vadd.f32 %v362, %v387
        %v395 = vadd.f32 %v363, %v383
        %396 = vset.pattern.permute.xlu0 2
        %397 = vperm.xlu0 %396, %v334
        %v398 = vpop.permute.xlu0 %397
        %v400 = vmul.f32 %v398, %v343
        %v401 = vmul.f32 %v398, %v347
        %v402 = vmul.f32 %v398, %v351
        %v403 = vmul.f32 %v398, %v355
        %408 = vrot.lane.b32.xlu0 %v400, 126
        %v409 = vpop.permute.xlu0 %408
        %410 = vrot.lane.b32.xlu0 %v401, 126
        %v411 = vpop.permute.xlu0 %410
        %412 = vrot.lane.b32.xlu0 %v402, 126
        %v413 = vpop.permute.xlu0 %412
        %414 = vrot.lane.b32.xlu0 %v403, 126
        %v415 = vpop.permute.xlu0 %414
        %vm416 = vcmask 1031168
        %v417 = vsel %vm416, %v409, %v411
        %v418 = vsel %vm416, %v411, %v413
        %v419 = vsel %vm416, %v413, %v415
        %v424 = vadd.f32 %v392, %v417
        %v425 = vadd.f32 %v393, %v418
        %v426 = vadd.f32 %v394, %v419
        %v427 = vadd.f32 %v395, %v415
        %428 = vset.pattern.permute.xlu0 3
        %429 = vperm.xlu0 %428, %v334
        %v430 = vpop.permute.xlu0 %429
        %v432 = vlaneseq
        %v433 = vshrl.u32 %v432, 7
        %v434 = vsub.s32 1, %v433
        %v435 = vrot.slane %v330, %v434
        %v436 = vlaneseq
        %v437 = vshrl.u32 %v436, 7
        %v438 = vsub.s32 1, %v437
        %v439 = vrot.slane %v331, %v438
        %v440 = vlaneseq
        %v441 = vshrl.u32 %v440, 7
        %v442 = vsub.s32 1, %v441
        %v443 = vrot.slane %v332, %v442
        %v444 = vlaneseq
        %v445 = vshrl.u32 %v444, 7
        %v446 = vsub.s32 1, %v445
        %v447 = vrot.slane %v333, %v446
        %v448 = vmul.f32 %v430, %v435
        %v449 = vmul.f32 %v430, %v439
        %v450 = vmul.f32 %v430, %v443
        %v451 = vmul.f32 %v430, %v447
        %v452 = vadd.f32 %v424, %v448
        %v453 = vadd.f32 %v425, %v449
        %v454 = vadd.f32 %v426, %v450
        %v455 = vadd.f32 %v427, %v451
        %456 = vset.pattern.permute.xlu0 4
        %457 = vperm.xlu0 %456, %v334
        %v458 = vpop.permute.xlu0 %457
        %v460 = vmul.f32 %v458, %v435
        %v461 = vmul.f32 %v458, %v439
        %v462 = vmul.f32 %v458, %v443
        %v463 = vmul.f32 %v458, %v447
        %468 = vrot.lane.b32.xlu0 %v460, 127
        %v469 = vpop.permute.xlu0 %468
        %470 = vrot.lane.b32.xlu0 %v461, 127
        %v471 = vpop.permute.xlu0 %470
        %472 = vrot.lane.b32.xlu0 %v462, 127
        %v473 = vpop.permute.xlu0 %472
        %474 = vrot.lane.b32.xlu0 %v463, 127
        %v475 = vpop.permute.xlu0 %474
        %v476 = vsel %vm384, %v469, %v471
        %v477 = vsel %vm384, %v471, %v473
        %v478 = vsel %vm384, %v473, %v475
        %v483 = vadd.f32 %v452, %v476
        %v484 = vadd.f32 %v453, %v477
        %v485 = vadd.f32 %v454, %v478
        %v486 = vadd.f32 %v455, %v475
        %487 = vset.pattern.permute.xlu0 5
        %488 = vperm.xlu0 %487, %v334
        %v489 = vpop.permute.xlu0 %488
        %v491 = vmul.f32 %v489, %v435
        %v492 = vmul.f32 %v489, %v439
        %v493 = vmul.f32 %v489, %v443
        %v494 = vmul.f32 %v489, %v447
        %499 = vrot.lane.b32.xlu0 %v491, 126
        %v500 = vpop.permute.xlu0 %499
        %501 = vrot.lane.b32.xlu0 %v492, 126
        %v502 = vpop.permute.xlu0 %501
        %503 = vrot.lane.b32.xlu0 %v493, 126
        %v504 = vpop.permute.xlu0 %503
        %505 = vrot.lane.b32.xlu0 %v494, 126
        %v506 = vpop.permute.xlu0 %505
        %v507 = vsel %vm416, %v500, %v502
        %v508 = vsel %vm416, %v502, %v504
        %v509 = vsel %vm416, %v504, %v506
        %v514 = vadd.f32 %v483, %v507
        %v515 = vadd.f32 %v484, %v508
        %v516 = vadd.f32 %v485, %v509
        %v517 = vadd.f32 %v486, %v506
        %518 = vset.pattern.permute.xlu0 6
        %519 = vperm.xlu0 %518, %v334
        %v520 = vpop.permute.xlu0 %519
        %v522 = vlaneseq
        %v523 = vshrl.u32 %v522, 7
        %v524 = vsub.s32 2, %v523
        %v525 = vrot.slane %v330, %v524
        %v526 = vlaneseq
        %v527 = vshrl.u32 %v526, 7
        %v528 = vsub.s32 2, %v527
        %v529 = vrot.slane %v331, %v528
        %v530 = vlaneseq
        %v531 = vshrl.u32 %v530, 7
        %v532 = vsub.s32 2, %v531
        %v533 = vrot.slane %v332, %v532
        %v534 = vlaneseq
        %v535 = vshrl.u32 %v534, 7
        %v536 = vsub.s32 2, %v535
        %v537 = vrot.slane %v333, %v536
        %v538 = vmul.f32 %v520, %v525
        %v539 = vmul.f32 %v520, %v529
        %v540 = vmul.f32 %v520, %v533
        %v541 = vmul.f32 %v520, %v537
        %v542 = vadd.f32 %v514, %v538
        %v543 = vadd.f32 %v515, %v539
        %v544 = vadd.f32 %v516, %v540
        %v545 = vadd.f32 %v517, %v541
        %546 = vset.pattern.permute.xlu0 7
        %547 = vperm.xlu0 %546, %v334
        %v548 = vpop.permute.xlu0 %547
        %v550 = vmul.f32 %v548, %v525
        %v551 = vmul.f32 %v548, %v529
        %v552 = vmul.f32 %v548, %v533
        %v553 = vmul.f32 %v548, %v537
        %558 = vrot.lane.b32.xlu0 %v550, 127
        %v559 = vpop.permute.xlu0 %558
        %560 = vrot.lane.b32.xlu0 %v551, 127
        %v561 = vpop.permute.xlu0 %560
        %562 = vrot.lane.b32.xlu0 %v552, 127
        %v563 = vpop.permute.xlu0 %562
        %564 = vrot.lane.b32.xlu0 %v553, 127
        %v565 = vpop.permute.xlu0 %564
        %v566 = vsel %vm384, %v559, %v561
        %v567 = vsel %vm384, %v561, %v563
        %v568 = vsel %vm384, %v563, %v565
        %v573 = vadd.f32 %v542, %v566
        %v574 = vadd.f32 %v543, %v567
        %v575 = vadd.f32 %v544, %v568
        %v576 = vadd.f32 %v545, %v565
        %577 = vset.pattern.permute.xlu0 8
        %578 = vperm.xlu0 %577, %v334
        %v579 = vpop.permute.xlu0 %578
        %v581 = vmul.f32 %v579, %v525
        %v582 = vmul.f32 %v579, %v529
        %v583 = vmul.f32 %v579, %v533
        %v584 = vmul.f32 %v579, %v537
        %589 = vrot.lane.b32.xlu0 %v581, 126
        %v590 = vpop.permute.xlu0 %589
        %591 = vrot.lane.b32.xlu0 %v582, 126
        %v592 = vpop.permute.xlu0 %591
        %593 = vrot.lane.b32.xlu0 %v583, 126
        %v594 = vpop.permute.xlu0 %593
        %595 = vrot.lane.b32.xlu0 %v584, 126
        %v596 = vpop.permute.xlu0 %595
        %v597 = vsel %vm416, %v590, %v592
        %v598 = vsel %vm416, %v592, %v594
        %v599 = vsel %vm416, %v594, %v596
        %v604 = vadd.f32 %v573, %v597
        %v605 = vadd.f32 %v574, %v598
        %v606 = vadd.f32 %v575, %v599
        %v607 = vadd.f32 %v576, %v596
        %v608 = vmul.f32 %v338, %v435
        %v609 = vmul.f32 %v338, %v439
        %v610 = vmul.f32 %v338, %v443
        %v611 = vmul.f32 %v338, %v447
        %v612 = vadd.f32 %v608, 0.0
        %v613 = vadd.f32 %v609, 0.0
        %v614 = vadd.f32 %v610, 0.0
        %v615 = vadd.f32 %v611, 0.0
        %v616 = vmul.f32 %v366, %v435
        %v617 = vmul.f32 %v366, %v439
        %v618 = vmul.f32 %v366, %v443
        %v619 = vmul.f32 %v366, %v447
        %624 = vrot.lane.b32.xlu0 %v616, 127
        %v625 = vpop.permute.xlu0 %624
        %626 = vrot.lane.b32.xlu0 %v617, 127
        %v627 = vpop.permute.xlu0 %626
        %628 = vrot.lane.b32.xlu0 %v618, 127
        %v629 = vpop.permute.xlu0 %628
        %630 = vrot.lane.b32.xlu0 %v619, 127
        %v631 = vpop.permute.xlu0 %630
        %v632 = vsel %vm384, %v625, %v627
        %v633 = vsel %vm384, %v627, %v629
        %v634 = vsel %vm384, %v629, %v631
        %v639 = vadd.f32 %v612, %v632
        %v640 = vadd.f32 %v613, %v633
        %v641 = vadd.f32 %v614, %v634
        %v642 = vadd.f32 %v615, %v631
        %v643 = vmul.f32 %v398, %v435
        %v644 = vmul.f32 %v398, %v439
        %v645 = vmul.f32 %v398, %v443
        %v646 = vmul.f32 %v398, %v447
        %651 = vrot.lane.b32.xlu0 %v643, 126
        %v652 = vpop.permute.xlu0 %651
        %653 = vrot.lane.b32.xlu0 %v644, 126
        %v654 = vpop.permute.xlu0 %653
        %655 = vrot.lane.b32.xlu0 %v645, 126
        %v656 = vpop.permute.xlu0 %655
        %657 = vrot.lane.b32.xlu0 %v646, 126
        %v658 = vpop.permute.xlu0 %657
        %v659 = vsel %vm416, %v652, %v654
        %v660 = vsel %vm416, %v654, %v656
        %v661 = vsel %vm416, %v656, %v658
        %v666 = vadd.f32 %v639, %v659
        %v667 = vadd.f32 %v640, %v660
        %v668 = vadd.f32 %v641, %v661
        %v669 = vadd.f32 %v642, %v658
        %v670 = vmul.f32 %v430, %v525
        %v671 = vmul.f32 %v430, %v529
        %v672 = vmul.f32 %v430, %v533
        %v673 = vmul.f32 %v430, %v537
        %v674 = vadd.f32 %v666, %v670
        %v675 = vadd.f32 %v667, %v671
        %v676 = vadd.f32 %v668, %v672
        %v677 = vadd.f32 %v669, %v673
        %v678 = vmul.f32 %v458, %v525
        %v679 = vmul.f32 %v458, %v529
        %v680 = vmul.f32 %v458, %v533
        %v681 = vmul.f32 %v458, %v537
        %686 = vrot.lane.b32.xlu0 %v678, 127
        %v687 = vpop.permute.xlu0 %686
        %688 = vrot.lane.b32.xlu0 %v679, 127
        %v689 = vpop.permute.xlu0 %688
        %690 = vrot.lane.b32.xlu0 %v680, 127
        %v691 = vpop.permute.xlu0 %690
        %692 = vrot.lane.b32.xlu0 %v681, 127
        %v693 = vpop.permute.xlu0 %692
        %v694 = vsel %vm384, %v687, %v689
        %v695 = vsel %vm384, %v689, %v691
        %v696 = vsel %vm384, %v691, %v693
        %v701 = vadd.f32 %v674, %v694
        %v702 = vadd.f32 %v675, %v695
        %v703 = vadd.f32 %v676, %v696
        %v704 = vadd.f32 %v677, %v693
        %v705 = vmul.f32 %v489, %v525
        %v706 = vmul.f32 %v489, %v529
        %v707 = vmul.f32 %v489, %v533
        %v708 = vmul.f32 %v489, %v537
        %713 = vrot.lane.b32.xlu0 %v705, 126
        %v714 = vpop.permute.xlu0 %713
        %715 = vrot.lane.b32.xlu0 %v706, 126
        %v716 = vpop.permute.xlu0 %715
        %717 = vrot.lane.b32.xlu0 %v707, 126
        %v718 = vpop.permute.xlu0 %717
        %719 = vrot.lane.b32.xlu0 %v708, 126
        %v720 = vpop.permute.xlu0 %719
        %v721 = vsel %vm416, %v714, %v716
        %v722 = vsel %vm416, %v716, %v718
        %v723 = vsel %vm416, %v718, %v720
        %v728 = vadd.f32 %v701, %v721
        %v729 = vadd.f32 %v702, %v722
        %v730 = vadd.f32 %v703, %v723
        %v731 = vadd.f32 %v704, %v720
        %v732 = vlaneseq
        %v733 = vshrl.u32 %v732, 7
        %v734 = vsub.s32 3, %v733
        %v735 = vrot.slane %v330, %v734
        %v736 = vlaneseq
        %v737 = vshrl.u32 %v736, 7
        %v738 = vsub.s32 3, %v737
        %v739 = vrot.slane %v331, %v738
        %v740 = vlaneseq
        %v741 = vshrl.u32 %v740, 7
        %v742 = vsub.s32 3, %v741
        %v743 = vrot.slane %v332, %v742
        %v744 = vlaneseq
        %v745 = vshrl.u32 %v744, 7
        %v746 = vsub.s32 3, %v745
        %v747 = vrot.slane %v333, %v746
        %v748 = vmul.f32 %v520, %v735
        %v749 = vmul.f32 %v520, %v739
        %v750 = vmul.f32 %v520, %v743
        %v751 = vmul.f32 %v520, %v747
        %v752 = vadd.f32 %v728, %v748
        %v753 = vadd.f32 %v729, %v749
        %v754 = vadd.f32 %v730, %v750
        %v755 = vadd.f32 %v731, %v751
        %v756 = vmul.f32 %v548, %v735
        %v757 = vmul.f32 %v548, %v739
        %v758 = vmul.f32 %v548, %v743
        %v759 = vmul.f32 %v548, %v747
        %764 = vrot.lane.b32.xlu0 %v756, 127
        %v765 = vpop.permute.xlu0 %764
        %766 = vrot.lane.b32.xlu0 %v757, 127
        %v767 = vpop.permute.xlu0 %766
        %768 = vrot.lane.b32.xlu0 %v758, 127
        %v769 = vpop.permute.xlu0 %768
        %770 = vrot.lane.b32.xlu0 %v759, 127
        %v771 = vpop.permute.xlu0 %770
        %v772 = vsel %vm384, %v765, %v767
        %v773 = vsel %vm384, %v767, %v769
        %v774 = vsel %vm384, %v769, %v771
        %v779 = vadd.f32 %v752, %v772
        %v780 = vadd.f32 %v753, %v773
        %v781 = vadd.f32 %v754, %v774
        %v782 = vadd.f32 %v755, %v771
        %v783 = vmul.f32 %v579, %v735
        %v784 = vmul.f32 %v579, %v739
        %v785 = vmul.f32 %v579, %v743
        %v786 = vmul.f32 %v579, %v747
        %791 = vrot.lane.b32.xlu0 %v783, 126
        %v792 = vpop.permute.xlu0 %791
        %793 = vrot.lane.b32.xlu0 %v784, 126
        %v794 = vpop.permute.xlu0 %793
        %795 = vrot.lane.b32.xlu0 %v785, 126
        %v796 = vpop.permute.xlu0 %795
        %797 = vrot.lane.b32.xlu0 %v786, 126
        %v798 = vpop.permute.xlu0 %797
        %v799 = vsel %vm416, %v792, %v794
        %v800 = vsel %vm416, %v794, %v796
        %v801 = vsel %vm416, %v796, %v798
        %v806 = vadd.f32 %v779, %v799
        %v807 = vadd.f32 %v780, %v800
        %v808 = vadd.f32 %v781, %v801
        %v809 = vadd.f32 %v782, %v798
        %v810 = vmul.f32 %v338, %v525
        %v811 = vmul.f32 %v338, %v529
        %v812 = vmul.f32 %v338, %v533
        %v813 = vmul.f32 %v338, %v537
        %v814 = vadd.f32 %v810, 0.0
        %v815 = vadd.f32 %v811, 0.0
        %v816 = vadd.f32 %v812, 0.0
        %v817 = vadd.f32 %v813, 0.0
        %v818 = vmul.f32 %v366, %v525
        %v819 = vmul.f32 %v366, %v529
        %v820 = vmul.f32 %v366, %v533
        %v821 = vmul.f32 %v366, %v537
        %826 = vrot.lane.b32.xlu0 %v818, 127
        %v827 = vpop.permute.xlu0 %826
        %828 = vrot.lane.b32.xlu0 %v819, 127
        %v829 = vpop.permute.xlu0 %828
        %830 = vrot.lane.b32.xlu0 %v820, 127
        %v831 = vpop.permute.xlu0 %830
        %832 = vrot.lane.b32.xlu0 %v821, 127
        %v833 = vpop.permute.xlu0 %832
        %v834 = vsel %vm384, %v827, %v829
        %v835 = vsel %vm384, %v829, %v831
        %v836 = vsel %vm384, %v831, %v833
        %v841 = vadd.f32 %v814, %v834
        %v842 = vadd.f32 %v815, %v835
        %v843 = vadd.f32 %v816, %v836
        %v844 = vadd.f32 %v817, %v833
        %v845 = vmul.f32 %v398, %v525
        %v846 = vmul.f32 %v398, %v529
        %v847 = vmul.f32 %v398, %v533
        %v848 = vmul.f32 %v398, %v537
        %853 = vrot.lane.b32.xlu0 %v845, 126
        %v854 = vpop.permute.xlu0 %853
        %855 = vrot.lane.b32.xlu0 %v846, 126
        %v856 = vpop.permute.xlu0 %855
        %857 = vrot.lane.b32.xlu0 %v847, 126
        %v858 = vpop.permute.xlu0 %857
        %859 = vrot.lane.b32.xlu0 %v848, 126
        %v860 = vpop.permute.xlu0 %859
        %v861 = vsel %vm416, %v854, %v856
        %v862 = vsel %vm416, %v856, %v858
        %v863 = vsel %vm416, %v858, %v860
        %v868 = vadd.f32 %v841, %v861
        %v869 = vadd.f32 %v842, %v862
        %v870 = vadd.f32 %v843, %v863
        %v871 = vadd.f32 %v844, %v860
        %v872 = vmul.f32 %v430, %v735
        %v873 = vmul.f32 %v430, %v739
        %v874 = vmul.f32 %v430, %v743
        %v875 = vmul.f32 %v430, %v747
        %v876 = vadd.f32 %v868, %v872
        %v877 = vadd.f32 %v869, %v873
        %v878 = vadd.f32 %v870, %v874
        %v879 = vadd.f32 %v871, %v875
        %v880 = vmul.f32 %v458, %v735
        %v881 = vmul.f32 %v458, %v739
        %v882 = vmul.f32 %v458, %v743
        %v883 = vmul.f32 %v458, %v747
        %888 = vrot.lane.b32.xlu0 %v880, 127
        %v889 = vpop.permute.xlu0 %888
        %890 = vrot.lane.b32.xlu0 %v881, 127
        %v891 = vpop.permute.xlu0 %890
        %892 = vrot.lane.b32.xlu0 %v882, 127
        %v893 = vpop.permute.xlu0 %892
        %894 = vrot.lane.b32.xlu0 %v883, 127
        %v895 = vpop.permute.xlu0 %894
        %v896 = vsel %vm384, %v889, %v891
        %v897 = vsel %vm384, %v891, %v893
        %v898 = vsel %vm384, %v893, %v895
        %v903 = vadd.f32 %v876, %v896
        %v904 = vadd.f32 %v877, %v897
        %v905 = vadd.f32 %v878, %v898
        %v906 = vadd.f32 %v879, %v895
        %v907 = vmul.f32 %v489, %v735
        %v908 = vmul.f32 %v489, %v739
        %v909 = vmul.f32 %v489, %v743
        %v910 = vmul.f32 %v489, %v747
        %915 = vrot.lane.b32.xlu0 %v907, 126
        %v916 = vpop.permute.xlu0 %915
        %917 = vrot.lane.b32.xlu0 %v908, 126
        %v918 = vpop.permute.xlu0 %917
        %919 = vrot.lane.b32.xlu0 %v909, 126
        %v920 = vpop.permute.xlu0 %919
        %921 = vrot.lane.b32.xlu0 %v910, 126
        %v922 = vpop.permute.xlu0 %921
        %v923 = vsel %vm416, %v916, %v918
        %v924 = vsel %vm416, %v918, %v920
        %v925 = vsel %vm416, %v920, %v922
        %v930 = vadd.f32 %v903, %v923
        %v931 = vadd.f32 %v904, %v924
        %v932 = vadd.f32 %v905, %v925
        %v933 = vadd.f32 %v906, %v922
        %v934 = vlaneseq
        %v935 = vshrl.u32 %v934, 7
        %v936 = vsub.s32 4, %v935
        %v937 = vrot.slane %v330, %v936
        %v938 = vlaneseq
        %v939 = vshrl.u32 %v938, 7
        %v940 = vsub.s32 4, %v939
        %v941 = vrot.slane %v331, %v940
        %v942 = vlaneseq
        %v943 = vshrl.u32 %v942, 7
        %v944 = vsub.s32 4, %v943
        %v945 = vrot.slane %v332, %v944
        %v946 = vlaneseq
        %v947 = vshrl.u32 %v946, 7
        %v948 = vsub.s32 4, %v947
        %v949 = vrot.slane %v333, %v948
        %v950 = vmul.f32 %v520, %v937
        %v951 = vmul.f32 %v520, %v941
        %v952 = vmul.f32 %v520, %v945
        %v953 = vmul.f32 %v520, %v949
        %v954 = vadd.f32 %v930, %v950
        %v955 = vadd.f32 %v931, %v951
        %v956 = vadd.f32 %v932, %v952
        %v957 = vadd.f32 %v933, %v953
        %v958 = vmul.f32 %v548, %v937
        %v959 = vmul.f32 %v548, %v941
        %v960 = vmul.f32 %v548, %v945
        %v961 = vmul.f32 %v548, %v949
        %966 = vrot.lane.b32.xlu0 %v958, 127
        %v967 = vpop.permute.xlu0 %966
        %968 = vrot.lane.b32.xlu0 %v959, 127
        %v969 = vpop.permute.xlu0 %968
        %970 = vrot.lane.b32.xlu0 %v960, 127
        %v971 = vpop.permute.xlu0 %970
        %972 = vrot.lane.b32.xlu0 %v961, 127
        %v973 = vpop.permute.xlu0 %972
        %v974 = vsel %vm384, %v967, %v969
        %v975 = vsel %vm384, %v969, %v971
        %v976 = vsel %vm384, %v971, %v973
        %v981 = vadd.f32 %v954, %v974
        %v982 = vadd.f32 %v955, %v975
        %v983 = vadd.f32 %v956, %v976
        %v984 = vadd.f32 %v957, %v973
        %v985 = vmul.f32 %v579, %v937
        %v986 = vmul.f32 %v579, %v941
        %v987 = vmul.f32 %v579, %v945
        %v988 = vmul.f32 %v579, %v949
        %993 = vrot.lane.b32.xlu0 %v985, 126
        %v994 = vpop.permute.xlu0 %993
        %995 = vrot.lane.b32.xlu0 %v986, 126
        %v996 = vpop.permute.xlu0 %995
        %997 = vrot.lane.b32.xlu0 %v987, 126
        %v998 = vpop.permute.xlu0 %997
        %999 = vrot.lane.b32.xlu0 %v988, 126
        %v1000 = vpop.permute.xlu0 %999
        %v1001 = vsel %vm416, %v994, %v996
        %v1002 = vsel %vm416, %v996, %v998
        %v1003 = vsel %vm416, %v998, %v1000
        %v1008 = vadd.f32 %v981, %v1001
        %v1009 = vadd.f32 %v982, %v1002
        %v1010 = vadd.f32 %v983, %v1003
        %v1011 = vadd.f32 %v984, %v1000
        %v1012 = vmul.f32 %v338, %v735
        %v1013 = vmul.f32 %v338, %v739
        %v1014 = vmul.f32 %v338, %v743
        %v1015 = vmul.f32 %v338, %v747
        %v1016 = vadd.f32 %v1012, 0.0
        %v1017 = vadd.f32 %v1013, 0.0
        %v1018 = vadd.f32 %v1014, 0.0
        %v1019 = vadd.f32 %v1015, 0.0
        %v1020 = vmul.f32 %v366, %v735
        %v1021 = vmul.f32 %v366, %v739
        %v1022 = vmul.f32 %v366, %v743
        %v1023 = vmul.f32 %v366, %v747
        %1028 = vrot.lane.b32.xlu0 %v1020, 127
        %v1029 = vpop.permute.xlu0 %1028
        %1030 = vrot.lane.b32.xlu0 %v1021, 127
        %v1031 = vpop.permute.xlu0 %1030
        %1032 = vrot.lane.b32.xlu0 %v1022, 127
        %v1033 = vpop.permute.xlu0 %1032
        %1034 = vrot.lane.b32.xlu0 %v1023, 127
        %v1035 = vpop.permute.xlu0 %1034
        %v1036 = vsel %vm384, %v1029, %v1031
        %v1037 = vsel %vm384, %v1031, %v1033
        %v1038 = vsel %vm384, %v1033, %v1035
        %v1043 = vadd.f32 %v1016, %v1036
        %v1044 = vadd.f32 %v1017, %v1037
        %v1045 = vadd.f32 %v1018, %v1038
        %v1046 = vadd.f32 %v1019, %v1035
        %v1047 = vmul.f32 %v398, %v735
        %v1048 = vmul.f32 %v398, %v739
        %v1049 = vmul.f32 %v398, %v743
        %v1050 = vmul.f32 %v398, %v747
        %1055 = vrot.lane.b32.xlu0 %v1047, 126
        %v1056 = vpop.permute.xlu0 %1055
        %1057 = vrot.lane.b32.xlu0 %v1048, 126
        %v1058 = vpop.permute.xlu0 %1057
        %1059 = vrot.lane.b32.xlu0 %v1049, 126
        %v1060 = vpop.permute.xlu0 %1059
        %1061 = vrot.lane.b32.xlu0 %v1050, 126
        %v1062 = vpop.permute.xlu0 %1061
        %v1063 = vsel %vm416, %v1056, %v1058
        %v1064 = vsel %vm416, %v1058, %v1060
        %v1065 = vsel %vm416, %v1060, %v1062
        %v1070 = vadd.f32 %v1043, %v1063
        %v1071 = vadd.f32 %v1044, %v1064
        %v1072 = vadd.f32 %v1045, %v1065
        %v1073 = vadd.f32 %v1046, %v1062
        %v1074 = vmul.f32 %v430, %v937
        %v1075 = vmul.f32 %v430, %v941
        %v1076 = vmul.f32 %v430, %v945
        %v1077 = vmul.f32 %v430, %v949
        %v1078 = vadd.f32 %v1070, %v1074
        %v1079 = vadd.f32 %v1071, %v1075
        %v1080 = vadd.f32 %v1072, %v1076
        %v1081 = vadd.f32 %v1073, %v1077
        %v1082 = vmul.f32 %v458, %v937
        %v1083 = vmul.f32 %v458, %v941
        %v1084 = vmul.f32 %v458, %v945
        %v1085 = vmul.f32 %v458, %v949
        %1090 = vrot.lane.b32.xlu0 %v1082, 127
        %v1091 = vpop.permute.xlu0 %1090
        %1092 = vrot.lane.b32.xlu0 %v1083, 127
        %v1093 = vpop.permute.xlu0 %1092
        %1094 = vrot.lane.b32.xlu0 %v1084, 127
        %v1095 = vpop.permute.xlu0 %1094
        %1096 = vrot.lane.b32.xlu0 %v1085, 127
        %v1097 = vpop.permute.xlu0 %1096
        %v1098 = vsel %vm384, %v1091, %v1093
        %v1099 = vsel %vm384, %v1093, %v1095
        %v1100 = vsel %vm384, %v1095, %v1097
        %v1105 = vadd.f32 %v1078, %v1098
        %v1106 = vadd.f32 %v1079, %v1099
        %v1107 = vadd.f32 %v1080, %v1100
        %v1108 = vadd.f32 %v1081, %v1097
        %v1109 = vmul.f32 %v489, %v937
        %v1110 = vmul.f32 %v489, %v941
        %v1111 = vmul.f32 %v489, %v945
        %v1112 = vmul.f32 %v489, %v949
        %1117 = vrot.lane.b32.xlu0 %v1109, 126
        %v1118 = vpop.permute.xlu0 %1117
        %1119 = vrot.lane.b32.xlu0 %v1110, 126
        %v1120 = vpop.permute.xlu0 %1119
        %1121 = vrot.lane.b32.xlu0 %v1111, 126
        %v1122 = vpop.permute.xlu0 %1121
        %1123 = vrot.lane.b32.xlu0 %v1112, 126
        %v1124 = vpop.permute.xlu0 %1123
        %v1125 = vsel %vm416, %v1118, %v1120
        %v1126 = vsel %vm416, %v1120, %v1122
        %v1127 = vsel %vm416, %v1122, %v1124
        %v1132 = vadd.f32 %v1105, %v1125
        %v1133 = vadd.f32 %v1106, %v1126
        %v1134 = vadd.f32 %v1107, %v1127
        %v1135 = vadd.f32 %v1108, %v1124
        %v1136 = vlaneseq
        %v1137 = vshrl.u32 %v1136, 7
        %v1138 = vsub.s32 5, %v1137
        %v1139 = vrot.slane %v330, %v1138
        %v1140 = vlaneseq
        %v1141 = vshrl.u32 %v1140, 7
        %v1142 = vsub.s32 5, %v1141
        %v1143 = vrot.slane %v331, %v1142
        %v1144 = vlaneseq
        %v1145 = vshrl.u32 %v1144, 7
        %v1146 = vsub.s32 5, %v1145
        %v1147 = vrot.slane %v332, %v1146
        %v1148 = vlaneseq
        %v1149 = vshrl.u32 %v1148, 7
        %v1150 = vsub.s32 5, %v1149
        %v1151 = vrot.slane %v333, %v1150
        %v1152 = vmul.f32 %v520, %v1139
        %v1153 = vmul.f32 %v520, %v1143
        %v1154 = vmul.f32 %v520, %v1147
        %v1155 = vmul.f32 %v520, %v1151
        %v1156 = vadd.f32 %v1132, %v1152
        %v1157 = vadd.f32 %v1133, %v1153
        %v1158 = vadd.f32 %v1134, %v1154
        %v1159 = vadd.f32 %v1135, %v1155
        %v1160 = vmul.f32 %v548, %v1139
        %v1161 = vmul.f32 %v548, %v1143
        %v1162 = vmul.f32 %v548, %v1147
        %v1163 = vmul.f32 %v548, %v1151
        %1168 = vrot.lane.b32.xlu0 %v1160, 127
        %v1169 = vpop.permute.xlu0 %1168
        %1170 = vrot.lane.b32.xlu0 %v1161, 127
        %v1171 = vpop.permute.xlu0 %1170
        %1172 = vrot.lane.b32.xlu0 %v1162, 127
        %v1173 = vpop.permute.xlu0 %1172
        %1174 = vrot.lane.b32.xlu0 %v1163, 127
        %v1175 = vpop.permute.xlu0 %1174
        %v1176 = vsel %vm384, %v1169, %v1171
        %v1177 = vsel %vm384, %v1171, %v1173
        %v1178 = vsel %vm384, %v1173, %v1175
        %v1183 = vadd.f32 %v1156, %v1176
        %v1184 = vadd.f32 %v1157, %v1177
        %v1185 = vadd.f32 %v1158, %v1178
        %v1186 = vadd.f32 %v1159, %v1175
        %v1187 = vmul.f32 %v579, %v1139
        %v1188 = vmul.f32 %v579, %v1143
        %v1189 = vmul.f32 %v579, %v1147
        %v1190 = vmul.f32 %v579, %v1151
        %1195 = vrot.lane.b32.xlu0 %v1187, 126
        %v1196 = vpop.permute.xlu0 %1195
        %1197 = vrot.lane.b32.xlu0 %v1188, 126
        %v1198 = vpop.permute.xlu0 %1197
        %1199 = vrot.lane.b32.xlu0 %v1189, 126
        %v1200 = vpop.permute.xlu0 %1199
        %1201 = vrot.lane.b32.xlu0 %v1190, 126
        %v1202 = vpop.permute.xlu0 %1201
        %v1203 = vsel %vm416, %v1196, %v1198
        %v1204 = vsel %vm416, %v1198, %v1200
        %v1205 = vsel %vm416, %v1200, %v1202
        %v1210 = vadd.f32 %v1183, %v1203
        %v1211 = vadd.f32 %v1184, %v1204
        %v1212 = vadd.f32 %v1185, %v1205
        %v1213 = vadd.f32 %v1186, %v1202
        %v1214 = vlaneseq
        %v1215 = vshrl.u32 %v1214, 7
        %v1216 = vadd.s32 %v1215, 8
        %v1217 = vadd.s32 %v1215, 16
        %v1218 = vadd.s32 %v1215, 24
        %v1219 = vadd.s32 %v1215, 32
        %v1220 = vadd.s32 %v1215, 40
        %v1221 = vadd.s32 %v1215, 48
        %v1222 = vadd.s32 %v1215, 56
        %v1223 = vadd.s32 %v1215, 64
        %v1224 = vadd.s32 %v1215, 72
        %v1225 = vadd.s32 %v1215, 80
        %v1226 = vadd.s32 %v1215, 88
        %v1227 = vadd.s32 %v1215, 96
        %v1228 = vadd.s32 %v1215, 104
        %v1229 = vadd.s32 %v1215, 112
        %v1230 = vadd.s32 %v1215, 120
        %v1231 = vadd.s32 %v1215, 128
        %v1232 = vadd.s32 %v1215, 136
        %v1233 = vadd.s32 %v1215, 144
        %v1234 = vadd.s32 %v1215, 152
        %v1235 = vadd.s32 %v1215, 160
        %v1236 = vadd.s32 %v1215, 168
        %v1237 = vadd.s32 %v1215, 176
        %v1238 = vadd.s32 %v1215, 184
        %v1239 = vadd.s32 %v1215, 192
        %v1240 = vadd.s32 %v1215, 200
        %v1241 = vadd.s32 %v1215, 208
        %v1242 = vadd.s32 %v1215, 216
        %v1243 = vadd.s32 %v1215, 224
        %v1244 = vadd.s32 %v1215, 232
        %v1245 = vadd.s32 %v1215, 240
        %v1246 = vadd.s32 %v1215, 248
        %v1247 = vadd.s32 %v1215, 256
        %v1248 = vadd.s32 %v1215, 264
        %v1249 = vadd.s32 %v1215, 272
        %v1250 = vadd.s32 %v1215, 280
        %v1251 = vadd.s32 %v1215, 288
        %v1252 = vadd.s32 %v1215, 296
        %v1253 = vadd.s32 %v1215, 304
        %v1254 = vadd.s32 %v1215, 312
        %v1255 = vadd.s32 %v1215, 320
        %v1256 = vadd.s32 %v1215, 328
        %v1257 = vadd.s32 %v1215, 336
        %v1258 = vadd.s32 %v1215, 344
        %v1259 = vadd.s32 %v1215, 352
        %v1260 = vadd.s32 %v1215, 360
        %v1261 = vadd.s32 %v1215, 368
        %v1262 = vadd.s32 %v1215, 376
        %v1263 = vadd.s32 %v1215, 384
        %v1264 = vadd.s32 %v1215, 392
        %v1265 = vlaneseq
        %v1266 = vand.u32 %v1265, 127
        %v1267 = vadd.s32 %v1266, 128
        %v1268 = vmul.u32 %v1266, 2
        %v1269 = vmul.u32 %v1267, 2
        %v1270 = vsub.s32 %v1268, 2
        %v1271 = vsub.s32 %v1269, 2
        %vm1272 = vcmp.eq.s32.totalorder %v1215, %v1270
        %vm1273 = vcmp.eq.s32.totalorder %v1215, %v1271
        %vm1274 = vcmp.eq.s32.totalorder %v1216, %v1270
        %vm1275 = vcmp.eq.s32.totalorder %v1216, %v1271
        %vm1276 = vcmp.eq.s32.totalorder %v1217, %v1270
        %vm1277 = vcmp.eq.s32.totalorder %v1217, %v1271
        %vm1278 = vcmp.eq.s32.totalorder %v1218, %v1270
        %vm1279 = vcmp.eq.s32.totalorder %v1218, %v1271
        %vm1280 = vcmp.eq.s32.totalorder %v1219, %v1270
        %vm1281 = vcmp.eq.s32.totalorder %v1219, %v1271
        %vm1282 = vcmp.eq.s32.totalorder %v1220, %v1270
        %vm1283 = vcmp.eq.s32.totalorder %v1220, %v1271
        %vm1284 = vcmp.eq.s32.totalorder %v1221, %v1270
        %vm1285 = vcmp.eq.s32.totalorder %v1221, %v1271
        %vm1286 = vcmp.eq.s32.totalorder %v1222, %v1270
        %vm1287 = vcmp.eq.s32.totalorder %v1222, %v1271
        %vm1288 = vcmp.eq.s32.totalorder %v1223, %v1270
        %vm1289 = vcmp.eq.s32.totalorder %v1223, %v1271
        %vm1290 = vcmp.eq.s32.totalorder %v1224, %v1270
        %vm1291 = vcmp.eq.s32.totalorder %v1224, %v1271
        %vm1292 = vcmp.eq.s32.totalorder %v1225, %v1270
        %vm1293 = vcmp.eq.s32.totalorder %v1225, %v1271
        %vm1294 = vcmp.eq.s32.totalorder %v1226, %v1270
        %vm1295 = vcmp.eq.s32.totalorder %v1226, %v1271
        %vm1296 = vcmp.eq.s32.totalorder %v1227, %v1270
        %vm1297 = vcmp.eq.s32.totalorder %v1227, %v1271
        %vm1298 = vcmp.eq.s32.totalorder %v1228, %v1270
        %vm1299 = vcmp.eq.s32.totalorder %v1228, %v1271
        %vm1300 = vcmp.eq.s32.totalorder %v1229, %v1270
        %vm1301 = vcmp.eq.s32.totalorder %v1229, %v1271
        %vm1302 = vcmp.eq.s32.totalorder %v1230, %v1270
        %vm1303 = vcmp.eq.s32.totalorder %v1230, %v1271
        %vm1304 = vcmp.eq.s32.totalorder %v1231, %v1270
        %vm1305 = vcmp.eq.s32.totalorder %v1231, %v1271
        %vm1306 = vcmp.eq.s32.totalorder %v1232, %v1270
        %vm1307 = vcmp.eq.s32.totalorder %v1232, %v1271
        %vm1308 = vcmp.eq.s32.totalorder %v1233, %v1270
        %vm1309 = vcmp.eq.s32.totalorder %v1233, %v1271
        %vm1310 = vcmp.eq.s32.totalorder %v1234, %v1270
        %vm1311 = vcmp.eq.s32.totalorder %v1234, %v1271
        %vm1312 = vcmp.eq.s32.totalorder %v1235, %v1270
        %vm1313 = vcmp.eq.s32.totalorder %v1235, %v1271
        %vm1314 = vcmp.eq.s32.totalorder %v1236, %v1270
        %vm1315 = vcmp.eq.s32.totalorder %v1236, %v1271
        %vm1316 = vcmp.eq.s32.totalorder %v1237, %v1270
        %vm1317 = vcmp.eq.s32.totalorder %v1237, %v1271
        %vm1318 = vcmp.eq.s32.totalorder %v1238, %v1270
        %vm1319 = vcmp.eq.s32.totalorder %v1238, %v1271
        %vm1320 = vcmp.eq.s32.totalorder %v1239, %v1270
        %vm1321 = vcmp.eq.s32.totalorder %v1239, %v1271
        %vm1322 = vcmp.eq.s32.totalorder %v1240, %v1270
        %vm1323 = vcmp.eq.s32.totalorder %v1240, %v1271
        %vm1324 = vcmp.eq.s32.totalorder %v1241, %v1270
        %vm1325 = vcmp.eq.s32.totalorder %v1241, %v1271
        %vm1326 = vcmp.eq.s32.totalorder %v1242, %v1270
        %vm1327 = vcmp.eq.s32.totalorder %v1242, %v1271
        %vm1328 = vcmp.eq.s32.totalorder %v1243, %v1270
        %vm1329 = vcmp.eq.s32.totalorder %v1243, %v1271
        %vm1330 = vcmp.eq.s32.totalorder %v1244, %v1270
        %vm1331 = vcmp.eq.s32.totalorder %v1244, %v1271
        %vm1332 = vcmp.eq.s32.totalorder %v1245, %v1270
        %vm1333 = vcmp.eq.s32.totalorder %v1245, %v1271
        %vm1334 = vcmp.eq.s32.totalorder %v1246, %v1270
        %vm1335 = vcmp.eq.s32.totalorder %v1246, %v1271
        %vm1336 = vcmp.eq.s32.totalorder %v1247, %v1270
        %vm1337 = vcmp.eq.s32.totalorder %v1247, %v1271
        %vm1338 = vcmp.eq.s32.totalorder %v1248, %v1270
        %vm1339 = vcmp.eq.s32.totalorder %v1248, %v1271
        %vm1340 = vcmp.eq.s32.totalorder %v1249, %v1270
        %vm1341 = vcmp.eq.s32.totalorder %v1249, %v1271
        %vm1342 = vcmp.eq.s32.totalorder %v1250, %v1270
        %vm1343 = vcmp.eq.s32.totalorder %v1250, %v1271
        %vm1344 = vcmp.eq.s32.totalorder %v1251, %v1270
        %vm1345 = vcmp.eq.s32.totalorder %v1251, %v1271
        %vm1346 = vcmp.eq.s32.totalorder %v1252, %v1270
        %vm1347 = vcmp.eq.s32.totalorder %v1252, %v1271
        %vm1348 = vcmp.eq.s32.totalorder %v1253, %v1270
        %vm1349 = vcmp.eq.s32.totalorder %v1253, %v1271
        %vm1350 = vcmp.eq.s32.totalorder %v1254, %v1270
        %vm1351 = vcmp.eq.s32.totalorder %v1254, %v1271
        %vm1352 = vcmp.eq.s32.totalorder %v1255, %v1270
        %vm1353 = vcmp.eq.s32.totalorder %v1255, %v1271
        %vm1354 = vcmp.eq.s32.totalorder %v1256, %v1270
        %vm1355 = vcmp.eq.s32.totalorder %v1256, %v1271
        %vm1356 = vcmp.eq.s32.totalorder %v1257, %v1270
        %vm1357 = vcmp.eq.s32.totalorder %v1257, %v1271
        %vm1358 = vcmp.eq.s32.totalorder %v1258, %v1270
        %vm1359 = vcmp.eq.s32.totalorder %v1258, %v1271
        %vm1360 = vcmp.eq.s32.totalorder %v1259, %v1270
        %vm1361 = vcmp.eq.s32.totalorder %v1259, %v1271
        %vm1362 = vcmp.eq.s32.totalorder %v1260, %v1270
        %vm1363 = vcmp.eq.s32.totalorder %v1260, %v1271
        %vm1364 = vcmp.eq.s32.totalorder %v1261, %v1270
        %vm1365 = vcmp.eq.s32.totalorder %v1261, %v1271
        %vm1366 = vcmp.eq.s32.totalorder %v1262, %v1270
        %vm1367 = vcmp.eq.s32.totalorder %v1262, %v1271
        %vm1368 = vcmp.eq.s32.totalorder %v1263, %v1270
        %vm1369 = vcmp.eq.s32.totalorder %v1263, %v1271
        %vm1370 = vcmp.eq.s32.totalorder %v1264, %v1270
        %vm1371 = vcmp.eq.s32.totalorder %v1264, %v1271
        %v1372 = vsel %vm1272, 1.0, 0.0
        %v1373 = vsel %vm1273, 1.0, 0.0
        %v1374 = vsel %vm1274, 1.0, 0.0
        %v1375 = vsel %vm1275, 1.0, 0.0
        %v1376 = vsel %vm1276, 1.0, 0.0
        %v1377 = vsel %vm1277, 1.0, 0.0
        %v1378 = vsel %vm1278, 1.0, 0.0
        %v1379 = vsel %vm1279, 1.0, 0.0
        %v1380 = vsel %vm1280, 1.0, 0.0
        %v1381 = vsel %vm1281, 1.0, 0.0
        %v1382 = vsel %vm1282, 1.0, 0.0
        %v1383 = vsel %vm1283, 1.0, 0.0
        %v1384 = vsel %vm1284, 1.0, 0.0
        %v1385 = vsel %vm1285, 1.0, 0.0
        %v1386 = vsel %vm1286, 1.0, 0.0
        %v1387 = vsel %vm1287, 1.0, 0.0
        %v1388 = vsel %vm1288, 1.0, 0.0
        %v1389 = vsel %vm1289, 1.0, 0.0
        %v1390 = vsel %vm1290, 1.0, 0.0
        %v1391 = vsel %vm1291, 1.0, 0.0
        %v1392 = vsel %vm1292, 1.0, 0.0
        %v1393 = vsel %vm1293, 1.0, 0.0
        %v1394 = vsel %vm1294, 1.0, 0.0
        %v1395 = vsel %vm1295, 1.0, 0.0
        %v1396 = vsel %vm1296, 1.0, 0.0
        %v1397 = vsel %vm1297, 1.0, 0.0
        %v1398 = vsel %vm1298, 1.0, 0.0
        %v1399 = vsel %vm1299, 1.0, 0.0
        %v1400 = vsel %vm1300, 1.0, 0.0
        %v1401 = vsel %vm1301, 1.0, 0.0
        %v1402 = vsel %vm1302, 1.0, 0.0
        %v1403 = vsel %vm1303, 1.0, 0.0
        %v1404 = vsel %vm1304, 1.0, 0.0
        %v1405 = vsel %vm1305, 1.0, 0.0
        %v1406 = vsel %vm1306, 1.0, 0.0
        %v1407 = vsel %vm1307, 1.0, 0.0
        %v1408 = vsel %vm1308, 1.0, 0.0
        %v1409 = vsel %vm1309, 1.0, 0.0
        %v1410 = vsel %vm1310, 1.0, 0.0
        %v1411 = vsel %vm1311, 1.0, 0.0
        %v1412 = vsel %vm1312, 1.0, 0.0
        %v1413 = vsel %vm1313, 1.0, 0.0
        %v1414 = vsel %vm1314, 1.0, 0.0
        %v1415 = vsel %vm1315, 1.0, 0.0
        %v1416 = vsel %vm1316, 1.0, 0.0
        %v1417 = vsel %vm1317, 1.0, 0.0
        %v1418 = vsel %vm1318, 1.0, 0.0
        %v1419 = vsel %vm1319, 1.0, 0.0
        %v1420 = vsel %vm1320, 1.0, 0.0
        %v1421 = vsel %vm1321, 1.0, 0.0
        %v1422 = vsel %vm1322, 1.0, 0.0
        %v1423 = vsel %vm1323, 1.0, 0.0
        %v1424 = vsel %vm1324, 1.0, 0.0
        %v1425 = vsel %vm1325, 1.0, 0.0
        %v1426 = vsel %vm1326, 1.0, 0.0
        %v1427 = vsel %vm1327, 1.0, 0.0
        %v1428 = vsel %vm1328, 1.0, 0.0
        %v1429 = vsel %vm1329, 1.0, 0.0
        %v1430 = vsel %vm1330, 1.0, 0.0
        %v1431 = vsel %vm1331, 1.0, 0.0
        %v1432 = vsel %vm1332, 1.0, 0.0
        %v1433 = vsel %vm1333, 1.0, 0.0
        %v1434 = vsel %vm1334, 1.0, 0.0
        %v1435 = vsel %vm1335, 1.0, 0.0
        %v1436 = vsel %vm1336, 1.0, 0.0
        %v1437 = vsel %vm1337, 1.0, 0.0
        %v1438 = vsel %vm1338, 1.0, 0.0
        %v1439 = vsel %vm1339, 1.0, 0.0
        %v1440 = vsel %vm1340, 1.0, 0.0
        %v1441 = vsel %vm1341, 1.0, 0.0
        %v1442 = vsel %vm1342, 1.0, 0.0
        %v1443 = vsel %vm1343, 1.0, 0.0
        %v1444 = vsel %vm1344, 1.0, 0.0
        %v1445 = vsel %vm1345, 1.0, 0.0
        %v1446 = vsel %vm1346, 1.0, 0.0
        %v1447 = vsel %vm1347, 1.0, 0.0
        %v1448 = vsel %vm1348, 1.0, 0.0
        %v1449 = vsel %vm1349, 1.0, 0.0
        %v1450 = vsel %vm1350, 1.0, 0.0
        %v1451 = vsel %vm1351, 1.0, 0.0
        %v1452 = vsel %vm1352, 1.0, 0.0
        %v1453 = vsel %vm1353, 1.0, 0.0
        %v1454 = vsel %vm1354, 1.0, 0.0
        %v1455 = vsel %vm1355, 1.0, 0.0
        %v1456 = vsel %vm1356, 1.0, 0.0
        %v1457 = vsel %vm1357, 1.0, 0.0
        %v1458 = vsel %vm1358, 1.0, 0.0
        %v1459 = vsel %vm1359, 1.0, 0.0
        %v1460 = vsel %vm1360, 1.0, 0.0
        %v1461 = vsel %vm1361, 1.0, 0.0
        %v1462 = vsel %vm1362, 1.0, 0.0
        %v1463 = vsel %vm1363, 1.0, 0.0
        %v1464 = vsel %vm1364, 1.0, 0.0
        %v1465 = vsel %vm1365, 1.0, 0.0
        %v1466 = vsel %vm1366, 1.0, 0.0
        %v1467 = vsel %vm1367, 1.0, 0.0
        %v1468 = vsel %vm1368, 1.0, 0.0
        %v1469 = vsel %vm1369, 1.0, 0.0
        %v1470 = vsel %vm1370, 1.0, 0.0
        %v1471 = vsel %vm1371, 1.0, 0.0
        %v1472 = vsub.s32 %v1268, 1
        %v1473 = vsub.s32 %v1269, 1
        %vm1474 = vcmp.eq.s32.totalorder %v1215, %v1472
        %vm1475 = vcmp.eq.s32.totalorder %v1215, %v1473
        %vm1476 = vcmp.eq.s32.totalorder %v1216, %v1472
        %vm1477 = vcmp.eq.s32.totalorder %v1216, %v1473
        %vm1478 = vcmp.eq.s32.totalorder %v1217, %v1472
        %vm1479 = vcmp.eq.s32.totalorder %v1217, %v1473
        %vm1480 = vcmp.eq.s32.totalorder %v1218, %v1472
        %vm1481 = vcmp.eq.s32.totalorder %v1218, %v1473
        %vm1482 = vcmp.eq.s32.totalorder %v1219, %v1472
        %vm1483 = vcmp.eq.s32.totalorder %v1219, %v1473
        %vm1484 = vcmp.eq.s32.totalorder %v1220, %v1472
        %vm1485 = vcmp.eq.s32.totalorder %v1220, %v1473
        %vm1486 = vcmp.eq.s32.totalorder %v1221, %v1472
        %vm1487 = vcmp.eq.s32.totalorder %v1221, %v1473
        %vm1488 = vcmp.eq.s32.totalorder %v1222, %v1472
        %vm1489 = vcmp.eq.s32.totalorder %v1222, %v1473
        %vm1490 = vcmp.eq.s32.totalorder %v1223, %v1472
        %vm1491 = vcmp.eq.s32.totalorder %v1223, %v1473
        %vm1492 = vcmp.eq.s32.totalorder %v1224, %v1472
        %vm1493 = vcmp.eq.s32.totalorder %v1224, %v1473
        %vm1494 = vcmp.eq.s32.totalorder %v1225, %v1472
        %vm1495 = vcmp.eq.s32.totalorder %v1225, %v1473
        %vm1496 = vcmp.eq.s32.totalorder %v1226, %v1472
        %vm1497 = vcmp.eq.s32.totalorder %v1226, %v1473
        %vm1498 = vcmp.eq.s32.totalorder %v1227, %v1472
        %vm1499 = vcmp.eq.s32.totalorder %v1227, %v1473
        %vm1500 = vcmp.eq.s32.totalorder %v1228, %v1472
        %vm1501 = vcmp.eq.s32.totalorder %v1228, %v1473
        %vm1502 = vcmp.eq.s32.totalorder %v1229, %v1472
        %vm1503 = vcmp.eq.s32.totalorder %v1229, %v1473
        %vm1504 = vcmp.eq.s32.totalorder %v1230, %v1472
        %vm1505 = vcmp.eq.s32.totalorder %v1230, %v1473
        %vm1506 = vcmp.eq.s32.totalorder %v1231, %v1472
        %vm1507 = vcmp.eq.s32.totalorder %v1231, %v1473
        %vm1508 = vcmp.eq.s32.totalorder %v1232, %v1472
        %vm1509 = vcmp.eq.s32.totalorder %v1232, %v1473
        %vm1510 = vcmp.eq.s32.totalorder %v1233, %v1472
        %vm1511 = vcmp.eq.s32.totalorder %v1233, %v1473
        %vm1512 = vcmp.eq.s32.totalorder %v1234, %v1472
        %vm1513 = vcmp.eq.s32.totalorder %v1234, %v1473
        %vm1514 = vcmp.eq.s32.totalorder %v1235, %v1472
        %vm1515 = vcmp.eq.s32.totalorder %v1235, %v1473
        %vm1516 = vcmp.eq.s32.totalorder %v1236, %v1472
        %vm1517 = vcmp.eq.s32.totalorder %v1236, %v1473
        %vm1518 = vcmp.eq.s32.totalorder %v1237, %v1472
        %vm1519 = vcmp.eq.s32.totalorder %v1237, %v1473
        %vm1520 = vcmp.eq.s32.totalorder %v1238, %v1472
        %vm1521 = vcmp.eq.s32.totalorder %v1238, %v1473
        %vm1522 = vcmp.eq.s32.totalorder %v1239, %v1472
        %vm1523 = vcmp.eq.s32.totalorder %v1239, %v1473
        %vm1524 = vcmp.eq.s32.totalorder %v1240, %v1472
        %vm1525 = vcmp.eq.s32.totalorder %v1240, %v1473
        %vm1526 = vcmp.eq.s32.totalorder %v1241, %v1472
        %vm1527 = vcmp.eq.s32.totalorder %v1241, %v1473
        %vm1528 = vcmp.eq.s32.totalorder %v1242, %v1472
        %vm1529 = vcmp.eq.s32.totalorder %v1242, %v1473
        %vm1530 = vcmp.eq.s32.totalorder %v1243, %v1472
        %vm1531 = vcmp.eq.s32.totalorder %v1243, %v1473
        %vm1532 = vcmp.eq.s32.totalorder %v1244, %v1472
        %vm1533 = vcmp.eq.s32.totalorder %v1244, %v1473
        %vm1534 = vcmp.eq.s32.totalorder %v1245, %v1472
        %vm1535 = vcmp.eq.s32.totalorder %v1245, %v1473
        %vm1536 = vcmp.eq.s32.totalorder %v1246, %v1472
        %vm1537 = vcmp.eq.s32.totalorder %v1246, %v1473
        %vm1538 = vcmp.eq.s32.totalorder %v1247, %v1472
        %vm1539 = vcmp.eq.s32.totalorder %v1247, %v1473
        %vm1540 = vcmp.eq.s32.totalorder %v1248, %v1472
        %vm1541 = vcmp.eq.s32.totalorder %v1248, %v1473
        %vm1542 = vcmp.eq.s32.totalorder %v1249, %v1472
        %vm1543 = vcmp.eq.s32.totalorder %v1249, %v1473
        %vm1544 = vcmp.eq.s32.totalorder %v1250, %v1472
        %vm1545 = vcmp.eq.s32.totalorder %v1250, %v1473
        %vm1546 = vcmp.eq.s32.totalorder %v1251, %v1472
        %vm1547 = vcmp.eq.s32.totalorder %v1251, %v1473
        %vm1548 = vcmp.eq.s32.totalorder %v1252, %v1472
        %vm1549 = vcmp.eq.s32.totalorder %v1252, %v1473
        %vm1550 = vcmp.eq.s32.totalorder %v1253, %v1472
        %vm1551 = vcmp.eq.s32.totalorder %v1253, %v1473
        %vm1552 = vcmp.eq.s32.totalorder %v1254, %v1472
        %vm1553 = vcmp.eq.s32.totalorder %v1254, %v1473
        %vm1554 = vcmp.eq.s32.totalorder %v1255, %v1472
        %vm1555 = vcmp.eq.s32.totalorder %v1255, %v1473
        %vm1556 = vcmp.eq.s32.totalorder %v1256, %v1472
        %vm1557 = vcmp.eq.s32.totalorder %v1256, %v1473
        %vm1558 = vcmp.eq.s32.totalorder %v1257, %v1472
        %vm1559 = vcmp.eq.s32.totalorder %v1257, %v1473
        %vm1560 = vcmp.eq.s32.totalorder %v1258, %v1472
        %vm1561 = vcmp.eq.s32.totalorder %v1258, %v1473
        %vm1562 = vcmp.eq.s32.totalorder %v1259, %v1472
        %vm1563 = vcmp.eq.s32.totalorder %v1259, %v1473
        %vm1564 = vcmp.eq.s32.totalorder %v1260, %v1472
        %vm1565 = vcmp.eq.s32.totalorder %v1260, %v1473
        %vm1566 = vcmp.eq.s32.totalorder %v1261, %v1472
        %vm1567 = vcmp.eq.s32.totalorder %v1261, %v1473
        %vm1568 = vcmp.eq.s32.totalorder %v1262, %v1472
        %vm1569 = vcmp.eq.s32.totalorder %v1262, %v1473
        %vm1570 = vcmp.eq.s32.totalorder %v1263, %v1472
        %vm1571 = vcmp.eq.s32.totalorder %v1263, %v1473
        %vm1572 = vcmp.eq.s32.totalorder %v1264, %v1472
        %vm1573 = vcmp.eq.s32.totalorder %v1264, %v1473
        %v1574 = vsel %vm1474, 1.0, 0.0
        %v1575 = vsel %vm1475, 1.0, 0.0
        %v1576 = vsel %vm1476, 1.0, 0.0
        %v1577 = vsel %vm1477, 1.0, 0.0
        %v1578 = vsel %vm1478, 1.0, 0.0
        %v1579 = vsel %vm1479, 1.0, 0.0
        %v1580 = vsel %vm1480, 1.0, 0.0
        %v1581 = vsel %vm1481, 1.0, 0.0
        %v1582 = vsel %vm1482, 1.0, 0.0
        %v1583 = vsel %vm1483, 1.0, 0.0
        %v1584 = vsel %vm1484, 1.0, 0.0
        %v1585 = vsel %vm1485, 1.0, 0.0
        %v1586 = vsel %vm1486, 1.0, 0.0
        %v1587 = vsel %vm1487, 1.0, 0.0
        %v1588 = vsel %vm1488, 1.0, 0.0
        %v1589 = vsel %vm1489, 1.0, 0.0
        %v1590 = vsel %vm1490, 1.0, 0.0
        %v1591 = vsel %vm1491, 1.0, 0.0
        %v1592 = vsel %vm1492, 1.0, 0.0
        %v1593 = vsel %vm1493, 1.0, 0.0
        %v1594 = vsel %vm1494, 1.0, 0.0
        %v1595 = vsel %vm1495, 1.0, 0.0
        %v1596 = vsel %vm1496, 1.0, 0.0
        %v1597 = vsel %vm1497, 1.0, 0.0
        %v1598 = vsel %vm1498, 1.0, 0.0
        %v1599 = vsel %vm1499, 1.0, 0.0
        %v1600 = vsel %vm1500, 1.0, 0.0
        %v1601 = vsel %vm1501, 1.0, 0.0
        %v1602 = vsel %vm1502, 1.0, 0.0
        %v1603 = vsel %vm1503, 1.0, 0.0
        %v1604 = vsel %vm1504, 1.0, 0.0
        %v1605 = vsel %vm1505, 1.0, 0.0
        %v1606 = vsel %vm1506, 1.0, 0.0
        %v1607 = vsel %vm1507, 1.0, 0.0
        %v1608 = vsel %vm1508, 1.0, 0.0
        %v1609 = vsel %vm1509, 1.0, 0.0
        %v1610 = vsel %vm1510, 1.0, 0.0
        %v1611 = vsel %vm1511, 1.0, 0.0
        %v1612 = vsel %vm1512, 1.0, 0.0
        %v1613 = vsel %vm1513, 1.0, 0.0
        %v1614 = vsel %vm1514, 1.0, 0.0
        %v1615 = vsel %vm1515, 1.0, 0.0
        %v1616 = vsel %vm1516, 1.0, 0.0
        %v1617 = vsel %vm1517, 1.0, 0.0
        %v1618 = vsel %vm1518, 1.0, 0.0
        %v1619 = vsel %vm1519, 1.0, 0.0
        %v1620 = vsel %vm1520, 1.0, 0.0
        %v1621 = vsel %vm1521, 1.0, 0.0
        %v1622 = vsel %vm1522, 1.0, 0.0
        %v1623 = vsel %vm1523, 1.0, 0.0
        %v1624 = vsel %vm1524, 1.0, 0.0
        %v1625 = vsel %vm1525, 1.0, 0.0
        %v1626 = vsel %vm1526, 1.0, 0.0
        %v1627 = vsel %vm1527, 1.0, 0.0
        %v1628 = vsel %vm1528, 1.0, 0.0
        %v1629 = vsel %vm1529, 1.0, 0.0
        %v1630 = vsel %vm1530, 1.0, 0.0
        %v1631 = vsel %vm1531, 1.0, 0.0
        %v1632 = vsel %vm1532, 1.0, 0.0
        %v1633 = vsel %vm1533, 1.0, 0.0
        %v1634 = vsel %vm1534, 1.0, 0.0
        %v1635 = vsel %vm1535, 1.0, 0.0
        %v1636 = vsel %vm1536, 1.0, 0.0
        %v1637 = vsel %vm1537, 1.0, 0.0
        %v1638 = vsel %vm1538, 1.0, 0.0
        %v1639 = vsel %vm1539, 1.0, 0.0
        %v1640 = vsel %vm1540, 1.0, 0.0
        %v1641 = vsel %vm1541, 1.0, 0.0
        %v1642 = vsel %vm1542, 1.0, 0.0
        %v1643 = vsel %vm1543, 1.0, 0.0
        %v1644 = vsel %vm1544, 1.0, 0.0
        %v1645 = vsel %vm1545, 1.0, 0.0
        %v1646 = vsel %vm1546, 1.0, 0.0
        %v1647 = vsel %vm1547, 1.0, 0.0
        %v1648 = vsel %vm1548, 1.0, 0.0
        %v1649 = vsel %vm1549, 1.0, 0.0
        %v1650 = vsel %vm1550, 1.0, 0.0
        %v1651 = vsel %vm1551, 1.0, 0.0
        %v1652 = vsel %vm1552, 1.0, 0.0
        %v1653 = vsel %vm1553, 1.0, 0.0
        %v1654 = vsel %vm1554, 1.0, 0.0
        %v1655 = vsel %vm1555, 1.0, 0.0
        %v1656 = vsel %vm1556, 1.0, 0.0
        %v1657 = vsel %vm1557, 1.0, 0.0
        %v1658 = vsel %vm1558, 1.0, 0.0
        %v1659 = vsel %vm1559, 1.0, 0.0
        %v1660 = vsel %vm1560, 1.0, 0.0
        %v1661 = vsel %vm1561, 1.0, 0.0
        %v1662 = vsel %vm1562, 1.0, 0.0
        %v1663 = vsel %vm1563, 1.0, 0.0
        %v1664 = vsel %vm1564, 1.0, 0.0
        %v1665 = vsel %vm1565, 1.0, 0.0
        %v1666 = vsel %vm1566, 1.0, 0.0
        %v1667 = vsel %vm1567, 1.0, 0.0
        %v1668 = vsel %vm1568, 1.0, 0.0
        %v1669 = vsel %vm1569, 1.0, 0.0
        %v1670 = vsel %vm1570, 1.0, 0.0
        %v1671 = vsel %vm1571, 1.0, 0.0
        %v1672 = vsel %vm1572, 1.0, 0.0
        %v1673 = vsel %vm1573, 1.0, 0.0
        %v1674 = vmax.f32 %v604, %v806
        %v1675 = vmax.f32 %v605, %v807
        %v1676 = vmax.f32 %v606, %v808
        %v1677 = vmax.f32 %v607, %v809
        %v1678 = vld [vmem:[%s2] sm:$0xff]
        %1680 = vset.pattern.permute.xlu0 0
        %1681 = vperm.xlu0 %1680, %v1678
        %v1682 = vpop.permute.xlu0 %1681
        %v1684 = vadd.f32 %v1674, %v1682
        %v1685 = vadd.f32 %v1675, %v1682
        %v1686 = vadd.f32 %v1676, %v1682
        %v1687 = vadd.f32 %v1677, %v1682
        %v1688 = vmax.f32 %v1684, 0.0
        %v1689 = vmax.f32 %v1685, 0.0
        %v1690 = vmax.f32 %v1686, 0.0
        %v1691 = vmax.f32 %v1687, 0.0
        %vm1692 = vcmask 130048
        %v1694 = vsel %vm1692, %v1691, 0
        %1696 = vmatprep.subr.mxu0 %v1373
        %1697 = vmatpush1.msra.mxu0 %v1372
        %1698 = vmatprep.subr.mxu0 %v1375
        %1699 = vmatpush1.msra.mxu0 %v1374
        %1700 = vmatprep.subr.mxu0 %v1377
        %1701 = vmatpush1.msra.mxu0 %v1376
        %1702 = vmatprep.subr.mxu0 %v1379
        %1703 = vmatpush1.msra.mxu0 %v1378
        %1704 = vmatprep.subr.mxu0 %v1381
        %1705 = vmatpush1.msra.mxu0 %v1380
        %1706 = vmatprep.subr.mxu0 %v1383
        %1707 = vmatpush1.msra.mxu0 %v1382
        %1708 = vmatprep.subr.mxu0 %v1385
        %1709 = vmatpush1.msra.mxu0 %v1384
        %1710 = vmatprep.subr.mxu0 %v1387
        %1711 = vmatpush1.msra.mxu0 %v1386
        %1712 = vmatprep.subr.mxu0 %v1389
        %1713 = vmatpush1.msra.mxu0 %v1388
        %1714 = vmatprep.subr.mxu0 %v1391
        %1715 = vmatpush1.msra.mxu0 %v1390
        %1716 = vmatprep.subr.mxu0 %v1393
        %1717 = vmatpush1.msra.mxu0 %v1392
        %1718 = vmatprep.subr.mxu0 %v1395
        %1719 = vmatpush1.msra.mxu0 %v1394
        %1720 = vmatprep.subr.mxu0 %v1397
        %1721 = vmatpush1.msra.mxu0 %v1396
        %1722 = vmatprep.subr.mxu0 %v1399
        %1723 = vmatpush1.msra.mxu0 %v1398
        %1724 = vmatprep.subr.mxu0 %v1401
        %1725 = vmatpush1.msra.mxu0 %v1400
        %1726 = vmatprep.subr.mxu0 %v1403
        %1727 = vmatpush1.msra.mxu0 %v1402
        %1728 = vmatprep.subr.mxu0 %v1405
        %1729 = vmatpush1.msra.mxu0 %v1404
        %1730 = vmatprep.subr.mxu0 %v1407
        %1731 = vmatpush1.msra.mxu0 %v1406
        %1732 = vmatprep.subr.mxu0 %v1409
        %1733 = vmatpush1.msra.mxu0 %v1408
        %1734 = vmatprep.subr.mxu0 %v1411
        %1735 = vmatpush1.msra.mxu0 %v1410
        %1736 = vmatprep.subr.mxu0 %v1413
        %1737 = vmatpush1.msra.mxu0 %v1412
        %1738 = vmatprep.subr.mxu0 %v1415
        %1739 = vmatpush1.msra.mxu0 %v1414
        %1740 = vmatprep.subr.mxu0 %v1417
        %1741 = vmatpush1.msra.mxu0 %v1416
        %1742 = vmatprep.subr.mxu0 %v1419
        %1743 = vmatpush1.msra.mxu0 %v1418
        %1744 = vmatprep.subr.mxu0 %v1421
        %1745 = vmatpush1.msra.mxu0 %v1420
        %1746 = vmatprep.subr.mxu0 %v1423
        %1747 = vmatpush1.msra.mxu0 %v1422
        %1748 = vmatprep.subr.mxu0 %v1425
        %1749 = vmatpush1.msra.mxu0 %v1424
        %1750 = vmatprep.subr.mxu0 %v1427
        %1751 = vmatpush1.msra.mxu0 %v1426
        %1752 = vmatprep.subr.mxu0 %v1429
        %1753 = vmatpush1.msra.mxu0 %v1428
        %1754 = vmatprep.subr.mxu0 %v1431
        %1755 = vmatpush1.msra.mxu0 %v1430
        %1756 = vmatprep.subr.mxu0 %v1433
        %1757 = vmatpush1.msra.mxu0 %v1432
        %1758 = vmatprep.subr.mxu0 %v1435
        %1759 = vmatpush1.msra.mxu0 %v1434
        %1760 = vmatprep.mubr.f32.mxu0 %v1689
        %1761 = vmatmul.mubr.f32.gmra.mrb[0].mxu0 %v1688
        %v1762 = vpop.f32.mrb[0].mxu0
        %v1763 = vadd.f32 0.0, %v1762
        %v1764 = vpop.f32.mrb[0].mxu0
        %v1765 = vadd.f32 0.0, %v1764
        %1766 = vdwg.mxu0
        %1767 = vmatprep.subr.mxu0 %v1437
        %1768 = vmatpush1.msra.mxu0 %v1436
        %1769 = vmatprep.subr.mxu0 %v1439
        %1770 = vmatpush1.msra.mxu0 %v1438
        %1771 = vmatprep.subr.mxu0 %v1441
        %1772 = vmatpush1.msra.mxu0 %v1440
        %1773 = vmatprep.subr.mxu0 %v1443
        %1774 = vmatpush1.msra.mxu0 %v1442
        %1775 = vmatprep.subr.mxu0 %v1445
        %1776 = vmatpush1.msra.mxu0 %v1444
        %1777 = vmatprep.subr.mxu0 %v1447
        %1778 = vmatpush1.msra.mxu0 %v1446
        %1779 = vmatprep.subr.mxu0 %v1449
        %1780 = vmatpush1.msra.mxu0 %v1448
        %1781 = vmatprep.subr.mxu0 %v1451
        %1782 = vmatpush1.msra.mxu0 %v1450
        %1783 = vmatprep.subr.mxu0 %v1453
        %1784 = vmatpush1.msra.mxu0 %v1452
        %1785 = vmatprep.subr.mxu0 %v1455
        %1786 = vmatpush1.msra.mxu0 %v1454
        %1787 = vmatprep.subr.mxu0 %v1457
        %1788 = vmatpush1.msra.mxu0 %v1456
        %1789 = vmatprep.subr.mxu0 %v1459
        %1790 = vmatpush1.msra.mxu0 %v1458
        %1791 = vmatprep.subr.mxu0 %v1461
        %1792 = vmatpush1.msra.mxu0 %v1460
        %1793 = vmatprep.subr.mxu0 %v1463
        %1794 = vmatpush1.msra.mxu0 %v1462
        %1795 = vmatprep.subr.mxu0 %v1465
        %1796 = vmatpush1.msra.mxu0 %v1464
        %1797 = vmatprep.subr.mxu0 %v1467
        %1798 = vmatpush1.msra.mxu0 %v1466
        %1799 = vmatprep.subr.mxu0 %v1469
        %1800 = vmatpush1.msra.mxu0 %v1468
        %1801 = vmatprep.subr.mxu0 %v1471
        %1802 = vmatpush1.msra.mxu0 %v1470
        %1803 = vmatprep.subr.mxu0 0.0
        %1804 = vmatpush1.msra.mxu0 0.0
        %1805 = vmatprep.subr.mxu0 0.0
        %1806 = vmatpush1.msra.mxu0 0.0
        %1807 = vmatprep.subr.mxu0 0.0
        %1808 = vmatpush1.msra.mxu0 0.0
        %1809 = vmatprep.subr.mxu0 0.0
        %1810 = vmatpush1.msra.mxu0 0.0
        %1811 = vmatprep.subr.mxu0 0.0
        %1812 = vmatpush1.msra.mxu0 0.0
        %1813 = vmatprep.subr.mxu0 0.0
        %1814 = vmatpush1.msra.mxu0 0.0
        %1815 = vmatprep.subr.mxu0 0.0
        %1816 = vmatpush1.msra.mxu0 0.0
        %1817 = vmatprep.subr.mxu0 0.0
        %1818 = vmatpush1.msra.mxu0 0.0
        %1819 = vmatprep.subr.mxu0 0.0
        %1820 = vmatpush1.msra.mxu0 0.0
        %1821 = vmatprep.subr.mxu0 0.0
        %1822 = vmatpush1.msra.mxu0 0.0
        %1823 = vmatprep.subr.mxu0 0.0
        %1824 = vmatpush1.msra.mxu0 0.0
        %1825 = vmatprep.subr.mxu0 0.0
        %1826 = vmatpush1.msra.mxu0 0.0
        %1827 = vmatprep.subr.mxu0 0.0
        %1828 = vmatpush1.msra.mxu0 0.0
        %1829 = vmatprep.subr.mxu0 0.0
        %1830 = vmatpush1.msra.mxu0 0.0
        %1831 = vmatprep.mubr.f32.mxu0 %v1694
        %1832 = vmatmul.mubr.f32.gmra.mrb[0].mxu0 %v1690
        %v1833 = vpop.f32.mrb[0].mxu0
        %v1834 = vadd.f32 %v1763, %v1833
        %v1835 = vpop.f32.mrb[0].mxu0
        %v1836 = vadd.f32 %v1765, %v1835
        %1837 = vdwg.mxu0
        %1838 = vmatprep.subr.mxu0 %v1575
        %1839 = vmatpush1.msra.mxu0 %v1574
        %1840 = vmatprep.subr.mxu0 %v1577
        %1841 = vmatpush1.msra.mxu0 %v1576
        %1842 = vmatprep.subr.mxu0 %v1579
        %1843 = vmatpush1.msra.mxu0 %v1578
        %1844 = vmatprep.subr.mxu0 %v1581
        %1845 = vmatpush1.msra.mxu0 %v1580
        %1846 = vmatprep.subr.mxu0 %v1583
        %1847 = vmatpush1.msra.mxu0 %v1582
        %1848 = vmatprep.subr.mxu0 %v1585
        %1849 = vmatpush1.msra.mxu0 %v1584
        %1850 = vmatprep.subr.mxu0 %v1587
        %1851 = vmatpush1.msra.mxu0 %v1586
        %1852 = vmatprep.subr.mxu0 %v1589
        %1853 = vmatpush1.msra.mxu0 %v1588
        %1854 = vmatprep.subr.mxu0 %v1591
        %1855 = vmatpush1.msra.mxu0 %v1590
        %1856 = vmatprep.subr.mxu0 %v1593
        %1857 = vmatpush1.msra.mxu0 %v1592
        %1858 = vmatprep.subr.mxu0 %v1595
        %1859 = vmatpush1.msra.mxu0 %v1594
        %1860 = vmatprep.subr.mxu0 %v1597
        %1861 = vmatpush1.msra.mxu0 %v1596
        %1862 = vmatprep.subr.mxu0 %v1599
        %1863 = vmatpush1.msra.mxu0 %v1598
        %1864 = vmatprep.subr.mxu0 %v1601
        %1865 = vmatpush1.msra.mxu0 %v1600
        %1866 = vmatprep.subr.mxu0 %v1603
        %1867 = vmatpush1.msra.mxu0 %v1602
        %1868 = vmatprep.subr.mxu0 %v1605
        %1869 = vmatpush1.msra.mxu0 %v1604
        %1870 = vmatprep.subr.mxu0 %v1607
        %1871 = vmatpush1.msra.mxu0 %v1606
        %1872 = vmatprep.subr.mxu0 %v1609
        %1873 = vmatpush1.msra.mxu0 %v1608
        %1874 = vmatprep.subr.mxu0 %v1611
        %1875 = vmatpush1.msra.mxu0 %v1610
        %1876 = vmatprep.subr.mxu0 %v1613
        %1877 = vmatpush1.msra.mxu0 %v1612
        %1878 = vmatprep.subr.mxu0 %v1615
        %1879 = vmatpush1.msra.mxu0 %v1614
        %1880 = vmatprep.subr.mxu0 %v1617
        %1881 = vmatpush1.msra.mxu0 %v1616
        %1882 = vmatprep.subr.mxu0 %v1619
        %1883 = vmatpush1.msra.mxu0 %v1618
        %1884 = vmatprep.subr.mxu0 %v1621
        %1885 = vmatpush1.msra.mxu0 %v1620
        %1886 = vmatprep.subr.mxu0 %v1623
        %1887 = vmatpush1.msra.mxu0 %v1622
        %1888 = vmatprep.subr.mxu0 %v1625
        %1889 = vmatpush1.msra.mxu0 %v1624
        %1890 = vmatprep.subr.mxu0 %v1627
        %1891 = vmatpush1.msra.mxu0 %v1626
        %1892 = vmatprep.subr.mxu0 %v1629
        %1893 = vmatpush1.msra.mxu0 %v1628
        %1894 = vmatprep.subr.mxu0 %v1631
        %1895 = vmatpush1.msra.mxu0 %v1630
        %1896 = vmatprep.subr.mxu0 %v1633
        %1897 = vmatpush1.msra.mxu0 %v1632
        %1898 = vmatprep.subr.mxu0 %v1635
        %1899 = vmatpush1.msra.mxu0 %v1634
        %1900 = vmatprep.subr.mxu0 %v1637
        %1901 = vmatpush1.msra.mxu0 %v1636
        %1902 = vmatprep.mubr.f32.mxu0 %v1689
        %1903 = vmatmul.mubr.f32.gmra.mrb[0].mxu0 %v1688
        %v1904 = vpop.f32.mrb[0].mxu0
        %v1905 = vadd.f32 0.0, %v1904
        %v1906 = vpop.f32.mrb[0].mxu0
        %v1907 = vadd.f32 0.0, %v1906
        %1908 = vdwg.mxu0
        %1909 = vmatprep.subr.mxu0 %v1639
        %1910 = vmatpush1.msra.mxu0 %v1638
        %1911 = vmatprep.subr.mxu0 %v1641
        %1912 = vmatpush1.msra.mxu0 %v1640
        %1913 = vmatprep.subr.mxu0 %v1643
        %1914 = vmatpush1.msra.mxu0 %v1642
        %1915 = vmatprep.subr.mxu0 %v1645
        %1916 = vmatpush1.msra.mxu0 %v1644
        %1917 = vmatprep.subr.mxu0 %v1647
        %1918 = vmatpush1.msra.mxu0 %v1646
        %1919 = vmatprep.subr.mxu0 %v1649
        %1920 = vmatpush1.msra.mxu0 %v1648
        %1921 = vmatprep.subr.mxu0 %v1651
        %1922 = vmatpush1.msra.mxu0 %v1650
        %1923 = vmatprep.subr.mxu0 %v1653
        %1924 = vmatpush1.msra.mxu0 %v1652
        %1925 = vmatprep.subr.mxu0 %v1655
        %1926 = vmatpush1.msra.mxu0 %v1654
        %1927 = vmatprep.subr.mxu0 %v1657
        %1928 = vmatpush1.msra.mxu0 %v1656
        %1929 = vmatprep.subr.mxu0 %v1659
        %1930 = vmatpush1.msra.mxu0 %v1658
        %1931 = vmatprep.subr.mxu0 %v1661
        %1932 = vmatpush1.msra.mxu0 %v1660
        %1933 = vmatprep.subr.mxu0 %v1663
        %1934 = vmatpush1.msra.mxu0 %v1662
        %1935 = vmatprep.subr.mxu0 %v1665
        %1936 = vmatpush1.msra.mxu0 %v1664
        %1937 = vmatprep.subr.mxu0 %v1667
        %1938 = vmatpush1.msra.mxu0 %v1666
        %1939 = vmatprep.subr.mxu0 %v1669
        %1940 = vmatpush1.msra.mxu0 %v1668
        %1941 = vmatprep.subr.mxu0 %v1671
        %1942 = vmatpush1.msra.mxu0 %v1670
        %1943 = vmatprep.subr.mxu0 %v1673
        %1944 = vmatpush1.msra.mxu0 %v1672
        %1945 = vmatprep.subr.mxu0 0.0
        %1946 = vmatpush1.msra.mxu0 0.0
        %1947 = vmatprep.subr.mxu0 0.0
        %1948 = vmatpush1.msra.mxu0 0.0
        %1949 = vmatprep.subr.mxu0 0.0
        %1950 = vmatpush1.msra.mxu0 0.0
        %1951 = vmatprep.subr.mxu0 0.0
        %1952 = vmatpush1.msra.mxu0 0.0
        %1953 = vmatprep.subr.mxu0 0.0
        %1954 = vmatpush1.msra.mxu0 0.0
        %1955 = vmatprep.subr.mxu0 0.0
        %1956 = vmatpush1.msra.mxu0 0.0
        %1957 = vmatprep.subr.mxu0 0.0
        %1958 = vmatpush1.msra.mxu0 0.0
        %1959 = vmatprep.subr.mxu0 0.0
        %1960 = vmatpush1.msra.mxu0 0.0
        %1961 = vmatprep.subr.mxu0 0.0
        %1962 = vmatpush1.msra.mxu0 0.0
        %1963 = vmatprep.subr.mxu0 0.0
        %1964 = vmatpush1.msra.mxu0 0.0
        %1965 = vmatprep.subr.mxu0 0.0
        %1966 = vmatpush1.msra.mxu0 0.0
        %1967 = vmatprep.subr.mxu0 0.0
        %1968 = vmatpush1.msra.mxu0 0.0
        %1969 = vmatprep.subr.mxu0 0.0
        %1970 = vmatpush1.msra.mxu0 0.0
        %1971 = vmatprep.subr.mxu0 0.0
        %1972 = vmatpush1.msra.mxu0 0.0
        %1973 = vmatprep.mubr.f32.mxu0 %v1694
        %1974 = vmatmul.mubr.f32.gmra.mrb[0].mxu0 %v1690
        %v1975 = vpop.f32.mrb[0].mxu0
        %v1976 = vadd.f32 %v1905, %v1975
        %v1977 = vpop.f32.mrb[0].mxu0
        %v1978 = vadd.f32 %v1907, %v1977
        %1979 = vdwg.mxu0
        %v1980 = vmax.f32 %v1834, %v1976
        %v1981 = vmax.f32 %v1836, %v1978
        %v1982 = vmax.f32 %v1008, %v1210
        %v1983 = vmax.f32 %v1009, %v1211
        %v1984 = vmax.f32 %v1010, %v1212
        %v1985 = vmax.f32 %v1011, %v1213
        %v1986 = vadd.f32 %v1982, %v1682
        %v1987 = vadd.f32 %v1983, %v1682
        %v1988 = vadd.f32 %v1984, %v1682
        %v1989 = vadd.f32 %v1985, %v1682
        %v1990 = vmax.f32 %v1986, 0.0
        %v1991 = vmax.f32 %v1987, 0.0
        %v1992 = vmax.f32 %v1988, 0.0
        %v1993 = vmax.f32 %v1989, 0.0
        %v1995 = vsel %vm1692, %v1993, 0
        %1997 = vmatprep.subr.mxu0 %v1373
        %1998 = vmatpush1.msra.mxu0 %v1372
        %1999 = vmatprep.subr.mxu0 %v1375
        %2000 = vmatpush1.msra.mxu0 %v1374
        %2001 = vmatprep.subr.mxu0 %v1377
        %2002 = vmatpush1.msra.mxu0 %v1376
        %2003 = vmatprep.subr.mxu0 %v1379
        %2004 = vmatpush1.msra.mxu0 %v1378
        %2005 = vmatprep.subr.mxu0 %v1381
        %2006 = vmatpush1.msra.mxu0 %v1380
        %2007 = vmatprep.subr.mxu0 %v1383
        %2008 = vmatpush1.msra.mxu0 %v1382
        %2009 = vmatprep.subr.mxu0 %v1385
        %2010 = vmatpush1.msra.mxu0 %v1384
        %2011 = vmatprep.subr.mxu0 %v1387
        %2012 = vmatpush1.msra.mxu0 %v1386
        %2013 = vmatprep.subr.mxu0 %v1389
        %2014 = vmatpush1.msra.mxu0 %v1388
        %2015 = vmatprep.subr.mxu0 %v1391
        %2016 = vmatpush1.msra.mxu0 %v1390
        %2017 = vmatprep.subr.mxu0 %v1393
        %2018 = vmatpush1.msra.mxu0 %v1392
        %2019 = vmatprep.subr.mxu0 %v1395
        %2020 = vmatpush1.msra.mxu0 %v1394
        %2021 = vmatprep.subr.mxu0 %v1397
        %2022 = vmatpush1.msra.mxu0 %v1396
        %2023 = vmatprep.subr.mxu0 %v1399
        %2024 = vmatpush1.msra.mxu0 %v1398
        %2025 = vmatprep.subr.mxu0 %v1401
        %2026 = vmatpush1.msra.mxu0 %v1400
        %2027 = vmatprep.subr.mxu0 %v1403
        %2028 = vmatpush1.msra.mxu0 %v1402
        %2029 = vmatprep.subr.mxu0 %v1405
        %2030 = vmatpush1.msra.mxu0 %v1404
        %2031 = vmatprep.subr.mxu0 %v1407
        %2032 = vmatpush1.msra.mxu0 %v1406
        %2033 = vmatprep.subr.mxu0 %v1409
        %2034 = vmatpush1.msra.mxu0 %v1408
        %2035 = vmatprep.subr.mxu0 %v1411
        %2036 = vmatpush1.msra.mxu0 %v1410
        %2037 = vmatprep.subr.mxu0 %v1413
        %2038 = vmatpush1.msra.mxu0 %v1412
        %2039 = vmatprep.subr.mxu0 %v1415
        %2040 = vmatpush1.msra.mxu0 %v1414
        %2041 = vmatprep.subr.mxu0 %v1417
        %2042 = vmatpush1.msra.mxu0 %v1416
        %2043 = vmatprep.subr.mxu0 %v1419
        %2044 = vmatpush1.msra.mxu0 %v1418
        %2045 = vmatprep.subr.mxu0 %v1421
        %2046 = vmatpush1.msra.mxu0 %v1420
        %2047 = vmatprep.subr.mxu0 %v1423
        %2048 = vmatpush1.msra.mxu0 %v1422
        %2049 = vmatprep.subr.mxu0 %v1425
        %2050 = vmatpush1.msra.mxu0 %v1424
        %2051 = vmatprep.subr.mxu0 %v1427
        %2052 = vmatpush1.msra.mxu0 %v1426
        %2053 = vmatprep.subr.mxu0 %v1429
        %2054 = vmatpush1.msra.mxu0 %v1428
        %2055 = vmatprep.subr.mxu0 %v1431
        %2056 = vmatpush1.msra.mxu0 %v1430
        %2057 = vmatprep.subr.mxu0 %v1433
        %2058 = vmatpush1.msra.mxu0 %v1432
        %2059 = vmatprep.subr.mxu0 %v1435
        %2060 = vmatpush1.msra.mxu0 %v1434
        %2061 = vmatprep.mubr.f32.mxu0 %v1991
        %2062 = vmatmul.mubr.f32.gmra.mrb[0].mxu0 %v1990
        %v2063 = vpop.f32.mrb[0].mxu0
        %v2064 = vadd.f32 0.0, %v2063
        %v2065 = vpop.f32.mrb[0].mxu0
        %v2066 = vadd.f32 0.0, %v2065
        %2067 = vdwg.mxu0
        %2068 = vmatprep.subr.mxu0 %v1437
        %2069 = vmatpush1.msra.mxu0 %v1436
        %2070 = vmatprep.subr.mxu0 %v1439
        %2071 = vmatpush1.msra.mxu0 %v1438
        %2072 = vmatprep.subr.mxu0 %v1441
        %2073 = vmatpush1.msra.mxu0 %v1440
        %2074 = vmatprep.subr.mxu0 %v1443
        %2075 = vmatpush1.msra.mxu0 %v1442
        %2076 = vmatprep.subr.mxu0 %v1445
        %2077 = vmatpush1.msra.mxu0 %v1444
        %2078 = vmatprep.subr.mxu0 %v1447
        %2079 = vmatpush1.msra.mxu0 %v1446
        %2080 = vmatprep.subr.mxu0 %v1449
        %2081 = vmatpush1.msra.mxu0 %v1448
        %2082 = vmatprep.subr.mxu0 %v1451
        %2083 = vmatpush1.msra.mxu0 %v1450
        %2084 = vmatprep.subr.mxu0 %v1453
        %2085 = vmatpush1.msra.mxu0 %v1452
        %2086 = vmatprep.subr.mxu0 %v1455
        %2087 = vmatpush1.msra.mxu0 %v1454
        %2088 = vmatprep.subr.mxu0 %v1457
        %2089 = vmatpush1.msra.mxu0 %v1456
        %2090 = vmatprep.subr.mxu0 %v1459
        %2091 = vmatpush1.msra.mxu0 %v1458
        %2092 = vmatprep.subr.mxu0 %v1461
        %2093 = vmatpush1.msra.mxu0 %v1460
        %2094 = vmatprep.subr.mxu0 %v1463
        %2095 = vmatpush1.msra.mxu0 %v1462
        %2096 = vmatprep.subr.mxu0 %v1465
        %2097 = vmatpush1.msra.mxu0 %v1464
        %2098 = vmatprep.subr.mxu0 %v1467
        %2099 = vmatpush1.msra.mxu0 %v1466
        %2100 = vmatprep.subr.mxu0 %v1469
        %2101 = vmatpush1.msra.mxu0 %v1468
        %2102 = vmatprep.subr.mxu0 %v1471
        %2103 = vmatpush1.msra.mxu0 %v1470
        %2104 = vmatprep.subr.mxu0 0.0
        %2105 = vmatpush1.msra.mxu0 0.0
        %2106 = vmatprep.subr.mxu0 0.0
        %2107 = vmatpush1.msra.mxu0 0.0
        %2108 = vmatprep.subr.mxu0 0.0
        %2109 = vmatpush1.msra.mxu0 0.0
        %2110 = vmatprep.subr.mxu0 0.0
        %2111 = vmatpush1.msra.mxu0 0.0
        %2112 = vmatprep.subr.mxu0 0.0
        %2113 = vmatpush1.msra.mxu0 0.0
        %2114 = vmatprep.subr.mxu0 0.0
        %2115 = vmatpush1.msra.mxu0 0.0
        %2116 = vmatprep.subr.mxu0 0.0
        %2117 = vmatpush1.msra.mxu0 0.0
        %2118 = vmatprep.subr.mxu0 0.0
        %2119 = vmatpush1.msra.mxu0 0.0
        %2120 = vmatprep.subr.mxu0 0.0
        %2121 = vmatpush1.msra.mxu0 0.0
        %2122 = vmatprep.subr.mxu0 0.0
        %2123 = vmatpush1.msra.mxu0 0.0
        %2124 = vmatprep.subr.mxu0 0.0
        %2125 = vmatpush1.msra.mxu0 0.0
        %2126 = vmatprep.subr.mxu0 0.0
        %2127 = vmatpush1.msra.mxu0 0.0
        %2128 = vmatprep.subr.mxu0 0.0
        %2129 = vmatpush1.msra.mxu0 0.0
        %2130 = vmatprep.subr.mxu0 0.0
        %2131 = vmatpush1.msra.mxu0 0.0
        %2132 = vmatprep.mubr.f32.mxu0 %v1995
        %2133 = vmatmul.mubr.f32.gmra.mrb[0].mxu0 %v1992
        %v2134 = vpop.f32.mrb[0].mxu0
        %v2135 = vadd.f32 %v2064, %v2134
        %v2136 = vpop.f32.mrb[0].mxu0
        %v2137 = vadd.f32 %v2066, %v2136
        %2138 = vdwg.mxu0
        %2139 = vmatprep.subr.mxu0 %v1575
        %2140 = vmatpush1.msra.mxu0 %v1574
        %2141 = vmatprep.subr.mxu0 %v1577
        %2142 = vmatpush1.msra.mxu0 %v1576
        %2143 = vmatprep.subr.mxu0 %v1579
        %2144 = vmatpush1.msra.mxu0 %v1578
        %2145 = vmatprep.subr.mxu0 %v1581
        %2146 = vmatpush1.msra.mxu0 %v1580
        %2147 = vmatprep.subr.mxu0 %v1583
        %2148 = vmatpush1.msra.mxu0 %v1582
        %2149 = vmatprep.subr.mxu0 %v1585
        %2150 = vmatpush1.msra.mxu0 %v1584
        %2151 = vmatprep.subr.mxu0 %v1587
        %2152 = vmatpush1.msra.mxu0 %v1586
        %2153 = vmatprep.subr.mxu0 %v1589
        %2154 = vmatpush1.msra.mxu0 %v1588
        %2155 = vmatprep.subr.mxu0 %v1591
        %2156 = vmatpush1.msra.mxu0 %v1590
        %2157 = vmatprep.subr.mxu0 %v1593
        %2158 = vmatpush1.msra.mxu0 %v1592
        %2159 = vmatprep.subr.mxu0 %v1595
        %2160 = vmatpush1.msra.mxu0 %v1594
        %2161 = vmatprep.subr.mxu0 %v1597
        %2162 = vmatpush1.msra.mxu0 %v1596
        %2163 = vmatprep.subr.mxu0 %v1599
        %2164 = vmatpush1.msra.mxu0 %v1598
        %2165 = vmatprep.subr.mxu0 %v1601
        %2166 = vmatpush1.msra.mxu0 %v1600
        %2167 = vmatprep.subr.mxu0 %v1603
        %2168 = vmatpush1.msra.mxu0 %v1602
        %2169 = vmatprep.subr.mxu0 %v1605
        %2170 = vmatpush1.msra.mxu0 %v1604
        %2171 = vmatprep.subr.mxu0 %v1607
        %2172 = vmatpush1.msra.mxu0 %v1606
        %2173 = vmatprep.subr.mxu0 %v1609
        %2174 = vmatpush1.msra.mxu0 %v1608
        %2175 = vmatprep.subr.mxu0 %v1611
        %2176 = vmatpush1.msra.mxu0 %v1610
        %2177 = vmatprep.subr.mxu0 %v1613
        %2178 = vmatpush1.msra.mxu0 %v1612
        %2179 = vmatprep.subr.mxu0 %v1615
        %2180 = vmatpush1.msra.mxu0 %v1614
        %2181 = vmatprep.subr.mxu0 %v1617
        %2182 = vmatpush1.msra.mxu0 %v1616
        %2183 = vmatprep.subr.mxu0 %v1619
        %2184 = vmatpush1.msra.mxu0 %v1618
        %2185 = vmatprep.subr.mxu0 %v1621
        %2186 = vmatpush1.msra.mxu0 %v1620
        %2187 = vmatprep.subr.mxu0 %v1623
        %2188 = vmatpush1.msra.mxu0 %v1622
        %2189 = vmatprep.subr.mxu0 %v1625
        %2190 = vmatpush1.msra.mxu0 %v1624
        %2191 = vmatprep.subr.mxu0 %v1627
        %2192 = vmatpush1.msra.mxu0 %v1626
        %2193 = vmatprep.subr.mxu0 %v1629
        %2194 = vmatpush1.msra.mxu0 %v1628
        %2195 = vmatprep.subr.mxu0 %v1631
        %2196 = vmatpush1.msra.mxu0 %v1630
        %2197 = vmatprep.subr.mxu0 %v1633
        %2198 = vmatpush1.msra.mxu0 %v1632
        %2199 = vmatprep.subr.mxu0 %v1635
        %2200 = vmatpush1.msra.mxu0 %v1634
        %2201 = vmatprep.subr.mxu0 %v1637
        %2202 = vmatpush1.msra.mxu0 %v1636
        %2203 = vmatprep.mubr.f32.mxu0 %v1991
        %2204 = vmatmul.mubr.f32.gmra.mrb[0].mxu0 %v1990
        %v2205 = vpop.f32.mrb[0].mxu0
        %v2206 = vadd.f32 0.0, %v2205
        %v2207 = vpop.f32.mrb[0].mxu0
        %v2208 = vadd.f32 0.0, %v2207
        %2209 = vdwg.mxu0
        %2210 = vmatprep.subr.mxu0 %v1639
        %2211 = vmatpush1.msra.mxu0 %v1638
        %2212 = vmatprep.subr.mxu0 %v1641
        %2213 = vmatpush1.msra.mxu0 %v1640
        %2214 = vmatprep.subr.mxu0 %v1643
        %2215 = vmatpush1.msra.mxu0 %v1642
        %2216 = vmatprep.subr.mxu0 %v1645
        %2217 = vmatpush1.msra.mxu0 %v1644
        %2218 = vmatprep.subr.mxu0 %v1647
        %2219 = vmatpush1.msra.mxu0 %v1646
        %2220 = vmatprep.subr.mxu0 %v1649
        %2221 = vmatpush1.msra.mxu0 %v1648
        %2222 = vmatprep.subr.mxu0 %v1651
        %2223 = vmatpush1.msra.mxu0 %v1650
        %2224 = vmatprep.subr.mxu0 %v1653
        %2225 = vmatpush1.msra.mxu0 %v1652
        %2226 = vmatprep.subr.mxu0 %v1655
        %2227 = vmatpush1.msra.mxu0 %v1654
        %2228 = vmatprep.subr.mxu0 %v1657
        %2229 = vmatpush1.msra.mxu0 %v1656
        %2230 = vmatprep.subr.mxu0 %v1659
        %2231 = vmatpush1.msra.mxu0 %v1658
        %2232 = vmatprep.subr.mxu0 %v1661
        %2233 = vmatpush1.msra.mxu0 %v1660
        %2234 = vmatprep.subr.mxu0 %v1663
        %2235 = vmatpush1.msra.mxu0 %v1662
        %2236 = vmatprep.subr.mxu0 %v1665
        %2237 = vmatpush1.msra.mxu0 %v1664
        %2238 = vmatprep.subr.mxu0 %v1667
        %2239 = vmatpush1.msra.mxu0 %v1666
        %2240 = vmatprep.subr.mxu0 %v1669
        %2241 = vmatpush1.msra.mxu0 %v1668
        %2242 = vmatprep.subr.mxu0 %v1671
        %2243 = vmatpush1.msra.mxu0 %v1670
        %2244 = vmatprep.subr.mxu0 %v1673
        %2245 = vmatpush1.msra.mxu0 %v1672
        %2246 = vmatprep.subr.mxu0 0.0
        %2247 = vmatpush1.msra.mxu0 0.0
        %2248 = vmatprep.subr.mxu0 0.0
        %2249 = vmatpush1.msra.mxu0 0.0
        %2250 = vmatprep.subr.mxu0 0.0
        %2251 = vmatpush1.msra.mxu0 0.0
        %2252 = vmatprep.subr.mxu0 0.0
        %2253 = vmatpush1.msra.mxu0 0.0
        %2254 = vmatprep.subr.mxu0 0.0
        %2255 = vmatpush1.msra.mxu0 0.0
        %2256 = vmatprep.subr.mxu0 0.0
        %2257 = vmatpush1.msra.mxu0 0.0
        %2258 = vmatprep.subr.mxu0 0.0
        %2259 = vmatpush1.msra.mxu0 0.0
        %2260 = vmatprep.subr.mxu0 0.0
        %2261 = vmatpush1.msra.mxu0 0.0
        %2262 = vmatprep.subr.mxu0 0.0
        %2263 = vmatpush1.msra.mxu0 0.0
        %2264 = vmatprep.subr.mxu0 0.0
        %2265 = vmatpush1.msra.mxu0 0.0
        %2266 = vmatprep.subr.mxu0 0.0
        %2267 = vmatpush1.msra.mxu0 0.0
        %2268 = vmatprep.subr.mxu0 0.0
        %2269 = vmatpush1.msra.mxu0 0.0
        %2270 = vmatprep.subr.mxu0 0.0
        %2271 = vmatpush1.msra.mxu0 0.0
        %2272 = vmatprep.subr.mxu0 0.0
        %2273 = vmatpush1.msra.mxu0 0.0
        %2274 = vmatprep.mubr.f32.mxu0 %v1995
        %2275 = vmatmul.mubr.f32.gmra.mrb[0].mxu0 %v1992
        %v2276 = vpop.f32.mrb[0].mxu0
        %v2277 = vadd.f32 %v2206, %v2276
        %v2278 = vpop.f32.mrb[0].mxu0
        %v2279 = vadd.f32 %v2208, %v2278
        %2280 = vdwg.mxu0
        %v2281 = vmax.f32 %v2135, %v2277
        %v2282 = vmax.f32 %v2137, %v2279
        %s2283 = scalar_lea.vmem %s3, 48
        %v2284 = vld [vmem:[%s2283] sm:$0xff]
        %v2285 = vld [vmem:[%s2283 + $0x8] sm:$0xff]
        %s2286 = scalar_lea.vmem %s3, 64
        %v2287 = vld [vmem:[%s2286] sm:$0xff]
        %v2288 = vld [vmem:[%s2286 + $0x8] sm:$0xff]
        %2291 = vrot.lane.b32.xlu0 %v1980, 127
        %v2292 = vpop.permute.xlu0 %2291
        %2293 = vrot.lane.b32.xlu0 %v1981, 127
        %v2294 = vpop.permute.xlu0 %2293
        %v2295 = vsel %vm384, %v2292, %v2294
        %vm2298 = vcmask 64512
        %v2300 = vsel %vm2298, %v2287, 0
        %v2303 = vsel %vm2298, %v2288, 0
        %2305 = vmatprep.subr.mxu0 %v2294
        %2306 = vmatpush1.msra.mxu0 %v2295
        %2307 = vmatprep.subr.mxu0 0.0
        %2308 = vmatpush1.msra.mxu0 0.0
        %2309 = vmatprep.subr.mxu0 0.0
        %2310 = vmatpush1.msra.mxu0 0.0
        %2311 = vmatprep.subr.mxu0 0.0
        %2312 = vmatpush1.msra.mxu0 0.0
        %2313 = vmatprep.subr.mxu0 0.0
        %2314 = vmatpush1.msra.mxu0 0.0
        %2315 = vmatprep.subr.mxu0 0.0
        %2316 = vmatpush1.msra.mxu0 0.0
        %2317 = vmatprep.subr.mxu0 0.0
        %2318 = vmatpush1.msra.mxu0 0.0
        %2319 = vmatprep.subr.mxu0 0.0
        %2320 = vmatpush1.msra.mxu0 0.0
        %2321 = vmatprep.subr.mxu0 0.0
        %2322 = vmatpush1.msra.mxu0 0.0
        %2323 = vmatprep.subr.mxu0 0.0
        %2324 = vmatpush1.msra.mxu0 0.0
        %2325 = vmatprep.subr.mxu0 0.0
        %2326 = vmatpush1.msra.mxu0 0.0
        %2327 = vmatprep.subr.mxu0 0.0
        %2328 = vmatpush1.msra.mxu0 0.0
        %2329 = vmatprep.subr.mxu0 0.0
        %2330 = vmatpush1.msra.mxu0 0.0
        %2331 = vmatprep.subr.mxu0 0.0
        %2332 = vmatpush1.msra.mxu0 0.0
        %2333 = vmatprep.subr.mxu0 0.0
        %2334 = vmatpush1.msra.mxu0 0.0
        %2335 = vmatprep.subr.mxu0 0.0
        %2336 = vmatpush1.msra.mxu0 0.0
        %2337 = vmatprep.subr.mxu0 0.0
        %2338 = vmatpush1.msra.mxu0 0.0
        %2339 = vmatprep.subr.mxu0 0.0
        %2340 = vmatpush1.msra.mxu0 0.0
        %2341 = vmatprep.subr.mxu0 0.0
        %2342 = vmatpush1.msra.mxu0 0.0
        %2343 = vmatprep.subr.mxu0 0.0
        %2344 = vmatpush1.msra.mxu0 0.0
        %2345 = vmatprep.subr.mxu0 0.0
        %2346 = vmatpush1.msra.mxu0 0.0
        %2347 = vmatprep.subr.mxu0 0.0
        %2348 = vmatpush1.msra.mxu0 0.0
        %2349 = vmatprep.subr.mxu0 0.0
        %2350 = vmatpush1.msra.mxu0 0.0
        %2351 = vmatprep.subr.mxu0 0.0
        %2352 = vmatpush1.msra.mxu0 0.0
        %2353 = vmatprep.subr.mxu0 0.0
        %2354 = vmatpush1.msra.mxu0 0.0
        %2355 = vmatprep.subr.mxu0 0.0
        %2356 = vmatpush1.msra.mxu0 0.0
        %2357 = vmatprep.subr.mxu0 0.0
        %2358 = vmatpush1.msra.mxu0 0.0
        %2359 = vmatprep.subr.mxu0 0.0
        %2360 = vmatpush1.msra.mxu0 0.0
        %2361 = vmatprep.subr.mxu0 0.0
        %2362 = vmatpush1.msra.mxu0 0.0
        %2363 = vmatprep.subr.mxu0 0.0
        %2364 = vmatpush1.msra.mxu0 0.0
        %2365 = vmatprep.subr.mxu0 0.0
        %2366 = vmatpush1.msra.mxu0 0.0
        %2367 = vmatprep.subr.mxu0 0.0
        %2368 = vmatpush1.msra.mxu0 0.0
        %2369 = vmatprep.mubr.f32.mxu0 0.0
        %2370 = vmatmul.mubr.f32.gmra.mrb[0].mxu0 %v2300
        %v2371 = vpop.f32.mrb[0].mxu0
        %v2372 = vadd.f32 0.0, %v2371
        %v2373 = vpop.f32.mrb[0].mxu0
        %v2374 = vadd.f32 0.0, %v2373
        %2375 = vmatprep.mubr.f32.mxu0 0.0
        %2376 = vmatmul.mubr.f32.gmra.mrb[0].mxu0 %v2303
        %v2377 = vpop.f32.mrb[0].mxu0
        %v2378 = vadd.f32 0.0, %v2377
        %v2379 = vpop.f32.mrb[0].mxu0
        %v2380 = vadd.f32 0.0, %v2379
        %2381 = vdwg.mxu0
        %v2383 = vsel %vm2298, %v2284, 0
        %v2386 = vsel %vm2298, %v2285, 0
        %2388 = vmatprep.subr.mxu0 %v1981
        %2389 = vmatpush1.msra.mxu0 %v1980
        %2390 = vmatprep.subr.mxu0 0.0
        %2391 = vmatpush1.msra.mxu0 0.0
        %2392 = vmatprep.subr.mxu0 0.0
        %2393 = vmatpush1.msra.mxu0 0.0
        %2394 = vmatprep.subr.mxu0 0.0
        %2395 = vmatpush1.msra.mxu0 0.0
        %2396 = vmatprep.subr.mxu0 0.0
        %2397 = vmatpush1.msra.mxu0 0.0
        %2398 = vmatprep.subr.mxu0 0.0
        %2399 = vmatpush1.msra.mxu0 0.0
        %2400 = vmatprep.subr.mxu0 0.0
        %2401 = vmatpush1.msra.mxu0 0.0
        %2402 = vmatprep.subr.mxu0 0.0
        %2403 = vmatpush1.msra.mxu0 0.0
        %2404 = vmatprep.subr.mxu0 0.0
        %2405 = vmatpush1.msra.mxu0 0.0
        %2406 = vmatprep.subr.mxu0 0.0
        %2407 = vmatpush1.msra.mxu0 0.0
        %2408 = vmatprep.subr.mxu0 0.0
        %2409 = vmatpush1.msra.mxu0 0.0
        %2410 = vmatprep.subr.mxu0 0.0
        %2411 = vmatpush1.msra.mxu0 0.0
        %2412 = vmatprep.subr.mxu0 0.0
        %2413 = vmatpush1.msra.mxu0 0.0
        %2414 = vmatprep.subr.mxu0 0.0
        %2415 = vmatpush1.msra.mxu0 0.0
        %2416 = vmatprep.subr.mxu0 0.0
        %2417 = vmatpush1.msra.mxu0 0.0
        %2418 = vmatprep.subr.mxu0 0.0
        %2419 = vmatpush1.msra.mxu0 0.0
        %2420 = vmatprep.subr.mxu0 0.0
        %2421 = vmatpush1.msra.mxu0 0.0
        %2422 = vmatprep.subr.mxu0 0.0
        %2423 = vmatpush1.msra.mxu0 0.0
        %2424 = vmatprep.subr.mxu0 0.0
        %2425 = vmatpush1.msra.mxu0 0.0
        %2426 = vmatprep.subr.mxu0 0.0
        %2427 = vmatpush1.msra.mxu0 0.0
        %2428 = vmatprep.subr.mxu0 0.0
        %2429 = vmatpush1.msra.mxu0 0.0
        %2430 = vmatprep.subr.mxu0 0.0
        %2431 = vmatpush1.msra.mxu0 0.0
        %2432 = vmatprep.subr.mxu0 0.0
        %2433 = vmatpush1.msra.mxu0 0.0
        %2434 = vmatprep.subr.mxu0 0.0
        %2435 = vmatpush1.msra.mxu0 0.0
        %2436 = vmatprep.subr.mxu0 0.0
        %2437 = vmatpush1.msra.mxu0 0.0
        %2438 = vmatprep.subr.mxu0 0.0
        %2439 = vmatpush1.msra.mxu0 0.0
        %2440 = vmatprep.subr.mxu0 0.0
        %2441 = vmatpush1.msra.mxu0 0.0
        %2442 = vmatprep.subr.mxu0 0.0
        %2443 = vmatpush1.msra.mxu0 0.0
        %2444 = vmatprep.subr.mxu0 0.0
        %2445 = vmatpush1.msra.mxu0 0.0
        %2446 = vmatprep.subr.mxu0 0.0
        %2447 = vmatpush1.msra.mxu0 0.0
        %2448 = vmatprep.subr.mxu0 0.0
        %2449 = vmatpush1.msra.mxu0 0.0
        %2450 = vmatprep.subr.mxu0 0.0
        %2451 = vmatpush1.msra.mxu0 0.0
        %2452 = vmatprep.mubr.f32.mxu0 0.0
        %2453 = vmatmul.mubr.f32.gmra.mrb[0].mxu0 %v2383
        %v2454 = vpop.f32.mrb[0].mxu0
        %v2455 = vadd.f32 %v2372, %v2454
        %v2456 = vpop.f32.mrb[0].mxu0
        %v2457 = vadd.f32 %v2374, %v2456
        %2458 = vmatprep.mubr.f32.mxu0 0.0
        %2459 = vmatmul.mubr.f32.gmra.mrb[0].mxu0 %v2386
        %v2460 = vpop.f32.mrb[0].mxu0
        %v2461 = vadd.f32 %v2378, %v2460
        %v2462 = vpop.f32.mrb[0].mxu0
        %v2463 = vadd.f32 %v2380, %v2462
        %2464 = vdwg.mxu0
        %s2465 = scalar_lea.vmem %s3, 80
        %v2466 = vld [vmem:[%s2465] sm:$0xff]
        %v2467 = vld [vmem:[%s2465 + $0x8] sm:$0xff]
        %2468 = vrot.lane.b32.xlu0 %v1980, 126
        %v2469 = vpop.permute.xlu0 %2468
        %2470 = vrot.lane.b32.xlu0 %v1981, 126
        %v2471 = vpop.permute.xlu0 %2470
        %v2472 = vsel %vm416, %v2469, %v2471
        %v2476 = vsel %vm2298, %v2466, 0
        %v2479 = vsel %vm2298, %v2467, 0
        %2481 = vmatprep.subr.mxu0 %v2471
        %2482 = vmatpush1.msra.mxu0 %v2472
        %2483 = vmatprep.subr.mxu0 0.0
        %2484 = vmatpush1.msra.mxu0 0.0
        %2485 = vmatprep.subr.mxu0 0.0
        %2486 = vmatpush1.msra.mxu0 0.0
        %2487 = vmatprep.subr.mxu0 0.0
        %2488 = vmatpush1.msra.mxu0 0.0
        %2489 = vmatprep.subr.mxu0 0.0
        %2490 = vmatpush1.msra.mxu0 0.0
        %2491 = vmatprep.subr.mxu0 0.0
        %2492 = vmatpush1.msra.mxu0 0.0
        %2493 = vmatprep.subr.mxu0 0.0
        %2494 = vmatpush1.msra.mxu0 0.0
        %2495 = vmatprep.subr.mxu0 0.0
        %2496 = vmatpush1.msra.mxu0 0.0
        %2497 = vmatprep.subr.mxu0 0.0
        %2498 = vmatpush1.msra.mxu0 0.0
        %2499 = vmatprep.subr.mxu0 0.0
        %2500 = vmatpush1.msra.mxu0 0.0
        %2501 = vmatprep.subr.mxu0 0.0
        %2502 = vmatpush1.msra.mxu0 0.0
        %2503 = vmatprep.subr.mxu0 0.0
        %2504 = vmatpush1.msra.mxu0 0.0
        %2505 = vmatprep.subr.mxu0 0.0
        %2506 = vmatpush1.msra.mxu0 0.0
        %2507 = vmatprep.subr.mxu0 0.0
        %2508 = vmatpush1.msra.mxu0 0.0
        %2509 = vmatprep.subr.mxu0 0.0
        %2510 = vmatpush1.msra.mxu0 0.0
        %2511 = vmatprep.subr.mxu0 0.0
        %2512 = vmatpush1.msra.mxu0 0.0
        %2513 = vmatprep.subr.mxu0 0.0
        %2514 = vmatpush1.msra.mxu0 0.0
        %2515 = vmatprep.subr.mxu0 0.0
        %2516 = vmatpush1.msra.mxu0 0.0
        %2517 = vmatprep.subr.mxu0 0.0
        %2518 = vmatpush1.msra.mxu0 0.0
        %2519 = vmatprep.subr.mxu0 0.0
        %2520 = vmatpush1.msra.mxu0 0.0
        %2521 = vmatprep.subr.mxu0 0.0
        %2522 = vmatpush1.msra.mxu0 0.0
        %2523 = vmatprep.subr.mxu0 0.0
        %2524 = vmatpush1.msra.mxu0 0.0
        %2525 = vmatprep.subr.mxu0 0.0
        %2526 = vmatpush1.msra.mxu0 0.0
        %2527 = vmatprep.subr.mxu0 0.0
        %2528 = vmatpush1.msra.mxu0 0.0
        %2529 = vmatprep.subr.mxu0 0.0
        %2530 = vmatpush1.msra.mxu0 0.0
        %2531 = vmatprep.subr.mxu0 0.0
        %2532 = vmatpush1.msra.mxu0 0.0
        %2533 = vmatprep.subr.mxu0 0.0
        %2534 = vmatpush1.msra.mxu0 0.0
        %2535 = vmatprep.subr.mxu0 0.0
        %2536 = vmatpush1.msra.mxu0 0.0
        %2537 = vmatprep.subr.mxu0 0.0
        %2538 = vmatpush1.msra.mxu0 0.0
        %2539 = vmatprep.subr.mxu0 0.0
        %2540 = vmatpush1.msra.mxu0 0.0
        %2541 = vmatprep.subr.mxu0 0.0
        %2542 = vmatpush1.msra.mxu0 0.0
        %2543 = vmatprep.subr.mxu0 0.0
        %2544 = vmatpush1.msra.mxu0 0.0
        %2545 = vmatprep.mubr.f32.mxu0 0.0
        %2546 = vmatmul.mubr.f32.gmra.mrb[0].mxu0 %v2476
        %v2547 = vpop.f32.mrb[0].mxu0
        %v2548 = vadd.f32 0.0, %v2547
        %v2549 = vpop.f32.mrb[0].mxu0
        %v2550 = vadd.f32 0.0, %v2549
        %2551 = vmatprep.mubr.f32.mxu0 0.0
        %2552 = vmatmul.mubr.f32.gmra.mrb[0].mxu0 %v2479
        %v2553 = vpop.f32.mrb[0].mxu0
        %v2554 = vadd.f32 0.0, %v2553
        %v2555 = vpop.f32.mrb[0].mxu0
        %v2556 = vadd.f32 0.0, %v2555
        %2557 = vdwg.mxu0
        %v2558 = vadd.f32 %v2455, %v2548
        %v2559 = vadd.f32 %v2457, %v2550
        %v2560 = vadd.f32 %v2461, %v2554
        %v2561 = vadd.f32 %v2463, %v2556
        %s2562 = scalar_lea.vmem %s3, 96
        %v2563 = vld [vmem:[%s2562] sm:$0xff]
        %v2564 = vld [vmem:[%s2562 + $0x8] sm:$0xff]
        %v2566 = vsel %vm2298, %v2563, 0
        %v2569 = vsel %vm2298, %v2564, 0
        %2571 = vmatprep.subr.mxu0 %v2282
        %2572 = vmatpush1.msra.mxu0 %v2281
        %2573 = vmatprep.subr.mxu0 0.0
        %2574 = vmatpush1.msra.mxu0 0.0
        %2575 = vmatprep.subr.mxu0 0.0
        %2576 = vmatpush1.msra.mxu0 0.0
        %2577 = vmatprep.subr.mxu0 0.0
        %2578 = vmatpush1.msra.mxu0 0.0
        %2579 = vmatprep.subr.mxu0 0.0
        %2580 = vmatpush1.msra.mxu0 0.0
        %2581 = vmatprep.subr.mxu0 0.0
        %2582 = vmatpush1.msra.mxu0 0.0
        %2583 = vmatprep.subr.mxu0 0.0
        %2584 = vmatpush1.msra.mxu0 0.0
        %2585 = vmatprep.subr.mxu0 0.0
        %2586 = vmatpush1.msra.mxu0 0.0
        %2587 = vmatprep.subr.mxu0 0.0
        %2588 = vmatpush1.msra.mxu0 0.0
        %2589 = vmatprep.subr.mxu0 0.0
        %2590 = vmatpush1.msra.mxu0 0.0
        %2591 = vmatprep.subr.mxu0 0.0
        %2592 = vmatpush1.msra.mxu0 0.0
        %2593 = vmatprep.subr.mxu0 0.0
        %2594 = vmatpush1.msra.mxu0 0.0
        %2595 = vmatprep.subr.mxu0 0.0
        %2596 = vmatpush1.msra.mxu0 0.0
        %2597 = vmatprep.subr.mxu0 0.0
        %2598 = vmatpush1.msra.mxu0 0.0
        %2599 = vmatprep.subr.mxu0 0.0
        %2600 = vmatpush1.msra.mxu0 0.0
        %2601 = vmatprep.subr.mxu0 0.0
        %2602 = vmatpush1.msra.mxu0 0.0
        %2603 = vmatprep.subr.mxu0 0.0
        %2604 = vmatpush1.msra.mxu0 0.0
        %2605 = vmatprep.subr.mxu0 0.0
        %2606 = vmatpush1.msra.mxu0 0.0
        %2607 = vmatprep.subr.mxu0 0.0
        %2608 = vmatpush1.msra.mxu0 0.0
        %2609 = vmatprep.subr.mxu0 0.0
        %2610 = vmatpush1.msra.mxu0 0.0
        %2611 = vmatprep.subr.mxu0 0.0
        %2612 = vmatpush1.msra.mxu0 0.0
        %2613 = vmatprep.subr.mxu0 0.0
        %2614 = vmatpush1.msra.mxu0 0.0
        %2615 = vmatprep.subr.mxu0 0.0
        %2616 = vmatpush1.msra.mxu0 0.0
        %2617 = vmatprep.subr.mxu0 0.0
        %2618 = vmatpush1.msra.mxu0 0.0
        %2619 = vmatprep.subr.mxu0 0.0
        %2620 = vmatpush1.msra.mxu0 0.0
        %2621 = vmatprep.subr.mxu0 0.0
        %2622 = vmatpush1.msra.mxu0 0.0
        %2623 = vmatprep.subr.mxu0 0.0
        %2624 = vmatpush1.msra.mxu0 0.0
        %2625 = vmatprep.subr.mxu0 0.0
        %2626 = vmatpush1.msra.mxu0 0.0
        %2627 = vmatprep.subr.mxu0 0.0
        %2628 = vmatpush1.msra.mxu0 0.0
        %2629 = vmatprep.subr.mxu0 0.0
        %2630 = vmatpush1.msra.mxu0 0.0
        %2631 = vmatprep.subr.mxu0 0.0
        %2632 = vmatpush1.msra.mxu0 0.0
        %2633 = vmatprep.subr.mxu0 0.0
        %2634 = vmatpush1.msra.mxu0 0.0
        %2635 = vmatprep.mubr.f32.mxu0 0.0
        %2636 = vmatmul.mubr.f32.gmra.mrb[0].mxu0 %v2566
        %v2637 = vpop.f32.mrb[0].mxu0
        %v2638 = vadd.f32 0.0, %v2637
        %v2639 = vpop.f32.mrb[0].mxu0
        %v2640 = vadd.f32 0.0, %v2639
        %2641 = vmatprep.mubr.f32.mxu0 0.0
        %2642 = vmatmul.mubr.f32.gmra.mrb[0].mxu0 %v2569
        %v2643 = vpop.f32.mrb[0].mxu0
        %v2644 = vadd.f32 0.0, %v2643
        %v2645 = vpop.f32.mrb[0].mxu0
        %v2646 = vadd.f32 0.0, %v2645
        %2647 = vdwg.mxu0
        %v2648 = vadd.f32 %v2558, %v2638
        %v2649 = vadd.f32 %v2559, %v2640
        %v2650 = vadd.f32 %v2560, %v2644
        %v2651 = vadd.f32 %v2561, %v2646
        %s2652 = scalar_lea.vmem %s3, 112
        %v2653 = vld [vmem:[%s2652] sm:$0xff]
        %v2654 = vld [vmem:[%s2652 + $0x8] sm:$0xff]
        %2657 = vrot.lane.b32.xlu0 %v2281, 127
        %v2658 = vpop.permute.xlu0 %2657
        %2659 = vrot.lane.b32.xlu0 %v2282, 127
        %v2660 = vpop.permute.xlu0 %2659
        %v2661 = vsel %vm384, %v2658, %v2660
        %v2665 = vsel %vm2298, %v2653, 0
        %v2668 = vsel %vm2298, %v2654, 0
        %2670 = vmatprep.subr.mxu0 %v2660
        %2671 = vmatpush1.msra.mxu0 %v2661
        %2672 = vmatprep.subr.mxu0 0.0
        %2673 = vmatpush1.msra.mxu0 0.0
        %2674 = vmatprep.subr.mxu0 0.0
        %2675 = vmatpush1.msra.mxu0 0.0
        %2676 = vmatprep.subr.mxu0 0.0
        %2677 = vmatpush1.msra.mxu0 0.0
        %2678 = vmatprep.subr.mxu0 0.0
        %2679 = vmatpush1.msra.mxu0 0.0
        %2680 = vmatprep.subr.mxu0 0.0
        %2681 = vmatpush1.msra.mxu0 0.0
        %2682 = vmatprep.subr.mxu0 0.0
        %2683 = vmatpush1.msra.mxu0 0.0
        %2684 = vmatprep.subr.mxu0 0.0
        %2685 = vmatpush1.msra.mxu0 0.0
        %2686 = vmatprep.subr.mxu0 0.0
        %2687 = vmatpush1.msra.mxu0 0.0
        %2688 = vmatprep.subr.mxu0 0.0
        %2689 = vmatpush1.msra.mxu0 0.0
        %2690 = vmatprep.subr.mxu0 0.0
        %2691 = vmatpush1.msra.mxu0 0.0
        %2692 = vmatprep.subr.mxu0 0.0
        %2693 = vmatpush1.msra.mxu0 0.0
        %2694 = vmatprep.subr.mxu0 0.0
        %2695 = vmatpush1.msra.mxu0 0.0
        %2696 = vmatprep.subr.mxu0 0.0
        %2697 = vmatpush1.msra.mxu0 0.0
        %2698 = vmatprep.subr.mxu0 0.0
        %2699 = vmatpush1.msra.mxu0 0.0
        %2700 = vmatprep.subr.mxu0 0.0
        %2701 = vmatpush1.msra.mxu0 0.0
        %2702 = vmatprep.subr.mxu0 0.0
        %2703 = vmatpush1.msra.mxu0 0.0
        %2704 = vmatprep.subr.mxu0 0.0
        %2705 = vmatpush1.msra.mxu0 0.0
        %2706 = vmatprep.subr.mxu0 0.0
        %2707 = vmatpush1.msra.mxu0 0.0
        %2708 = vmatprep.subr.mxu0 0.0
        %2709 = vmatpush1.msra.mxu0 0.0
        %2710 = vmatprep.subr.mxu0 0.0
        %2711 = vmatpush1.msra.mxu0 0.0
        %2712 = vmatprep.subr.mxu0 0.0
        %2713 = vmatpush1.msra.mxu0 0.0
        %2714 = vmatprep.subr.mxu0 0.0
        %2715 = vmatpush1.msra.mxu0 0.0
        %2716 = vmatprep.subr.mxu0 0.0
        %2717 = vmatpush1.msra.mxu0 0.0
        %2718 = vmatprep.subr.mxu0 0.0
        %2719 = vmatpush1.msra.mxu0 0.0
        %2720 = vmatprep.subr.mxu0 0.0
        %2721 = vmatpush1.msra.mxu0 0.0
        %2722 = vmatprep.subr.mxu0 0.0
        %2723 = vmatpush1.msra.mxu0 0.0
        %2724 = vmatprep.subr.mxu0 0.0
        %2725 = vmatpush1.msra.mxu0 0.0
        %2726 = vmatprep.subr.mxu0 0.0
        %2727 = vmatpush1.msra.mxu0 0.0
        %2728 = vmatprep.subr.mxu0 0.0
        %2729 = vmatpush1.msra.mxu0 0.0
        %2730 = vmatprep.subr.mxu0 0.0
        %2731 = vmatpush1.msra.mxu0 0.0
        %2732 = vmatprep.subr.mxu0 0.0
        %2733 = vmatpush1.msra.mxu0 0.0
        %2734 = vmatprep.mubr.f32.mxu0 0.0
        %2735 = vmatmul.mubr.f32.gmra.mrb[0].mxu0 %v2665
        %v2736 = vpop.f32.mrb[0].mxu0
        %v2737 = vadd.f32 0.0, %v2736
        %v2738 = vpop.f32.mrb[0].mxu0
        %v2739 = vadd.f32 0.0, %v2738
        %2740 = vmatprep.mubr.f32.mxu0 0.0
        %2741 = vmatmul.mubr.f32.gmra.mrb[0].mxu0 %v2668
        %v2742 = vpop.f32.mrb[0].mxu0
        %v2743 = vadd.f32 0.0, %v2742
        %v2744 = vpop.f32.mrb[0].mxu0
        %v2745 = vadd.f32 0.0, %v2744
        %2746 = vdwg.mxu0
        %v2747 = vadd.f32 %v2648, %v2737
        %v2748 = vadd.f32 %v2649, %v2739
        %v2749 = vadd.f32 %v2650, %v2743
        %v2750 = vadd.f32 %v2651, %v2745
        %s2751 = scalar_lea.vmem %s3, 128
        %v2752 = vld [vmem:[%s2751] sm:$0xff]
        %v2753 = vld [vmem:[%s2751 + $0x8] sm:$0xff]
        %2754 = vrot.lane.b32.xlu0 %v2281, 126
        %v2755 = vpop.permute.xlu0 %2754
        %2756 = vrot.lane.b32.xlu0 %v2282, 126
        %v2757 = vpop.permute.xlu0 %2756
        %v2758 = vsel %vm416, %v2755, %v2757
        %v2762 = vsel %vm2298, %v2752, 0
        %v2765 = vsel %vm2298, %v2753, 0
        %2767 = vmatprep.subr.mxu0 %v2757
        %2768 = vmatpush1.msra.mxu0 %v2758
        %2769 = vmatprep.subr.mxu0 0.0
        %2770 = vmatpush1.msra.mxu0 0.0
        %2771 = vmatprep.subr.mxu0 0.0
        %2772 = vmatpush1.msra.mxu0 0.0
        %2773 = vmatprep.subr.mxu0 0.0
        %2774 = vmatpush1.msra.mxu0 0.0
        %2775 = vmatprep.subr.mxu0 0.0
        %2776 = vmatpush1.msra.mxu0 0.0
        %2777 = vmatprep.subr.mxu0 0.0
        %2778 = vmatpush1.msra.mxu0 0.0
        %2779 = vmatprep.subr.mxu0 0.0
        %2780 = vmatpush1.msra.mxu0 0.0
        %2781 = vmatprep.subr.mxu0 0.0
        %2782 = vmatpush1.msra.mxu0 0.0
        %2783 = vmatprep.subr.mxu0 0.0
        %2784 = vmatpush1.msra.mxu0 0.0
        %2785 = vmatprep.subr.mxu0 0.0
        %2786 = vmatpush1.msra.mxu0 0.0
        %2787 = vmatprep.subr.mxu0 0.0
        %2788 = vmatpush1.msra.mxu0 0.0
        %2789 = vmatprep.subr.mxu0 0.0
        %2790 = vmatpush1.msra.mxu0 0.0
        %2791 = vmatprep.subr.mxu0 0.0
        %2792 = vmatpush1.msra.mxu0 0.0
        %2793 = vmatprep.subr.mxu0 0.0
        %2794 = vmatpush1.msra.mxu0 0.0
        %2795 = vmatprep.subr.mxu0 0.0
        %2796 = vmatpush1.msra.mxu0 0.0
        %2797 = vmatprep.subr.mxu0 0.0
        %2798 = vmatpush1.msra.mxu0 0.0
        %2799 = vmatprep.subr.mxu0 0.0
        %2800 = vmatpush1.msra.mxu0 0.0
        %2801 = vmatprep.subr.mxu0 0.0
        %2802 = vmatpush1.msra.mxu0 0.0
        %2803 = vmatprep.subr.mxu0 0.0
        %2804 = vmatpush1.msra.mxu0 0.0
        %2805 = vmatprep.subr.mxu0 0.0
        %2806 = vmatpush1.msra.mxu0 0.0
        %2807 = vmatprep.subr.mxu0 0.0
        %2808 = vmatpush1.msra.mxu0 0.0
        %2809 = vmatprep.subr.mxu0 0.0
        %2810 = vmatpush1.msra.mxu0 0.0
        %2811 = vmatprep.subr.mxu0 0.0
        %2812 = vmatpush1.msra.mxu0 0.0
        %2813 = vmatprep.subr.mxu0 0.0
        %2814 = vmatpush1.msra.mxu0 0.0
        %2815 = vmatprep.subr.mxu0 0.0
        %2816 = vmatpush1.msra.mxu0 0.0
        %2817 = vmatprep.subr.mxu0 0.0
        %2818 = vmatpush1.msra.mxu0 0.0
        %2819 = vmatprep.subr.mxu0 0.0
        %2820 = vmatpush1.msra.mxu0 0.0
        %2821 = vmatprep.subr.mxu0 0.0
        %2822 = vmatpush1.msra.mxu0 0.0
        %2823 = vmatprep.subr.mxu0 0.0
        %2824 = vmatpush1.msra.mxu0 0.0
        %2825 = vmatprep.subr.mxu0 0.0
        %2826 = vmatpush1.msra.mxu0 0.0
        %2827 = vmatprep.subr.mxu0 0.0
        %2828 = vmatpush1.msra.mxu0 0.0
        %2829 = vmatprep.subr.mxu0 0.0
        %2830 = vmatpush1.msra.mxu0 0.0
        %2831 = vmatprep.mubr.f32.mxu0 0.0
        %2832 = vmatmul.mubr.f32.gmra.mrb[0].mxu0 %v2762
        %v2833 = vpop.f32.mrb[0].mxu0
        %v2834 = vadd.f32 0.0, %v2833
        %v2835 = vpop.f32.mrb[0].mxu0
        %v2836 = vadd.f32 0.0, %v2835
        %2837 = vmatprep.mubr.f32.mxu0 0.0
        %2838 = vmatmul.mubr.f32.gmra.mrb[0].mxu0 %v2765
        %v2839 = vpop.f32.mrb[0].mxu0
        %v2840 = vadd.f32 0.0, %v2839
        %v2841 = vpop.f32.mrb[0].mxu0
        %v2842 = vadd.f32 0.0, %v2841
        %2843 = vdwg.mxu0
        %v2844 = vadd.f32 %v2747, %v2834
        %v2845 = vadd.f32 %v2748, %v2836
        %v2846 = vadd.f32 %v2749, %v2840
        %v2847 = vadd.f32 %v2750, %v2842
        %v2848 = vld [vmem:[%s3] sm:$0xff]
        %v2849 = vld [vmem:[%s3 + $0x8] sm:$0xff]
        %s2850 = scalar_lea.vmem %s3, 16
        %v2851 = vld [vmem:[%s2850] sm:$0xff]
        %v2852 = vld [vmem:[%s2850 + $0x8] sm:$0xff]
        %v2854 = vsel %vm2298, %v2851, 0
        %v2857 = vsel %vm2298, %v2852, 0
        %2859 = vmatprep.subr.mxu0 %v2294
        %2860 = vmatpush1.msra.mxu0 %v2295
        %2861 = vmatprep.subr.mxu0 0.0
        %2862 = vmatpush1.msra.mxu0 0.0
        %2863 = vmatprep.subr.mxu0 0.0
        %2864 = vmatpush1.msra.mxu0 0.0
        %2865 = vmatprep.subr.mxu0 0.0
        %2866 = vmatpush1.msra.mxu0 0.0
        %2867 = vmatprep.subr.mxu0 0.0
        %2868 = vmatpush1.msra.mxu0 0.0
        %2869 = vmatprep.subr.mxu0 0.0
        %2870 = vmatpush1.msra.mxu0 0.0
        %2871 = vmatprep.subr.mxu0 0.0
        %2872 = vmatpush1.msra.mxu0 0.0
        %2873 = vmatprep.subr.mxu0 0.0
        %2874 = vmatpush1.msra.mxu0 0.0
        %2875 = vmatprep.subr.mxu0 0.0
        %2876 = vmatpush1.msra.mxu0 0.0
        %2877 = vmatprep.subr.mxu0 0.0
        %2878 = vmatpush1.msra.mxu0 0.0
        %2879 = vmatprep.subr.mxu0 0.0
        %2880 = vmatpush1.msra.mxu0 0.0
        %2881 = vmatprep.subr.mxu0 0.0
        %2882 = vmatpush1.msra.mxu0 0.0
        %2883 = vmatprep.subr.mxu0 0.0
        %2884 = vmatpush1.msra.mxu0 0.0
        %2885 = vmatprep.subr.mxu0 0.0
        %2886 = vmatpush1.msra.mxu0 0.0
        %2887 = vmatprep.subr.mxu0 0.0
        %2888 = vmatpush1.msra.mxu0 0.0
        %2889 = vmatprep.subr.mxu0 0.0
        %2890 = vmatpush1.msra.mxu0 0.0
        %2891 = vmatprep.subr.mxu0 0.0
        %2892 = vmatpush1.msra.mxu0 0.0
        %2893 = vmatprep.subr.mxu0 0.0
        %2894 = vmatpush1.msra.mxu0 0.0
        %2895 = vmatprep.subr.mxu0 0.0
        %2896 = vmatpush1.msra.mxu0 0.0
        %2897 = vmatprep.subr.mxu0 0.0
        %2898 = vmatpush1.msra.mxu0 0.0
        %2899 = vmatprep.subr.mxu0 0.0
        %2900 = vmatpush1.msra.mxu0 0.0
        %2901 = vmatprep.subr.mxu0 0.0
        %2902 = vmatpush1.msra.mxu0 0.0
        %2903 = vmatprep.subr.mxu0 0.0
        %2904 = vmatpush1.msra.mxu0 0.0
        %2905 = vmatprep.subr.mxu0 0.0
        %2906 = vmatpush1.msra.mxu0 0.0
        %2907 = vmatprep.subr.mxu0 0.0
        %2908 = vmatpush1.msra.mxu0 0.0
        %2909 = vmatprep.subr.mxu0 0.0
        %2910 = vmatpush1.msra.mxu0 0.0
        %2911 = vmatprep.subr.mxu0 0.0
        %2912 = vmatpush1.msra.mxu0 0.0
        %2913 = vmatprep.subr.mxu0 0.0
        %2914 = vmatpush1.msra.mxu0 0.0
        %2915 = vmatprep.subr.mxu0 0.0
        %2916 = vmatpush1.msra.mxu0 0.0
        %2917 = vmatprep.subr.mxu0 0.0
        %2918 = vmatpush1.msra.mxu0 0.0
        %2919 = vmatprep.subr.mxu0 0.0
        %2920 = vmatpush1.msra.mxu0 0.0
        %2921 = vmatprep.subr.mxu0 0.0
        %2922 = vmatpush1.msra.mxu0 0.0
        %2923 = vmatprep.mubr.f32.mxu0 0.0
        %2924 = vmatmul.mubr.f32.gmra.mrb[0].mxu0 %v2854
        %v2925 = vpop.f32.mrb[0].mxu0
        %v2926 = vadd.f32 0.0, %v2925
        %v2927 = vpop.f32.mrb[0].mxu0
        %v2928 = vadd.f32 0.0, %v2927
        %2929 = vmatprep.mubr.f32.mxu0 0.0
        %2930 = vmatmul.mubr.f32.gmra.mrb[0].mxu0 %v2857
        %v2931 = vpop.f32.mrb[0].mxu0
        %v2932 = vadd.f32 0.0, %v2931
        %v2933 = vpop.f32.mrb[0].mxu0
        %v2934 = vadd.f32 0.0, %v2933
        %2935 = vdwg.mxu0
        %v2937 = vsel %vm2298, %v2848, 0
        %v2940 = vsel %vm2298, %v2849, 0
        %2942 = vmatprep.subr.mxu0 %v1981
        %2943 = vmatpush1.msra.mxu0 %v1980
        %2944 = vmatprep.subr.mxu0 0.0
        %2945 = vmatpush1.msra.mxu0 0.0
        %2946 = vmatprep.subr.mxu0 0.0
        %2947 = vmatpush1.msra.mxu0 0.0
        %2948 = vmatprep.subr.mxu0 0.0
        %2949 = vmatpush1.msra.mxu0 0.0
        %2950 = vmatprep.subr.mxu0 0.0
        %2951 = vmatpush1.msra.mxu0 0.0
        %2952 = vmatprep.subr.mxu0 0.0
        %2953 = vmatpush1.msra.mxu0 0.0
        %2954 = vmatprep.subr.mxu0 0.0
        %2955 = vmatpush1.msra.mxu0 0.0
        %2956 = vmatprep.subr.mxu0 0.0
        %2957 = vmatpush1.msra.mxu0 0.0
        %2958 = vmatprep.subr.mxu0 0.0
        %2959 = vmatpush1.msra.mxu0 0.0
        %2960 = vmatprep.subr.mxu0 0.0
        %2961 = vmatpush1.msra.mxu0 0.0
        %2962 = vmatprep.subr.mxu0 0.0
        %2963 = vmatpush1.msra.mxu0 0.0
        %2964 = vmatprep.subr.mxu0 0.0
        %2965 = vmatpush1.msra.mxu0 0.0
        %2966 = vmatprep.subr.mxu0 0.0
        %2967 = vmatpush1.msra.mxu0 0.0
        %2968 = vmatprep.subr.mxu0 0.0
        %2969 = vmatpush1.msra.mxu0 0.0
        %2970 = vmatprep.subr.mxu0 0.0
        %2971 = vmatpush1.msra.mxu0 0.0
        %2972 = vmatprep.subr.mxu0 0.0
        %2973 = vmatpush1.msra.mxu0 0.0
        %2974 = vmatprep.subr.mxu0 0.0
        %2975 = vmatpush1.msra.mxu0 0.0
        %2976 = vmatprep.subr.mxu0 0.0
        %2977 = vmatpush1.msra.mxu0 0.0
        %2978 = vmatprep.subr.mxu0 0.0
        %2979 = vmatpush1.msra.mxu0 0.0
        %2980 = vmatprep.subr.mxu0 0.0
        %2981 = vmatpush1.msra.mxu0 0.0
        %2982 = vmatprep.subr.mxu0 0.0
        %2983 = vmatpush1.msra.mxu0 0.0
        %2984 = vmatprep.subr.mxu0 0.0
        %2985 = vmatpush1.msra.mxu0 0.0
        %2986 = vmatprep.subr.mxu0 0.0
        %2987 = vmatpush1.msra.mxu0 0.0
        %2988 = vmatprep.subr.mxu0 0.0
        %2989 = vmatpush1.msra.mxu0 0.0
        %2990 = vmatprep.subr.mxu0 0.0
        %2991 = vmatpush1.msra.mxu0 0.0
        %2992 = vmatprep.subr.mxu0 0.0
        %2993 = vmatpush1.msra.mxu0 0.0
        %2994 = vmatprep.subr.mxu0 0.0
        %2995 = vmatpush1.msra.mxu0 0.0
        %2996 = vmatprep.subr.mxu0 0.0
        %2997 = vmatpush1.msra.mxu0 0.0
        %2998 = vmatprep.subr.mxu0 0.0
        %2999 = vmatpush1.msra.mxu0 0.0
        %3000 = vmatprep.subr.mxu0 0.0
        %3001 = vmatpush1.msra.mxu0 0.0
        %3002 = vmatprep.subr.mxu0 0.0
        %3003 = vmatpush1.msra.mxu0 0.0
        %3004 = vmatprep.subr.mxu0 0.0
        %3005 = vmatpush1.msra.mxu0 0.0
        %3006 = vmatprep.mubr.f32.mxu0 0.0
        %3007 = vmatmul.mubr.f32.gmra.mrb[0].mxu0 %v2937
        %v3008 = vpop.f32.mrb[0].mxu0
        %v3009 = vadd.f32 %v2926, %v3008
        %v3010 = vpop.f32.mrb[0].mxu0
        %v3011 = vadd.f32 %v2928, %v3010
        %3012 = vmatprep.mubr.f32.mxu0 0.0
        %3013 = vmatmul.mubr.f32.gmra.mrb[0].mxu0 %v2940
        %v3014 = vpop.f32.mrb[0].mxu0
        %v3015 = vadd.f32 %v2932, %v3014
        %v3016 = vpop.f32.mrb[0].mxu0
        %v3017 = vadd.f32 %v2934, %v3016
        %3018 = vdwg.mxu0
        %s3019 = scalar_lea.vmem %s3, 32
        %v3020 = vld [vmem:[%s3019] sm:$0xff]
        %v3021 = vld [vmem:[%s3019 + $0x8] sm:$0xff]
        %v3023 = vsel %vm2298, %v3020, 0
        %v3026 = vsel %vm2298, %v3021, 0
        %3028 = vmatprep.subr.mxu0 %v2471
        %3029 = vmatpush1.msra.mxu0 %v2472
        %3030 = vmatprep.subr.mxu0 0.0
        %3031 = vmatpush1.msra.mxu0 0.0
        %3032 = vmatprep.subr.mxu0 0.0
        %3033 = vmatpush1.msra.mxu0 0.0
        %3034 = vmatprep.subr.mxu0 0.0
        %3035 = vmatpush1.msra.mxu0 0.0
        %3036 = vmatprep.subr.mxu0 0.0
        %3037 = vmatpush1.msra.mxu0 0.0
        %3038 = vmatprep.subr.mxu0 0.0
        %3039 = vmatpush1.msra.mxu0 0.0
        %3040 = vmatprep.subr.mxu0 0.0
        %3041 = vmatpush1.msra.mxu0 0.0
        %3042 = vmatprep.subr.mxu0 0.0
        %3043 = vmatpush1.msra.mxu0 0.0
        %3044 = vmatprep.subr.mxu0 0.0
        %3045 = vmatpush1.msra.mxu0 0.0
        %3046 = vmatprep.subr.mxu0 0.0
        %3047 = vmatpush1.msra.mxu0 0.0
        %3048 = vmatprep.subr.mxu0 0.0
        %3049 = vmatpush1.msra.mxu0 0.0
        %3050 = vmatprep.subr.mxu0 0.0
        %3051 = vmatpush1.msra.mxu0 0.0
        %3052 = vmatprep.subr.mxu0 0.0
        %3053 = vmatpush1.msra.mxu0 0.0
        %3054 = vmatprep.subr.mxu0 0.0
        %3055 = vmatpush1.msra.mxu0 0.0
        %3056 = vmatprep.subr.mxu0 0.0
        %3057 = vmatpush1.msra.mxu0 0.0
        %3058 = vmatprep.subr.mxu0 0.0
        %3059 = vmatpush1.msra.mxu0 0.0
        %3060 = vmatprep.subr.mxu0 0.0
        %3061 = vmatpush1.msra.mxu0 0.0
        %3062 = vmatprep.subr.mxu0 0.0
        %3063 = vmatpush1.msra.mxu0 0.0
        %3064 = vmatprep.subr.mxu0 0.0
        %3065 = vmatpush1.msra.mxu0 0.0
        %3066 = vmatprep.subr.mxu0 0.0
        %3067 = vmatpush1.msra.mxu0 0.0
        %3068 = vmatprep.subr.mxu0 0.0
        %3069 = vmatpush1.msra.mxu0 0.0
        %3070 = vmatprep.subr.mxu0 0.0
        %3071 = vmatpush1.msra.mxu0 0.0
        %3072 = vmatprep.subr.mxu0 0.0
        %3073 = vmatpush1.msra.mxu0 0.0
        %3074 = vmatprep.subr.mxu0 0.0
        %3075 = vmatpush1.msra.mxu0 0.0
        %3076 = vmatprep.subr.mxu0 0.0
        %3077 = vmatpush1.msra.mxu0 0.0
        %3078 = vmatprep.subr.mxu0 0.0
        %3079 = vmatpush1.msra.mxu0 0.0
        %3080 = vmatprep.subr.mxu0 0.0
        %3081 = vmatpush1.msra.mxu0 0.0
        %3082 = vmatprep.subr.mxu0 0.0
        %3083 = vmatpush1.msra.mxu0 0.0
        %3084 = vmatprep.subr.mxu0 0.0
        %3085 = vmatpush1.msra.mxu0 0.0
        %3086 = vmatprep.subr.mxu0 0.0
        %3087 = vmatpush1.msra.mxu0 0.0
        %3088 = vmatprep.subr.mxu0 0.0
        %3089 = vmatpush1.msra.mxu0 0.0
        %3090 = vmatprep.subr.mxu0 0.0
        %3091 = vmatpush1.msra.mxu0 0.0
        %3092 = vmatprep.mubr.f32.mxu0 0.0
        %3093 = vmatmul.mubr.f32.gmra.mrb[0].mxu0 %v3023
        %v3094 = vpop.f32.mrb[0].mxu0
        %v3095 = vadd.f32 0.0, %v3094
        %v3096 = vpop.f32.mrb[0].mxu0
        %v3097 = vadd.f32 0.0, %v3096
        %3098 = vmatprep.mubr.f32.mxu0 0.0
        %3099 = vmatmul.mubr.f32.gmra.mrb[0].mxu0 %v3026
        %v3100 = vpop.f32.mrb[0].mxu0
        %v3101 = vadd.f32 0.0, %v3100
        %v3102 = vpop.f32.mrb[0].mxu0
        %v3103 = vadd.f32 0.0, %v3102
        %3104 = vdwg.mxu0
        %v3105 = vadd.f32 %v3009, %v3095
        %v3106 = vadd.f32 %v3011, %v3097
        %v3107 = vadd.f32 %v3015, %v3101
        %v3108 = vadd.f32 %v3017, %v3103
        %3109 = vmatprep.subr.mxu0 %v2282
        %3110 = vmatpush1.msra.mxu0 %v2281
        %3111 = vmatprep.subr.mxu0 0.0
        %3112 = vmatpush1.msra.mxu0 0.0
        %3113 = vmatprep.subr.mxu0 0.0
        %3114 = vmatpush1.msra.mxu0 0.0
        %3115 = vmatprep.subr.mxu0 0.0
        %3116 = vmatpush1.msra.mxu0 0.0
        %3117 = vmatprep.subr.mxu0 0.0
        %3118 = vmatpush1.msra.mxu0 0.0
        %3119 = vmatprep.subr.mxu0 0.0
        %3120 = vmatpush1.msra.mxu0 0.0
        %3121 = vmatprep.subr.mxu0 0.0
        %3122 = vmatpush1.msra.mxu0 0.0
        %3123 = vmatprep.subr.mxu0 0.0
        %3124 = vmatpush1.msra.mxu0 0.0
        %3125 = vmatprep.subr.mxu0 0.0
        %3126 = vmatpush1.msra.mxu0 0.0
        %3127 = vmatprep.subr.mxu0 0.0
        %3128 = vmatpush1.msra.mxu0 0.0
        %3129 = vmatprep.subr.mxu0 0.0
        %3130 = vmatpush1.msra.mxu0 0.0
        %3131 = vmatprep.subr.mxu0 0.0
        %3132 = vmatpush1.msra.mxu0 0.0
        %3133 = vmatprep.subr.mxu0 0.0
        %3134 = vmatpush1.msra.mxu0 0.0
        %3135 = vmatprep.subr.mxu0 0.0
        %3136 = vmatpush1.msra.mxu0 0.0
        %3137 = vmatprep.subr.mxu0 0.0
        %3138 = vmatpush1.msra.mxu0 0.0
        %3139 = vmatprep.subr.mxu0 0.0
        %3140 = vmatpush1.msra.mxu0 0.0
        %3141 = vmatprep.subr.mxu0 0.0
        %3142 = vmatpush1.msra.mxu0 0.0
        %3143 = vmatprep.subr.mxu0 0.0
        %3144 = vmatpush1.msra.mxu0 0.0
        %3145 = vmatprep.subr.mxu0 0.0
        %3146 = vmatpush1.msra.mxu0 0.0
        %3147 = vmatprep.subr.mxu0 0.0
        %3148 = vmatpush1.msra.mxu0 0.0
        %3149 = vmatprep.subr.mxu0 0.0
        %3150 = vmatpush1.msra.mxu0 0.0
        %3151 = vmatprep.subr.mxu0 0.0
        %3152 = vmatpush1.msra.mxu0 0.0
        %3153 = vmatprep.subr.mxu0 0.0
        %3154 = vmatpush1.msra.mxu0 0.0
        %3155 = vmatprep.subr.mxu0 0.0
        %3156 = vmatpush1.msra.mxu0 0.0
        %3157 = vmatprep.subr.mxu0 0.0
        %3158 = vmatpush1.msra.mxu0 0.0
        %3159 = vmatprep.subr.mxu0 0.0
        %3160 = vmatpush1.msra.mxu0 0.0
        %3161 = vmatprep.subr.mxu0 0.0
        %3162 = vmatpush1.msra.mxu0 0.0
        %3163 = vmatprep.subr.mxu0 0.0
        %3164 = vmatpush1.msra.mxu0 0.0
        %3165 = vmatprep.subr.mxu0 0.0
        %3166 = vmatpush1.msra.mxu0 0.0
        %3167 = vmatprep.subr.mxu0 0.0
        %3168 = vmatpush1.msra.mxu0 0.0
        %3169 = vmatprep.subr.mxu0 0.0
        %3170 = vmatpush1.msra.mxu0 0.0
        %3171 = vmatprep.subr.mxu0 0.0
        %3172 = vmatpush1.msra.mxu0 0.0
        %3173 = vmatprep.mubr.f32.mxu0 0.0
        %3174 = vmatmul.mubr.f32.gmra.mrb[0].mxu0 %v2383
        %v3175 = vpop.f32.mrb[0].mxu0
        %v3176 = vadd.f32 0.0, %v3175
        %v3177 = vpop.f32.mrb[0].mxu0
        %v3178 = vadd.f32 0.0, %v3177
        %3179 = vmatprep.mubr.f32.mxu0 0.0
        %3180 = vmatmul.mubr.f32.gmra.mrb[0].mxu0 %v2386
        %v3181 = vpop.f32.mrb[0].mxu0
        %v3182 = vadd.f32 0.0, %v3181
        %v3183 = vpop.f32.mrb[0].mxu0
        %v3184 = vadd.f32 0.0, %v3183
        %3185 = vdwg.mxu0
        %v3186 = vadd.f32 %v3105, %v3176
        %v3187 = vadd.f32 %v3106, %v3178
        %v3188 = vadd.f32 %v3107, %v3182
        %v3189 = vadd.f32 %v3108, %v3184
        %3190 = vmatprep.subr.mxu0 %v2660
        %3191 = vmatpush1.msra.mxu0 %v2661
        %3192 = vmatprep.subr.mxu0 0.0
        %3193 = vmatpush1.msra.mxu0 0.0
        %3194 = vmatprep.subr.mxu0 0.0
        %3195 = vmatpush1.msra.mxu0 0.0
        %3196 = vmatprep.subr.mxu0 0.0
        %3197 = vmatpush1.msra.mxu0 0.0
        %3198 = vmatprep.subr.mxu0 0.0
        %3199 = vmatpush1.msra.mxu0 0.0
        %3200 = vmatprep.subr.mxu0 0.0
        %3201 = vmatpush1.msra.mxu0 0.0
        %3202 = vmatprep.subr.mxu0 0.0
        %3203 = vmatpush1.msra.mxu0 0.0
        %3204 = vmatprep.subr.mxu0 0.0
        %3205 = vmatpush1.msra.mxu0 0.0
        %3206 = vmatprep.subr.mxu0 0.0
        %3207 = vmatpush1.msra.mxu0 0.0
        %3208 = vmatprep.subr.mxu0 0.0
        %3209 = vmatpush1.msra.mxu0 0.0
        %3210 = vmatprep.subr.mxu0 0.0
        %3211 = vmatpush1.msra.mxu0 0.0
        %3212 = vmatprep.subr.mxu0 0.0
        %3213 = vmatpush1.msra.mxu0 0.0
        %3214 = vmatprep.subr.mxu0 0.0
        %3215 = vmatpush1.msra.mxu0 0.0
        %3216 = vmatprep.subr.mxu0 0.0
        %3217 = vmatpush1.msra.mxu0 0.0
        %3218 = vmatprep.subr.mxu0 0.0
        %3219 = vmatpush1.msra.mxu0 0.0
        %3220 = vmatprep.subr.mxu0 0.0
        %3221 = vmatpush1.msra.mxu0 0.0
        %3222 = vmatprep.subr.mxu0 0.0
        %3223 = vmatpush1.msra.mxu0 0.0
        %3224 = vmatprep.subr.mxu0 0.0
        %3225 = vmatpush1.msra.mxu0 0.0
        %3226 = vmatprep.subr.mxu0 0.0
        %3227 = vmatpush1.msra.mxu0 0.0
        %3228 = vmatprep.subr.mxu0 0.0
        %3229 = vmatpush1.msra.mxu0 0.0
        %3230 = vmatprep.subr.mxu0 0.0
        %3231 = vmatpush1.msra.mxu0 0.0
        %3232 = vmatprep.subr.mxu0 0.0
        %3233 = vmatpush1.msra.mxu0 0.0
        %3234 = vmatprep.subr.mxu0 0.0
        %3235 = vmatpush1.msra.mxu0 0.0
        %3236 = vmatprep.subr.mxu0 0.0
        %3237 = vmatpush1.msra.mxu0 0.0
        %3238 = vmatprep.subr.mxu0 0.0
        %3239 = vmatpush1.msra.mxu0 0.0
        %3240 = vmatprep.subr.mxu0 0.0
        %3241 = vmatpush1.msra.mxu0 0.0
        %3242 = vmatprep.subr.mxu0 0.0
        %3243 = vmatpush1.msra.mxu0 0.0
        %3244 = vmatprep.subr.mxu0 0.0
        %3245 = vmatpush1.msra.mxu0 0.0
        %3246 = vmatprep.subr.mxu0 0.0
        %3247 = vmatpush1.msra.mxu0 0.0
        %3248 = vmatprep.subr.mxu0 0.0
        %3249 = vmatpush1.msra.mxu0 0.0
        %3250 = vmatprep.subr.mxu0 0.0
        %3251 = vmatpush1.msra.mxu0 0.0
        %3252 = vmatprep.subr.mxu0 0.0
        %3253 = vmatpush1.msra.mxu0 0.0
        %3254 = vmatprep.mubr.f32.mxu0 0.0
        %3255 = vmatmul.mubr.f32.gmra.mrb[0].mxu0 %v2300
        %v3256 = vpop.f32.mrb[0].mxu0
        %v3257 = vadd.f32 0.0, %v3256
        %v3258 = vpop.f32.mrb[0].mxu0
        %v3259 = vadd.f32 0.0, %v3258
        %3260 = vmatprep.mubr.f32.mxu0 0.0
        %3261 = vmatmul.mubr.f32.gmra.mrb[0].mxu0 %v2303
        %v3262 = vpop.f32.mrb[0].mxu0
        %v3263 = vadd.f32 0.0, %v3262
        %v3264 = vpop.f32.mrb[0].mxu0
        %v3265 = vadd.f32 0.0, %v3264
        %3266 = vdwg.mxu0
        %v3267 = vadd.f32 %v3186, %v3257
        %v3268 = vadd.f32 %v3187, %v3259
        %v3269 = vadd.f32 %v3188, %v3263
        %v3270 = vadd.f32 %v3189, %v3265
        %3271 = vmatprep.subr.mxu0 %v2757
        %3272 = vmatpush1.msra.mxu0 %v2758
        %3273 = vmatprep.subr.mxu0 0.0
        %3274 = vmatpush1.msra.mxu0 0.0
        %3275 = vmatprep.subr.mxu0 0.0
        %3276 = vmatpush1.msra.mxu0 0.0
        %3277 = vmatprep.subr.mxu0 0.0
        %3278 = vmatpush1.msra.mxu0 0.0
        %3279 = vmatprep.subr.mxu0 0.0
        %3280 = vmatpush1.msra.mxu0 0.0
        %3281 = vmatprep.subr.mxu0 0.0
        %3282 = vmatpush1.msra.mxu0 0.0
        %3283 = vmatprep.subr.mxu0 0.0
        %3284 = vmatpush1.msra.mxu0 0.0
        %3285 = vmatprep.subr.mxu0 0.0
        %3286 = vmatpush1.msra.mxu0 0.0
        %3287 = vmatprep.subr.mxu0 0.0
        %3288 = vmatpush1.msra.mxu0 0.0
        %3289 = vmatprep.subr.mxu0 0.0
        %3290 = vmatpush1.msra.mxu0 0.0
        %3291 = vmatprep.subr.mxu0 0.0
        %3292 = vmatpush1.msra.mxu0 0.0
        %3293 = vmatprep.subr.mxu0 0.0
        %3294 = vmatpush1.msra.mxu0 0.0
        %3295 = vmatprep.subr.mxu0 0.0
        %3296 = vmatpush1.msra.mxu0 0.0
        %3297 = vmatprep.subr.mxu0 0.0
        %3298 = vmatpush1.msra.mxu0 0.0
        %3299 = vmatprep.subr.mxu0 0.0
        %3300 = vmatpush1.msra.mxu0 0.0
        %3301 = vmatprep.subr.mxu0 0.0
        %3302 = vmatpush1.msra.mxu0 0.0
        %3303 = vmatprep.subr.mxu0 0.0
        %3304 = vmatpush1.msra.mxu0 0.0
        %3305 = vmatprep.subr.mxu0 0.0
        %3306 = vmatpush1.msra.mxu0 0.0
        %3307 = vmatprep.subr.mxu0 0.0
        %3308 = vmatpush1.msra.mxu0 0.0
        %3309 = vmatprep.subr.mxu0 0.0
        %3310 = vmatpush1.msra.mxu0 0.0
        %3311 = vmatprep.subr.mxu0 0.0
        %3312 = vmatpush1.msra.mxu0 0.0
        %3313 = vmatprep.subr.mxu0 0.0
        %3314 = vmatpush1.msra.mxu0 0.0
        %3315 = vmatprep.subr.mxu0 0.0
        %3316 = vmatpush1.msra.mxu0 0.0
        %3317 = vmatprep.subr.mxu0 0.0
        %3318 = vmatpush1.msra.mxu0 0.0
        %3319 = vmatprep.subr.mxu0 0.0
        %3320 = vmatpush1.msra.mxu0 0.0
        %3321 = vmatprep.subr.mxu0 0.0
        %3322 = vmatpush1.msra.mxu0 0.0
        %3323 = vmatprep.subr.mxu0 0.0
        %3324 = vmatpush1.msra.mxu0 0.0
        %3325 = vmatprep.subr.mxu0 0.0
        %3326 = vmatpush1.msra.mxu0 0.0
        %3327 = vmatprep.subr.mxu0 0.0
        %3328 = vmatpush1.msra.mxu0 0.0
        %3329 = vmatprep.subr.mxu0 0.0
        %3330 = vmatpush1.msra.mxu0 0.0
        %3331 = vmatprep.subr.mxu0 0.0
        %3332 = vmatpush1.msra.mxu0 0.0
        %3333 = vmatprep.subr.mxu0 0.0
        %3334 = vmatpush1.msra.mxu0 0.0
        %3335 = vmatprep.mubr.f32.mxu0 0.0
        %3336 = vmatmul.mubr.f32.gmra.mrb[0].mxu0 %v2476
        %v3337 = vpop.f32.mrb[0].mxu0
        %v3338 = vadd.f32 0.0, %v3337
        %v3339 = vpop.f32.mrb[0].mxu0
        %v3340 = vadd.f32 0.0, %v3339
        %3341 = vmatprep.mubr.f32.mxu0 0.0
        %3342 = vmatmul.mubr.f32.gmra.mrb[0].mxu0 %v2479
        %v3343 = vpop.f32.mrb[0].mxu0
        %v3344 = vadd.f32 0.0, %v3343
        %v3345 = vpop.f32.mrb[0].mxu0
        %v3346 = vadd.f32 0.0, %v3345
        %3347 = vdwg.mxu0
        %v3348 = vadd.f32 %v3267, %v3338
        %v3349 = vadd.f32 %v3268, %v3340
        %v3350 = vadd.f32 %v3269, %v3344
        %v3351 = vadd.f32 %v3270, %v3346
        %vm3352 = vcmp.eq.s32.totalorder %v1215, %v1268
        %vm3353 = vcmp.eq.s32.totalorder %v1216, %v1268
        %vm3354 = vcmp.eq.s32.totalorder %v1217, %v1268
        %vm3355 = vcmp.eq.s32.totalorder %v1218, %v1268
        %vm3356 = vcmp.eq.s32.totalorder %v1219, %v1268
        %vm3357 = vcmp.eq.s32.totalorder %v1220, %v1268
        %vm3358 = vcmp.eq.s32.totalorder %v1221, %v1268
        %vm3359 = vcmp.eq.s32.totalorder %v1222, %v1268
        %vm3360 = vcmp.eq.s32.totalorder %v1223, %v1268
        %vm3361 = vcmp.eq.s32.totalorder %v1224, %v1268
        %vm3362 = vcmp.eq.s32.totalorder %v1225, %v1268
        %vm3363 = vcmp.eq.s32.totalorder %v1226, %v1268
        %vm3364 = vcmp.eq.s32.totalorder %v1227, %v1268
        %vm3365 = vcmp.eq.s32.totalorder %v1228, %v1268
        %vm3366 = vcmp.eq.s32.totalorder %v1229, %v1268
        %vm3367 = vcmp.eq.s32.totalorder %v1230, %v1268
        %vm3368 = vcmp.eq.s32.totalorder %v1231, %v1268
        %vm3369 = vcmp.eq.s32.totalorder %v1232, %v1268
        %vm3370 = vcmp.eq.s32.totalorder %v1233, %v1268
        %vm3371 = vcmp.eq.s32.totalorder %v1234, %v1268
        %vm3372 = vcmp.eq.s32.totalorder %v1235, %v1268
        %vm3373 = vcmp.eq.s32.totalorder %v1236, %v1268
        %vm3374 = vcmp.eq.s32.totalorder %v1237, %v1268
        %vm3375 = vcmp.eq.s32.totalorder %v1238, %v1268
        %vm3376 = vcmp.eq.s32.totalorder %v1239, %v1268
        %v3377 = vsel %vm3352, 1.0, 0.0
        %v3378 = vsel %vm3353, 1.0, 0.0
        %v3379 = vsel %vm3354, 1.0, 0.0
        %v3380 = vsel %vm3355, 1.0, 0.0
        %v3381 = vsel %vm3356, 1.0, 0.0
        %v3382 = vsel %vm3357, 1.0, 0.0
        %v3383 = vsel %vm3358, 1.0, 0.0
        %v3384 = vsel %vm3359, 1.0, 0.0
        %v3385 = vsel %vm3360, 1.0, 0.0
        %v3386 = vsel %vm3361, 1.0, 0.0
        %v3387 = vsel %vm3362, 1.0, 0.0
        %v3388 = vsel %vm3363, 1.0, 0.0
        %v3389 = vsel %vm3364, 1.0, 0.0
        %v3390 = vsel %vm3365, 1.0, 0.0
        %v3391 = vsel %vm3366, 1.0, 0.0
        %v3392 = vsel %vm3367, 1.0, 0.0
        %v3393 = vsel %vm3368, 1.0, 0.0
        %v3394 = vsel %vm3369, 1.0, 0.0
        %v3395 = vsel %vm3370, 1.0, 0.0
        %v3396 = vsel %vm3371, 1.0, 0.0
        %v3397 = vsel %vm3372, 1.0, 0.0
        %v3398 = vsel %vm3373, 1.0, 0.0
        %v3399 = vsel %vm3374, 1.0, 0.0
        %v3400 = vsel %vm3375, 1.0, 0.0
        %v3401 = vsel %vm3376, 1.0, 0.0
        %v3402 = vadd.s32 %v1268, 1
        %vm3403 = vcmp.eq.s32.totalorder %v1215, %v3402
        %vm3404 = vcmp.eq.s32.totalorder %v1216, %v3402
        %vm3405 = vcmp.eq.s32.totalorder %v1217, %v3402
        %vm3406 = vcmp.eq.s32.totalorder %v1218, %v3402
        %vm3407 = vcmp.eq.s32.totalorder %v1219, %v3402
        %vm3408 = vcmp.eq.s32.totalorder %v1220, %v3402
        %vm3409 = vcmp.eq.s32.totalorder %v1221, %v3402
        %vm3410 = vcmp.eq.s32.totalorder %v1222, %v3402
        %vm3411 = vcmp.eq.s32.totalorder %v1223, %v3402
        %vm3412 = vcmp.eq.s32.totalorder %v1224, %v3402
        %vm3413 = vcmp.eq.s32.totalorder %v1225, %v3402
        %vm3414 = vcmp.eq.s32.totalorder %v1226, %v3402
        %vm3415 = vcmp.eq.s32.totalorder %v1227, %v3402
        %vm3416 = vcmp.eq.s32.totalorder %v1228, %v3402
        %vm3417 = vcmp.eq.s32.totalorder %v1229, %v3402
        %vm3418 = vcmp.eq.s32.totalorder %v1230, %v3402
        %vm3419 = vcmp.eq.s32.totalorder %v1231, %v3402
        %vm3420 = vcmp.eq.s32.totalorder %v1232, %v3402
        %vm3421 = vcmp.eq.s32.totalorder %v1233, %v3402
        %vm3422 = vcmp.eq.s32.totalorder %v1234, %v3402
        %vm3423 = vcmp.eq.s32.totalorder %v1235, %v3402
        %vm3424 = vcmp.eq.s32.totalorder %v1236, %v3402
        %vm3425 = vcmp.eq.s32.totalorder %v1237, %v3402
        %vm3426 = vcmp.eq.s32.totalorder %v1238, %v3402
        %vm3427 = vcmp.eq.s32.totalorder %v1239, %v3402
        %v3428 = vsel %vm3403, 1.0, 0.0
        %v3429 = vsel %vm3404, 1.0, 0.0
        %v3430 = vsel %vm3405, 1.0, 0.0
        %v3431 = vsel %vm3406, 1.0, 0.0
        %v3432 = vsel %vm3407, 1.0, 0.0
        %v3433 = vsel %vm3408, 1.0, 0.0
        %v3434 = vsel %vm3409, 1.0, 0.0
        %v3435 = vsel %vm3410, 1.0, 0.0
        %v3436 = vsel %vm3411, 1.0, 0.0
        %v3437 = vsel %vm3412, 1.0, 0.0
        %v3438 = vsel %vm3413, 1.0, 0.0
        %v3439 = vsel %vm3414, 1.0, 0.0
        %v3440 = vsel %vm3415, 1.0, 0.0
        %v3441 = vsel %vm3416, 1.0, 0.0
        %v3442 = vsel %vm3417, 1.0, 0.0
        %v3443 = vsel %vm3418, 1.0, 0.0
        %v3444 = vsel %vm3419, 1.0, 0.0
        %v3445 = vsel %vm3420, 1.0, 0.0
        %v3446 = vsel %vm3421, 1.0, 0.0
        %v3447 = vsel %vm3422, 1.0, 0.0
        %v3448 = vsel %vm3423, 1.0, 0.0
        %v3449 = vsel %vm3424, 1.0, 0.0
        %v3450 = vsel %vm3425, 1.0, 0.0
        %v3451 = vsel %vm3426, 1.0, 0.0
        %v3452 = vsel %vm3427, 1.0, 0.0
        %v3453 = vmax.f32 %v2844, %v3348
        %v3454 = vmax.f32 %v2845, %v3349
        %v3455 = vmax.f32 %v2846, %v3350
        %v3456 = vmax.f32 %v2847, %v3351
        %vm3457 = vcmask 588800
        %v3459 = vsel %vm3457, %v3454, 0
        %v3462 = vsel %vm3457, %v3456, 0
        %3464 = vmatprep.subr.mxu0 0.0
        %3465 = vmatpush1.msra.mxu0 %v3377
        %3466 = vmatprep.subr.mxu0 0.0
        %3467 = vmatpush1.msra.mxu0 %v3378
        %3468 = vmatprep.subr.mxu0 0.0
        %3469 = vmatpush1.msra.mxu0 %v3379
        %3470 = vmatprep.subr.mxu0 0.0
        %3471 = vmatpush1.msra.mxu0 %v3380
        %3472 = vmatprep.subr.mxu0 0.0
        %3473 = vmatpush1.msra.mxu0 %v3381
        %3474 = vmatprep.subr.mxu0 0.0
        %3475 = vmatpush1.msra.mxu0 %v3382
        %3476 = vmatprep.subr.mxu0 0.0
        %3477 = vmatpush1.msra.mxu0 %v3383
        %3478 = vmatprep.subr.mxu0 0.0
        %3479 = vmatpush1.msra.mxu0 %v3384
        %3480 = vmatprep.subr.mxu0 0.0
        %3481 = vmatpush1.msra.mxu0 %v3385
        %3482 = vmatprep.subr.mxu0 0.0
        %3483 = vmatpush1.msra.mxu0 %v3386
        %3484 = vmatprep.subr.mxu0 0.0
        %3485 = vmatpush1.msra.mxu0 %v3387
        %3486 = vmatprep.subr.mxu0 0.0
        %3487 = vmatpush1.msra.mxu0 %v3388
        %3488 = vmatprep.subr.mxu0 0.0
        %3489 = vmatpush1.msra.mxu0 %v3389
        %3490 = vmatprep.subr.mxu0 0.0
        %3491 = vmatpush1.msra.mxu0 %v3390
        %3492 = vmatprep.subr.mxu0 0.0
        %3493 = vmatpush1.msra.mxu0 %v3391
        %3494 = vmatprep.subr.mxu0 0.0
        %3495 = vmatpush1.msra.mxu0 %v3392
        %3496 = vmatprep.subr.mxu0 0.0
        %3497 = vmatpush1.msra.mxu0 %v3393
        %3498 = vmatprep.subr.mxu0 0.0
        %3499 = vmatpush1.msra.mxu0 %v3394
        %3500 = vmatprep.subr.mxu0 0.0
        %3501 = vmatpush1.msra.mxu0 %v3395
        %3502 = vmatprep.subr.mxu0 0.0
        %3503 = vmatpush1.msra.mxu0 %v3396
        %3504 = vmatprep.subr.mxu0 0.0
        %3505 = vmatpush1.msra.mxu0 %v3397
        %3506 = vmatprep.subr.mxu0 0.0
        %3507 = vmatpush1.msra.mxu0 %v3398
        %3508 = vmatprep.subr.mxu0 0.0
        %3509 = vmatpush1.msra.mxu0 %v3399
        %3510 = vmatprep.subr.mxu0 0.0
        %3511 = vmatpush1.msra.mxu0 %v3400
        %3512 = vmatprep.subr.mxu0 0.0
        %3513 = vmatpush1.msra.mxu0 %v3401
        %3514 = vmatprep.subr.mxu0 0.0
        %3515 = vmatpush1.msra.mxu0 0.0
        %3516 = vmatprep.subr.mxu0 0.0
        %3517 = vmatpush1.msra.mxu0 0.0
        %3518 = vmatprep.subr.mxu0 0.0
        %3519 = vmatpush1.msra.mxu0 0.0
        %3520 = vmatprep.subr.mxu0 0.0
        %3521 = vmatpush1.msra.mxu0 0.0
        %3522 = vmatprep.subr.mxu0 0.0
        %3523 = vmatpush1.msra.mxu0 0.0
        %3524 = vmatprep.subr.mxu0 0.0
        %3525 = vmatpush1.msra.mxu0 0.0
        %3526 = vmatprep.subr.mxu0 0.0
        %3527 = vmatpush1.msra.mxu0 0.0
        %3528 = vmatprep.mubr.f32.mxu0 %v3459
        %3529 = vmatmul.mubr.f32.gmra.mrb[0].mxu0 %v3453
        %v3530 = vpop.f32.mrb[0].mxu0
        %v3531 = vadd.f32 0.0, %v3530
        %v3532 = vpop.f32.mrb[0].mxu0
        %3533 = vmatprep.mubr.f32.mxu0 %v3462
        %3534 = vmatmul.mubr.f32.gmra.mrb[0].mxu0 %v3455
        %v3535 = vpop.f32.mrb[0].mxu0
        %v3536 = vadd.f32 0.0, %v3535
        %v3537 = vpop.f32.mrb[0].mxu0
        %3538 = vdwg.mxu0
        %3539 = vmatprep.subr.mxu0 0.0
        %3540 = vmatpush1.msra.mxu0 %v3428
        %3541 = vmatprep.subr.mxu0 0.0
        %3542 = vmatpush1.msra.mxu0 %v3429
        %3543 = vmatprep.subr.mxu0 0.0
        %3544 = vmatpush1.msra.mxu0 %v3430
        %3545 = vmatprep.subr.mxu0 0.0
        %3546 = vmatpush1.msra.mxu0 %v3431
        %3547 = vmatprep.subr.mxu0 0.0
        %3548 = vmatpush1.msra.mxu0 %v3432
        %3549 = vmatprep.subr.mxu0 0.0
        %3550 = vmatpush1.msra.mxu0 %v3433
        %3551 = vmatprep.subr.mxu0 0.0
        %3552 = vmatpush1.msra.mxu0 %v3434
        %3553 = vmatprep.subr.mxu0 0.0
        %3554 = vmatpush1.msra.mxu0 %v3435
        %3555 = vmatprep.subr.mxu0 0.0
        %3556 = vmatpush1.msra.mxu0 %v3436
        %3557 = vmatprep.subr.mxu0 0.0
        %3558 = vmatpush1.msra.mxu0 %v3437
        %3559 = vmatprep.subr.mxu0 0.0
        %3560 = vmatpush1.msra.mxu0 %v3438
        %3561 = vmatprep.subr.mxu0 0.0
        %3562 = vmatpush1.msra.mxu0 %v3439
        %3563 = vmatprep.subr.mxu0 0.0
        %3564 = vmatpush1.msra.mxu0 %v3440
        %3565 = vmatprep.subr.mxu0 0.0
        %3566 = vmatpush1.msra.mxu0 %v3441
        %3567 = vmatprep.subr.mxu0 0.0
        %3568 = vmatpush1.msra.mxu0 %v3442
        %3569 = vmatprep.subr.mxu0 0.0
        %3570 = vmatpush1.msra.mxu0 %v3443
        %3571 = vmatprep.subr.mxu0 0.0
        %3572 = vmatpush1.msra.mxu0 %v3444
        %3573 = vmatprep.subr.mxu0 0.0
        %3574 = vmatpush1.msra.mxu0 %v3445
        %3575 = vmatprep.subr.mxu0 0.0
        %3576 = vmatpush1.msra.mxu0 %v3446
        %3577 = vmatprep.subr.mxu0 0.0
        %3578 = vmatpush1.msra.mxu0 %v3447
        %3579 = vmatprep.subr.mxu0 0.0
        %3580 = vmatpush1.msra.mxu0 %v3448
        %3581 = vmatprep.subr.mxu0 0.0
        %3582 = vmatpush1.msra.mxu0 %v3449
        %3583 = vmatprep.subr.mxu0 0.0
        %3584 = vmatpush1.msra.mxu0 %v3450
        %3585 = vmatprep.subr.mxu0 0.0
        %3586 = vmatpush1.msra.mxu0 %v3451
        %3587 = vmatprep.subr.mxu0 0.0
        %3588 = vmatpush1.msra.mxu0 %v3452
        %3589 = vmatprep.subr.mxu0 0.0
        %3590 = vmatpush1.msra.mxu0 0.0
        %3591 = vmatprep.subr.mxu0 0.0
        %3592 = vmatpush1.msra.mxu0 0.0
        %3593 = vmatprep.subr.mxu0 0.0
        %3594 = vmatpush1.msra.mxu0 0.0
        %3595 = vmatprep.subr.mxu0 0.0
        %3596 = vmatpush1.msra.mxu0 0.0
        %3597 = vmatprep.subr.mxu0 0.0
        %3598 = vmatpush1.msra.mxu0 0.0
        %3599 = vmatprep.subr.mxu0 0.0
        %3600 = vmatpush1.msra.mxu0 0.0
        %3601 = vmatprep.subr.mxu0 0.0
        %3602 = vmatpush1.msra.mxu0 0.0
        %3603 = vmatprep.mubr.f32.mxu0 %v3459
        %3604 = vmatmul.mubr.f32.gmra.mrb[0].mxu0 %v3453
        %v3605 = vpop.f32.mrb[0].mxu0
        %v3606 = vadd.f32 0.0, %v3605
        %v3607 = vpop.f32.mrb[0].mxu0
        %3608 = vmatprep.mubr.f32.mxu0 %v3462
        %3609 = vmatmul.mubr.f32.gmra.mrb[0].mxu0 %v3455
        %v3610 = vpop.f32.mrb[0].mxu0
        %v3611 = vadd.f32 0.0, %v3610
        %v3612 = vpop.f32.mrb[0].mxu0
        %3613 = vdwg.mxu0
        %v3614 = vmax.f32 %v3531, %v3606
        %v3615 = vmax.f32 %v3536, %v3611
        %v3616 = vld [vmem:[%s4] sm:$0xff]
        %v3617 = vld [vmem:[%s4 + $0x8] sm:$0xff]
        %3619 = vset.pattern.permute.xlu0 0
        %3620 = vperm.xlu0 %3619, %v3616
        %v3621 = vpop.permute.xlu0 %3620
        %3624 = vset.pattern.permute.xlu0 0
        %3625 = vperm.xlu0 %3624, %v3617
        %v3626 = vpop.permute.xlu0 %3625
        %v3628 = vadd.f32 %v3614, %v3621
        %v3629 = vadd.f32 %v3615, %v3626
        %v3630 = vmax.f32 %v3628, 0.0
        %v3631 = vmax.f32 %v3629, 0.0
        %v3632 = vld [vmem:[%s5] sm:$0xff]
        %v3633 = vld [vmem:[%s5 + $0x8] sm:$0xff]
        %v3634 = vld [vmem:[%s5 + $0x10] sm:$0xff]
        %v3635 = vld [vmem:[%s5 + $0x18] sm:$0xff]
        %v3636 = vld [vmem:[%s5 + $0x20] sm:$0xff]
        %v3637 = vld [vmem:[%s5 + $0x28] sm:$0xff]
        %v3638 = vld [vmem:[%s5 + $0x30] sm:$0xff]
        %v3639 = vld [vmem:[%s5 + $0x38] sm:$0xff]
        %v3640 = vld [vmem:[%s5 + $0x40] sm:$0xff]
        %v3641 = vld [vmem:[%s5 + $0x48] sm:$0xff]
        %v3642 = vld [vmem:[%s5 + $0x50] sm:$0xff]
        %v3643 = vld [vmem:[%s5 + $0x58] sm:$0xff]
        %v3644 = vld [vmem:[%s5 + $0x60] sm:$0xf]
        %s3645 = scalar_lea.vmem %s5, 104
        %v3646 = vld [vmem:[%s3645] sm:$0xff]
        %v3647 = vld [vmem:[%s3645 + $0x8] sm:$0xff]
        %v3648 = vld [vmem:[%s3645 + $0x10] sm:$0xff]
        %v3649 = vld [vmem:[%s3645 + $0x18] sm:$0xff]
        %v3650 = vld [vmem:[%s3645 + $0x20] sm:$0xff]
        %v3651 = vld [vmem:[%s3645 + $0x28] sm:$0xff]
        %v3652 = vld [vmem:[%s3645 + $0x30] sm:$0xff]
        %v3653 = vld [vmem:[%s3645 + $0x38] sm:$0xff]
        %v3654 = vld [vmem:[%s3645 + $0x40] sm:$0xff]
        %v3655 = vld [vmem:[%s3645 + $0x48] sm:$0xff]
        %v3656 = vld [vmem:[%s3645 + $0x50] sm:$0xff]
        %v3657 = vld [vmem:[%s3645 + $0x58] sm:$0xff]
        %v3658 = vld [vmem:[%s3645 + $0x60] sm:$0xf]
        %v3660 = vrot.slane %v3630, 1
        %vm3661 = vcmask 818176
        %v3662 = vsel %vm3661, %v3660, 0
        %vm3664 = vcmask 1043456
        %v3666 = vsel %vm3664, %v3658, 0
        %3668 = vmatprep.subr.mxu0 0.0
        %3669 = vmatpush1.msra.mxu0 %v3646
        %3670 = vmatprep.subr.mxu0 0.0
        %3671 = vmatpush1.msra.mxu0 %v3647
        %3672 = vmatprep.subr.mxu0 0.0
        %3673 = vmatpush1.msra.mxu0 %v3648
        %3674 = vmatprep.subr.mxu0 0.0
        %3675 = vmatpush1.msra.mxu0 %v3649
        %3676 = vmatprep.subr.mxu0 0.0
        %3677 = vmatpush1.msra.mxu0 %v3650
        %3678 = vmatprep.subr.mxu0 0.0
        %3679 = vmatpush1.msra.mxu0 %v3651
        %3680 = vmatprep.subr.mxu0 0.0
        %3681 = vmatpush1.msra.mxu0 %v3652
        %3682 = vmatprep.subr.mxu0 0.0
        %3683 = vmatpush1.msra.mxu0 %v3653
        %3684 = vmatprep.subr.mxu0 0.0
        %3685 = vmatpush1.msra.mxu0 %v3654
        %3686 = vmatprep.subr.mxu0 0.0
        %3687 = vmatpush1.msra.mxu0 %v3655
        %3688 = vmatprep.subr.mxu0 0.0
        %3689 = vmatpush1.msra.mxu0 %v3656
        %3690 = vmatprep.subr.mxu0 0.0
        %3691 = vmatpush1.msra.mxu0 %v3657
        %3692 = vmatprep.subr.mxu0 0.0
        %3693 = vmatpush1.msra.mxu0 %v3666
        %3694 = vmatprep.subr.mxu0 0.0
        %3695 = vmatpush1.msra.mxu0 0.0
        %3696 = vmatprep.subr.mxu0 0.0
        %3697 = vmatpush1.msra.mxu0 0.0
        %3698 = vmatprep.subr.mxu0 0.0
        %3699 = vmatpush1.msra.mxu0 0.0
        %3700 = vmatprep.subr.mxu0 0.0
        %3701 = vmatpush1.msra.mxu0 0.0
        %3702 = vmatprep.subr.mxu0 0.0
        %3703 = vmatpush1.msra.mxu0 0.0
        %3704 = vmatprep.subr.mxu0 0.0
        %3705 = vmatpush1.msra.mxu0 0.0
        %3706 = vmatprep.subr.mxu0 0.0
        %3707 = vmatpush1.msra.mxu0 0.0
        %3708 = vmatprep.subr.mxu0 0.0
        %3709 = vmatpush1.msra.mxu0 0.0
        %3710 = vmatprep.subr.mxu0 0.0
        %3711 = vmatpush1.msra.mxu0 0.0
        %3712 = vmatprep.subr.mxu0 0.0
        %3713 = vmatpush1.msra.mxu0 0.0
        %3714 = vmatprep.subr.mxu0 0.0
        %3715 = vmatpush1.msra.mxu0 0.0
        %3716 = vmatprep.subr.mxu0 0.0
        %3717 = vmatpush1.msra.mxu0 0.0
        %3718 = vmatprep.subr.mxu0 0.0
        %3719 = vmatpush1.msra.mxu0 0.0
        %3720 = vmatprep.subr.mxu0 0.0
        %3721 = vmatpush1.msra.mxu0 0.0
        %3722 = vmatprep.subr.mxu0 0.0
        %3723 = vmatpush1.msra.mxu0 0.0
        %3724 = vmatprep.subr.mxu0 0.0
        %3725 = vmatpush1.msra.mxu0 0.0
        %3726 = vmatprep.subr.mxu0 0.0
        %3727 = vmatpush1.msra.mxu0 0.0
        %3728 = vmatprep.subr.mxu0 0.0
        %3729 = vmatpush1.msra.mxu0 0.0
        %3730 = vmatprep.subr.mxu0 0.0
        %3731 = vmatpush1.msra.mxu0 0.0
        %3732 = vmatprep.mubr.f32.mxu0 0.0
        %3733 = vmatmul.mubr.f32.gmra.mrb[0].mxu0 %v3662
        %v3734 = vpop.f32.mrb[0].mxu0
        %v3735 = vadd.f32 0.0, %v3734
        %v3736 = vpop.f32.mrb[0].mxu0
        %3737 = vdwg.mxu0
        %v3738 = vsel %vm3661, %v3630, 0
        %v3741 = vsel %vm3664, %v3644, 0
        %3743 = vmatprep.subr.mxu0 0.0
        %3744 = vmatpush1.msra.mxu0 %v3632
        %3745 = vmatprep.subr.mxu0 0.0
        %3746 = vmatpush1.msra.mxu0 %v3633
        %3747 = vmatprep.subr.mxu0 0.0
        %3748 = vmatpush1.msra.mxu0 %v3634
        %3749 = vmatprep.subr.mxu0 0.0
        %3750 = vmatpush1.msra.mxu0 %v3635
        %3751 = vmatprep.subr.mxu0 0.0
        %3752 = vmatpush1.msra.mxu0 %v3636
        %3753 = vmatprep.subr.mxu0 0.0
        %3754 = vmatpush1.msra.mxu0 %v3637
        %3755 = vmatprep.subr.mxu0 0.0
        %3756 = vmatpush1.msra.mxu0 %v3638
        %3757 = vmatprep.subr.mxu0 0.0
        %3758 = vmatpush1.msra.mxu0 %v3639
        %3759 = vmatprep.subr.mxu0 0.0
        %3760 = vmatpush1.msra.mxu0 %v3640
        %3761 = vmatprep.subr.mxu0 0.0
        %3762 = vmatpush1.msra.mxu0 %v3641
        %3763 = vmatprep.subr.mxu0 0.0
        %3764 = vmatpush1.msra.mxu0 %v3642
        %3765 = vmatprep.subr.mxu0 0.0
        %3766 = vmatpush1.msra.mxu0 %v3643
        %3767 = vmatprep.subr.mxu0 0.0
        %3768 = vmatpush1.msra.mxu0 %v3741
        %3769 = vmatprep.subr.mxu0 0.0
        %3770 = vmatpush1.msra.mxu0 0.0
        %3771 = vmatprep.subr.mxu0 0.0
        %3772 = vmatpush1.msra.mxu0 0.0
        %3773 = vmatprep.subr.mxu0 0.0
        %3774 = vmatpush1.msra.mxu0 0.0
        %3775 = vmatprep.subr.mxu0 0.0
        %3776 = vmatpush1.msra.mxu0 0.0
        %3777 = vmatprep.subr.mxu0 0.0
        %3778 = vmatpush1.msra.mxu0 0.0
        %3779 = vmatprep.subr.mxu0 0.0
        %3780 = vmatpush1.msra.mxu0 0.0
        %3781 = vmatprep.subr.mxu0 0.0
        %3782 = vmatpush1.msra.mxu0 0.0
        %3783 = vmatprep.subr.mxu0 0.0
        %3784 = vmatpush1.msra.mxu0 0.0
        %3785 = vmatprep.subr.mxu0 0.0
        %3786 = vmatpush1.msra.mxu0 0.0
        %3787 = vmatprep.subr.mxu0 0.0
        %3788 = vmatpush1.msra.mxu0 0.0
        %3789 = vmatprep.subr.mxu0 0.0
        %3790 = vmatpush1.msra.mxu0 0.0
        %3791 = vmatprep.subr.mxu0 0.0
        %3792 = vmatpush1.msra.mxu0 0.0
        %3793 = vmatprep.subr.mxu0 0.0
        %3794 = vmatpush1.msra.mxu0 0.0
        %3795 = vmatprep.subr.mxu0 0.0
        %3796 = vmatpush1.msra.mxu0 0.0
        %3797 = vmatprep.subr.mxu0 0.0
        %3798 = vmatpush1.msra.mxu0 0.0
        %3799 = vmatprep.subr.mxu0 0.0
        %3800 = vmatpush1.msra.mxu0 0.0
        %3801 = vmatprep.subr.mxu0 0.0
        %3802 = vmatpush1.msra.mxu0 0.0
        %3803 = vmatprep.subr.mxu0 0.0
        %3804 = vmatpush1.msra.mxu0 0.0
        %3805 = vmatprep.subr.mxu0 0.0
        %3806 = vmatpush1.msra.mxu0 0.0
        %3807 = vmatprep.mubr.f32.mxu0 0.0
        %3808 = vmatmul.mubr.f32.gmra.mrb[0].mxu0 %v3738
        %v3809 = vpop.f32.mrb[0].mxu0
        %v3810 = vadd.f32 %v3735, %v3809
        %v3811 = vpop.f32.mrb[0].mxu0
        %3812 = vdwg.mxu0
        %s3813 = scalar_lea.vmem %s5, 208
        %v3814 = vld [vmem:[%s3813] sm:$0xff]
        %v3815 = vld [vmem:[%s3813 + $0x8] sm:$0xff]
        %v3816 = vld [vmem:[%s3813 + $0x10] sm:$0xff]
        %v3817 = vld [vmem:[%s3813 + $0x18] sm:$0xff]
        %v3818 = vld [vmem:[%s3813 + $0x20] sm:$0xff]
        %v3819 = vld [vmem:[%s3813 + $0x28] sm:$0xff]
        %v3820 = vld [vmem:[%s3813 + $0x30] sm:$0xff]
        %v3821 = vld [vmem:[%s3813 + $0x38] sm:$0xff]
        %v3822 = vld [vmem:[%s3813 + $0x40] sm:$0xff]
        %v3823 = vld [vmem:[%s3813 + $0x48] sm:$0xff]
        %v3824 = vld [vmem:[%s3813 + $0x50] sm:$0xff]
        %v3825 = vld [vmem:[%s3813 + $0x58] sm:$0xff]
        %v3826 = vld [vmem:[%s3813 + $0x60] sm:$0xf]
        %v3827 = vrot.slane %v3630, 2
        %v3828 = vsel %vm3661, %v3827, 0
        %v3831 = vsel %vm3664, %v3826, 0
        %3833 = vmatprep.subr.mxu0 0.0
        %3834 = vmatpush1.msra.mxu0 %v3814
        %3835 = vmatprep.subr.mxu0 0.0
        %3836 = vmatpush1.msra.mxu0 %v3815
        %3837 = vmatprep.subr.mxu0 0.0
        %3838 = vmatpush1.msra.mxu0 %v3816
        %3839 = vmatprep.subr.mxu0 0.0
        %3840 = vmatpush1.msra.mxu0 %v3817
        %3841 = vmatprep.subr.mxu0 0.0
        %3842 = vmatpush1.msra.mxu0 %v3818
        %3843 = vmatprep.subr.mxu0 0.0
        %3844 = vmatpush1.msra.mxu0 %v3819
        %3845 = vmatprep.subr.mxu0 0.0
        %3846 = vmatpush1.msra.mxu0 %v3820
        %3847 = vmatprep.subr.mxu0 0.0
        %3848 = vmatpush1.msra.mxu0 %v3821
        %3849 = vmatprep.subr.mxu0 0.0
        %3850 = vmatpush1.msra.mxu0 %v3822
        %3851 = vmatprep.subr.mxu0 0.0
        %3852 = vmatpush1.msra.mxu0 %v3823
        %3853 = vmatprep.subr.mxu0 0.0
        %3854 = vmatpush1.msra.mxu0 %v3824
        %3855 = vmatprep.subr.mxu0 0.0
        %3856 = vmatpush1.msra.mxu0 %v3825
        %3857 = vmatprep.subr.mxu0 0.0
        %3858 = vmatpush1.msra.mxu0 %v3831
        %3859 = vmatprep.subr.mxu0 0.0
        %3860 = vmatpush1.msra.mxu0 0.0
        %3861 = vmatprep.subr.mxu0 0.0
        %3862 = vmatpush1.msra.mxu0 0.0
        %3863 = vmatprep.subr.mxu0 0.0
        %3864 = vmatpush1.msra.mxu0 0.0
        %3865 = vmatprep.subr.mxu0 0.0
        %3866 = vmatpush1.msra.mxu0 0.0
        %3867 = vmatprep.subr.mxu0 0.0
        %3868 = vmatpush1.msra.mxu0 0.0
        %3869 = vmatprep.subr.mxu0 0.0
        %3870 = vmatpush1.msra.mxu0 0.0
        %3871 = vmatprep.subr.mxu0 0.0
        %3872 = vmatpush1.msra.mxu0 0.0
        %3873 = vmatprep.subr.mxu0 0.0
        %3874 = vmatpush1.msra.mxu0 0.0
        %3875 = vmatprep.subr.mxu0 0.0
        %3876 = vmatpush1.msra.mxu0 0.0
        %3877 = vmatprep.subr.mxu0 0.0
        %3878 = vmatpush1.msra.mxu0 0.0
        %3879 = vmatprep.subr.mxu0 0.0
        %3880 = vmatpush1.msra.mxu0 0.0
        %3881 = vmatprep.subr.mxu0 0.0
        %3882 = vmatpush1.msra.mxu0 0.0
        %3883 = vmatprep.subr.mxu0 0.0
        %3884 = vmatpush1.msra.mxu0 0.0
        %3885 = vmatprep.subr.mxu0 0.0
        %3886 = vmatpush1.msra.mxu0 0.0
        %3887 = vmatprep.subr.mxu0 0.0
        %3888 = vmatpush1.msra.mxu0 0.0
        %3889 = vmatprep.subr.mxu0 0.0
        %3890 = vmatpush1.msra.mxu0 0.0
        %3891 = vmatprep.subr.mxu0 0.0
        %3892 = vmatpush1.msra.mxu0 0.0
        %3893 = vmatprep.subr.mxu0 0.0
        %3894 = vmatpush1.msra.mxu0 0.0
        %3895 = vmatprep.subr.mxu0 0.0
        %3896 = vmatpush1.msra.mxu0 0.0
        %3897 = vmatprep.mubr.f32.mxu0 0.0
        %3898 = vmatmul.mubr.f32.gmra.mrb[0].mxu0 %v3828
        %v3899 = vpop.f32.mrb[0].mxu0
        %v3900 = vadd.f32 0.0, %v3899
        %v3901 = vpop.f32.mrb[0].mxu0
        %3902 = vdwg.mxu0
        %v3903 = vadd.f32 %v3810, %v3900
        %s3904 = scalar_lea.vmem %s5, 312
        %v3905 = vld [vmem:[%s3904] sm:$0xff]
        %v3906 = vld [vmem:[%s3904 + $0x8] sm:$0xff]
        %v3907 = vld [vmem:[%s3904 + $0x10] sm:$0xff]
        %v3908 = vld [vmem:[%s3904 + $0x18] sm:$0xff]
        %v3909 = vld [vmem:[%s3904 + $0x20] sm:$0xff]
        %v3910 = vld [vmem:[%s3904 + $0x28] sm:$0xff]
        %v3911 = vld [vmem:[%s3904 + $0x30] sm:$0xff]
        %v3912 = vld [vmem:[%s3904 + $0x38] sm:$0xff]
        %v3913 = vld [vmem:[%s3904 + $0x40] sm:$0xff]
        %v3914 = vld [vmem:[%s3904 + $0x48] sm:$0xff]
        %v3915 = vld [vmem:[%s3904 + $0x50] sm:$0xff]
        %v3916 = vld [vmem:[%s3904 + $0x58] sm:$0xff]
        %v3917 = vld [vmem:[%s3904 + $0x60] sm:$0xf]
        %v3918 = vrot.slane %v3630, 3
        %v3919 = vsel %vm3661, %v3918, 0
        %v3922 = vsel %vm3664, %v3917, 0
        %3924 = vmatprep.subr.mxu0 0.0
        %3925 = vmatpush1.msra.mxu0 %v3905
        %3926 = vmatprep.subr.mxu0 0.0
        %3927 = vmatpush1.msra.mxu0 %v3906
        %3928 = vmatprep.subr.mxu0 0.0
        %3929 = vmatpush1.msra.mxu0 %v3907
        %3930 = vmatprep.subr.mxu0 0.0
        %3931 = vmatpush1.msra.mxu0 %v3908
        %3932 = vmatprep.subr.mxu0 0.0
        %3933 = vmatpush1.msra.mxu0 %v3909
        %3934 = vmatprep.subr.mxu0 0.0
        %3935 = vmatpush1.msra.mxu0 %v3910
        %3936 = vmatprep.subr.mxu0 0.0
        %3937 = vmatpush1.msra.mxu0 %v3911
        %3938 = vmatprep.subr.mxu0 0.0
        %3939 = vmatpush1.msra.mxu0 %v3912
        %3940 = vmatprep.subr.mxu0 0.0
        %3941 = vmatpush1.msra.mxu0 %v3913
        %3942 = vmatprep.subr.mxu0 0.0
        %3943 = vmatpush1.msra.mxu0 %v3914
        %3944 = vmatprep.subr.mxu0 0.0
        %3945 = vmatpush1.msra.mxu0 %v3915
        %3946 = vmatprep.subr.mxu0 0.0
        %3947 = vmatpush1.msra.mxu0 %v3916
        %3948 = vmatprep.subr.mxu0 0.0
        %3949 = vmatpush1.msra.mxu0 %v3922
        %3950 = vmatprep.subr.mxu0 0.0
        %3951 = vmatpush1.msra.mxu0 0.0
        %3952 = vmatprep.subr.mxu0 0.0
        %3953 = vmatpush1.msra.mxu0 0.0
        %3954 = vmatprep.subr.mxu0 0.0
        %3955 = vmatpush1.msra.mxu0 0.0
        %3956 = vmatprep.subr.mxu0 0.0
        %3957 = vmatpush1.msra.mxu0 0.0
        %3958 = vmatprep.subr.mxu0 0.0
        %3959 = vmatpush1.msra.mxu0 0.0
        %3960 = vmatprep.subr.mxu0 0.0
        %3961 = vmatpush1.msra.mxu0 0.0
        %3962 = vmatprep.subr.mxu0 0.0
        %3963 = vmatpush1.msra.mxu0 0.0
        %3964 = vmatprep.subr.mxu0 0.0
        %3965 = vmatpush1.msra.mxu0 0.0
        %3966 = vmatprep.subr.mxu0 0.0
        %3967 = vmatpush1.msra.mxu0 0.0
        %3968 = vmatprep.subr.mxu0 0.0
        %3969 = vmatpush1.msra.mxu0 0.0
        %3970 = vmatprep.subr.mxu0 0.0
        %3971 = vmatpush1.msra.mxu0 0.0
        %3972 = vmatprep.subr.mxu0 0.0
        %3973 = vmatpush1.msra.mxu0 0.0
        %3974 = vmatprep.subr.mxu0 0.0
        %3975 = vmatpush1.msra.mxu0 0.0
        %3976 = vmatprep.subr.mxu0 0.0
        %3977 = vmatpush1.msra.mxu0 0.0
        %3978 = vmatprep.subr.mxu0 0.0
        %3979 = vmatpush1.msra.mxu0 0.0
        %3980 = vmatprep.subr.mxu0 0.0
        %3981 = vmatpush1.msra.mxu0 0.0
        %3982 = vmatprep.subr.mxu0 0.0
        %3983 = vmatpush1.msra.mxu0 0.0
        %3984 = vmatprep.subr.mxu0 0.0
        %3985 = vmatpush1.msra.mxu0 0.0
        %3986 = vmatprep.subr.mxu0 0.0
        %3987 = vmatpush1.msra.mxu0 0.0
        %3988 = vmatprep.mubr.f32.mxu0 0.0
        %3989 = vmatmul.mubr.f32.gmra.mrb[0].mxu0 %v3919
        %v3990 = vpop.f32.mrb[0].mxu0
        %v3991 = vadd.f32 0.0, %v3990
        %v3992 = vpop.f32.mrb[0].mxu0
        %3993 = vdwg.mxu0
        %v3994 = vadd.f32 %v3903, %v3991
        %s3995 = scalar_lea.vmem %s5, 416
        %v3996 = vld [vmem:[%s3995] sm:$0xff]
        %v3997 = vld [vmem:[%s3995 + $0x8] sm:$0xff]
        %v3998 = vld [vmem:[%s3995 + $0x10] sm:$0xff]
        %v3999 = vld [vmem:[%s3995 + $0x18] sm:$0xff]
        %v4000 = vld [vmem:[%s3995 + $0x20] sm:$0xff]
        %v4001 = vld [vmem:[%s3995 + $0x28] sm:$0xff]
        %v4002 = vld [vmem:[%s3995 + $0x30] sm:$0xff]
        %v4003 = vld [vmem:[%s3995 + $0x38] sm:$0xff]
        %v4004 = vld [vmem:[%s3995 + $0x40] sm:$0xff]
        %v4005 = vld [vmem:[%s3995 + $0x48] sm:$0xff]
        %v4006 = vld [vmem:[%s3995 + $0x50] sm:$0xff]
        %v4007 = vld [vmem:[%s3995 + $0x58] sm:$0xff]
        %v4008 = vld [vmem:[%s3995 + $0x60] sm:$0xf]
        %v4009 = vrot.slane %v3630, 4
        %v4010 = vsel %vm3661, %v4009, 0
        %v4013 = vsel %vm3664, %v4008, 0
        %4015 = vmatprep.subr.mxu0 0.0
        %4016 = vmatpush1.msra.mxu0 %v3996
        %4017 = vmatprep.subr.mxu0 0.0
        %4018 = vmatpush1.msra.mxu0 %v3997
        %4019 = vmatprep.subr.mxu0 0.0
        %4020 = vmatpush1.msra.mxu0 %v3998
        %4021 = vmatprep.subr.mxu0 0.0
        %4022 = vmatpush1.msra.mxu0 %v3999
        %4023 = vmatprep.subr.mxu0 0.0
        %4024 = vmatpush1.msra.mxu0 %v4000
        %4025 = vmatprep.subr.mxu0 0.0
        %4026 = vmatpush1.msra.mxu0 %v4001
        %4027 = vmatprep.subr.mxu0 0.0
        %4028 = vmatpush1.msra.mxu0 %v4002
        %4029 = vmatprep.subr.mxu0 0.0
        %4030 = vmatpush1.msra.mxu0 %v4003
        %4031 = vmatprep.subr.mxu0 0.0
        %4032 = vmatpush1.msra.mxu0 %v4004
        %4033 = vmatprep.subr.mxu0 0.0
        %4034 = vmatpush1.msra.mxu0 %v4005
        %4035 = vmatprep.subr.mxu0 0.0
        %4036 = vmatpush1.msra.mxu0 %v4006
        %4037 = vmatprep.subr.mxu0 0.0
        %4038 = vmatpush1.msra.mxu0 %v4007
        %4039 = vmatprep.subr.mxu0 0.0
        %4040 = vmatpush1.msra.mxu0 %v4013
        %4041 = vmatprep.subr.mxu0 0.0
        %4042 = vmatpush1.msra.mxu0 0.0
        %4043 = vmatprep.subr.mxu0 0.0
        %4044 = vmatpush1.msra.mxu0 0.0
        %4045 = vmatprep.subr.mxu0 0.0
        %4046 = vmatpush1.msra.mxu0 0.0
        %4047 = vmatprep.subr.mxu0 0.0
        %4048 = vmatpush1.msra.mxu0 0.0
        %4049 = vmatprep.subr.mxu0 0.0
        %4050 = vmatpush1.msra.mxu0 0.0
        %4051 = vmatprep.subr.mxu0 0.0
        %4052 = vmatpush1.msra.mxu0 0.0
        %4053 = vmatprep.subr.mxu0 0.0
        %4054 = vmatpush1.msra.mxu0 0.0
        %4055 = vmatprep.subr.mxu0 0.0
        %4056 = vmatpush1.msra.mxu0 0.0
        %4057 = vmatprep.subr.mxu0 0.0
        %4058 = vmatpush1.msra.mxu0 0.0
        %4059 = vmatprep.subr.mxu0 0.0
        %4060 = vmatpush1.msra.mxu0 0.0
        %4061 = vmatprep.subr.mxu0 0.0
        %4062 = vmatpush1.msra.mxu0 0.0
        %4063 = vmatprep.subr.mxu0 0.0
        %4064 = vmatpush1.msra.mxu0 0.0
        %4065 = vmatprep.subr.mxu0 0.0
        %4066 = vmatpush1.msra.mxu0 0.0
        %4067 = vmatprep.subr.mxu0 0.0
        %4068 = vmatpush1.msra.mxu0 0.0
        %4069 = vmatprep.subr.mxu0 0.0
        %4070 = vmatpush1.msra.mxu0 0.0
        %4071 = vmatprep.subr.mxu0 0.0
        %4072 = vmatpush1.msra.mxu0 0.0
        %4073 = vmatprep.subr.mxu0 0.0
        %4074 = vmatpush1.msra.mxu0 0.0
        %4075 = vmatprep.subr.mxu0 0.0
        %4076 = vmatpush1.msra.mxu0 0.0
        %4077 = vmatprep.subr.mxu0 0.0
        %4078 = vmatpush1.msra.mxu0 0.0
        %4079 = vmatprep.mubr.f32.mxu0 0.0
        %4080 = vmatmul.mubr.f32.gmra.mrb[0].mxu0 %v4010
        %v4081 = vpop.f32.mrb[0].mxu0
        %v4082 = vadd.f32 0.0, %v4081
        %v4083 = vpop.f32.mrb[0].mxu0
        %4084 = vdwg.mxu0
        %v4085 = vadd.f32 %v3994, %v4082
        %s4086 = scalar_lea.vmem %s5, 520
        %v4087 = vld [vmem:[%s4086] sm:$0xff]
        %v4088 = vld [vmem:[%s4086 + $0x8] sm:$0xff]
        %v4089 = vld [vmem:[%s4086 + $0x10] sm:$0xff]
        %v4090 = vld [vmem:[%s4086 + $0x18] sm:$0xff]
        %v4091 = vld [vmem:[%s4086 + $0x20] sm:$0xff]
        %v4092 = vld [vmem:[%s4086 + $0x28] sm:$0xff]
        %v4093 = vld [vmem:[%s4086 + $0x30] sm:$0xff]
        %v4094 = vld [vmem:[%s4086 + $0x38] sm:$0xff]
        %v4095 = vld [vmem:[%s4086 + $0x40] sm:$0xff]
        %v4096 = vld [vmem:[%s4086 + $0x48] sm:$0xff]
        %v4097 = vld [vmem:[%s4086 + $0x50] sm:$0xff]
        %v4098 = vld [vmem:[%s4086 + $0x58] sm:$0xff]
        %v4099 = vld [vmem:[%s4086 + $0x60] sm:$0xf]
        %v4100 = vrot.slane %v3630, 5
        %v4101 = vsel %vm3661, %v4100, 0
        %v4104 = vsel %vm3664, %v4099, 0
        %4106 = vmatprep.subr.mxu0 0.0
        %4107 = vmatpush1.msra.mxu0 %v4087
        %4108 = vmatprep.subr.mxu0 0.0
        %4109 = vmatpush1.msra.mxu0 %v4088
        %4110 = vmatprep.subr.mxu0 0.0
        %4111 = vmatpush1.msra.mxu0 %v4089
        %4112 = vmatprep.subr.mxu0 0.0
        %4113 = vmatpush1.msra.mxu0 %v4090
        %4114 = vmatprep.subr.mxu0 0.0
        %4115 = vmatpush1.msra.mxu0 %v4091
        %4116 = vmatprep.subr.mxu0 0.0
        %4117 = vmatpush1.msra.mxu0 %v4092
        %4118 = vmatprep.subr.mxu0 0.0
        %4119 = vmatpush1.msra.mxu0 %v4093
        %4120 = vmatprep.subr.mxu0 0.0
        %4121 = vmatpush1.msra.mxu0 %v4094
        %4122 = vmatprep.subr.mxu0 0.0
        %4123 = vmatpush1.msra.mxu0 %v4095
        %4124 = vmatprep.subr.mxu0 0.0
        %4125 = vmatpush1.msra.mxu0 %v4096
        %4126 = vmatprep.subr.mxu0 0.0
        %4127 = vmatpush1.msra.mxu0 %v4097
        %4128 = vmatprep.subr.mxu0 0.0
        %4129 = vmatpush1.msra.mxu0 %v4098
        %4130 = vmatprep.subr.mxu0 0.0
        %4131 = vmatpush1.msra.mxu0 %v4104
        %4132 = vmatprep.subr.mxu0 0.0
        %4133 = vmatpush1.msra.mxu0 0.0
        %4134 = vmatprep.subr.mxu0 0.0
        %4135 = vmatpush1.msra.mxu0 0.0
        %4136 = vmatprep.subr.mxu0 0.0
        %4137 = vmatpush1.msra.mxu0 0.0
        %4138 = vmatprep.subr.mxu0 0.0
        %4139 = vmatpush1.msra.mxu0 0.0
        %4140 = vmatprep.subr.mxu0 0.0
        %4141 = vmatpush1.msra.mxu0 0.0
        %4142 = vmatprep.subr.mxu0 0.0
        %4143 = vmatpush1.msra.mxu0 0.0
        %4144 = vmatprep.subr.mxu0 0.0
        %4145 = vmatpush1.msra.mxu0 0.0
        %4146 = vmatprep.subr.mxu0 0.0
        %4147 = vmatpush1.msra.mxu0 0.0
        %4148 = vmatprep.subr.mxu0 0.0
        %4149 = vmatpush1.msra.mxu0 0.0
        %4150 = vmatprep.subr.mxu0 0.0
        %4151 = vmatpush1.msra.mxu0 0.0
        %4152 = vmatprep.subr.mxu0 0.0
        %4153 = vmatpush1.msra.mxu0 0.0
        %4154 = vmatprep.subr.mxu0 0.0
        %4155 = vmatpush1.msra.mxu0 0.0
        %4156 = vmatprep.subr.mxu0 0.0
        %4157 = vmatpush1.msra.mxu0 0.0
        %4158 = vmatprep.subr.mxu0 0.0
        %4159 = vmatpush1.msra.mxu0 0.0
        %4160 = vmatprep.subr.mxu0 0.0
        %4161 = vmatpush1.msra.mxu0 0.0
        %4162 = vmatprep.subr.mxu0 0.0
        %4163 = vmatpush1.msra.mxu0 0.0
        %4164 = vmatprep.subr.mxu0 0.0
        %4165 = vmatpush1.msra.mxu0 0.0
        %4166 = vmatprep.subr.mxu0 0.0
        %4167 = vmatpush1.msra.mxu0 0.0
        %4168 = vmatprep.subr.mxu0 0.0
        %4169 = vmatpush1.msra.mxu0 0.0
        %4170 = vmatprep.mubr.f32.mxu0 0.0
        %4171 = vmatmul.mubr.f32.gmra.mrb[0].mxu0 %v4101
        %v4172 = vpop.f32.mrb[0].mxu0
        %v4173 = vadd.f32 0.0, %v4172
        %v4174 = vpop.f32.mrb[0].mxu0
        %4175 = vdwg.mxu0
        %v4176 = vadd.f32 %v4085, %v4173
        %s4177 = scalar_lea.vmem %s5, 624
        %v4178 = vld [vmem:[%s4177] sm:$0xff]
        %v4179 = vld [vmem:[%s4177 + $0x8] sm:$0xff]
        %v4180 = vld [vmem:[%s4177 + $0x10] sm:$0xff]
        %v4181 = vld [vmem:[%s4177 + $0x18] sm:$0xff]
        %v4182 = vld [vmem:[%s4177 + $0x20] sm:$0xff]
        %v4183 = vld [vmem:[%s4177 + $0x28] sm:$0xff]
        %v4184 = vld [vmem:[%s4177 + $0x30] sm:$0xff]
        %v4185 = vld [vmem:[%s4177 + $0x38] sm:$0xff]
        %v4186 = vld [vmem:[%s4177 + $0x40] sm:$0xff]
        %v4187 = vld [vmem:[%s4177 + $0x48] sm:$0xff]
        %v4188 = vld [vmem:[%s4177 + $0x50] sm:$0xff]
        %v4189 = vld [vmem:[%s4177 + $0x58] sm:$0xff]
        %v4190 = vld [vmem:[%s4177 + $0x60] sm:$0xf]
        %v4191 = vrot.slane %v3630, 6
        %v4192 = vsel %vm3661, %v4191, 0
        %v4195 = vsel %vm3664, %v4190, 0
        %4197 = vmatprep.subr.mxu0 0.0
        %4198 = vmatpush1.msra.mxu0 %v4178
        %4199 = vmatprep.subr.mxu0 0.0
        %4200 = vmatpush1.msra.mxu0 %v4179
        %4201 = vmatprep.subr.mxu0 0.0
        %4202 = vmatpush1.msra.mxu0 %v4180
        %4203 = vmatprep.subr.mxu0 0.0
        %4204 = vmatpush1.msra.mxu0 %v4181
        %4205 = vmatprep.subr.mxu0 0.0
        %4206 = vmatpush1.msra.mxu0 %v4182
        %4207 = vmatprep.subr.mxu0 0.0
        %4208 = vmatpush1.msra.mxu0 %v4183
        %4209 = vmatprep.subr.mxu0 0.0
        %4210 = vmatpush1.msra.mxu0 %v4184
        %4211 = vmatprep.subr.mxu0 0.0
        %4212 = vmatpush1.msra.mxu0 %v4185
        %4213 = vmatprep.subr.mxu0 0.0
        %4214 = vmatpush1.msra.mxu0 %v4186
        %4215 = vmatprep.subr.mxu0 0.0
        %4216 = vmatpush1.msra.mxu0 %v4187
        %4217 = vmatprep.subr.mxu0 0.0
        %4218 = vmatpush1.msra.mxu0 %v4188
        %4219 = vmatprep.subr.mxu0 0.0
        %4220 = vmatpush1.msra.mxu0 %v4189
        %4221 = vmatprep.subr.mxu0 0.0
        %4222 = vmatpush1.msra.mxu0 %v4195
        %4223 = vmatprep.subr.mxu0 0.0
        %4224 = vmatpush1.msra.mxu0 0.0
        %4225 = vmatprep.subr.mxu0 0.0
        %4226 = vmatpush1.msra.mxu0 0.0
        %4227 = vmatprep.subr.mxu0 0.0
        %4228 = vmatpush1.msra.mxu0 0.0
        %4229 = vmatprep.subr.mxu0 0.0
        %4230 = vmatpush1.msra.mxu0 0.0
        %4231 = vmatprep.subr.mxu0 0.0
        %4232 = vmatpush1.msra.mxu0 0.0
        %4233 = vmatprep.subr.mxu0 0.0
        %4234 = vmatpush1.msra.mxu0 0.0
        %4235 = vmatprep.subr.mxu0 0.0
        %4236 = vmatpush1.msra.mxu0 0.0
        %4237 = vmatprep.subr.mxu0 0.0
        %4238 = vmatpush1.msra.mxu0 0.0
        %4239 = vmatprep.subr.mxu0 0.0
        %4240 = vmatpush1.msra.mxu0 0.0
        %4241 = vmatprep.subr.mxu0 0.0
        %4242 = vmatpush1.msra.mxu0 0.0
        %4243 = vmatprep.subr.mxu0 0.0
        %4244 = vmatpush1.msra.mxu0 0.0
        %4245 = vmatprep.subr.mxu0 0.0
        %4246 = vmatpush1.msra.mxu0 0.0
        %4247 = vmatprep.subr.mxu0 0.0
        %4248 = vmatpush1.msra.mxu0 0.0
        %4249 = vmatprep.subr.mxu0 0.0
        %4250 = vmatpush1.msra.mxu0 0.0
        %4251 = vmatprep.subr.mxu0 0.0
        %4252 = vmatpush1.msra.mxu0 0.0
        %4253 = vmatprep.subr.mxu0 0.0
        %4254 = vmatpush1.msra.mxu0 0.0
        %4255 = vmatprep.subr.mxu0 0.0
        %4256 = vmatpush1.msra.mxu0 0.0
        %4257 = vmatprep.subr.mxu0 0.0
        %4258 = vmatpush1.msra.mxu0 0.0
        %4259 = vmatprep.subr.mxu0 0.0
        %4260 = vmatpush1.msra.mxu0 0.0
        %4261 = vmatprep.mubr.f32.mxu0 0.0
        %4262 = vmatmul.mubr.f32.gmra.mrb[0].mxu0 %v4192
        %v4263 = vpop.f32.mrb[0].mxu0
        %v4264 = vadd.f32 0.0, %v4263
        %v4265 = vpop.f32.mrb[0].mxu0
        %4266 = vdwg.mxu0
        %v4267 = vadd.f32 %v4176, %v4264
        %s4268 = scalar_lea.vmem %s5, 728
        %v4269 = vld [vmem:[%s4268] sm:$0xff]
        %v4270 = vld [vmem:[%s4268 + $0x8] sm:$0xff]
        %v4271 = vld [vmem:[%s4268 + $0x10] sm:$0xff]
        %v4272 = vld [vmem:[%s4268 + $0x18] sm:$0xff]
        %v4273 = vld [vmem:[%s4268 + $0x20] sm:$0xff]
        %v4274 = vld [vmem:[%s4268 + $0x28] sm:$0xff]
        %v4275 = vld [vmem:[%s4268 + $0x30] sm:$0xff]
        %v4276 = vld [vmem:[%s4268 + $0x38] sm:$0xff]
        %v4277 = vld [vmem:[%s4268 + $0x40] sm:$0xff]
        %v4278 = vld [vmem:[%s4268 + $0x48] sm:$0xff]
        %v4279 = vld [vmem:[%s4268 + $0x50] sm:$0xff]
        %v4280 = vld [vmem:[%s4268 + $0x58] sm:$0xff]
        %v4281 = vld [vmem:[%s4268 + $0x60] sm:$0xf]
        %v4282 = vrot.slane %v3630, 7
        %v4283 = vsel %vm3661, %v4282, 0
        %v4286 = vsel %vm3664, %v4281, 0
        %4288 = vmatprep.subr.mxu0 0.0
        %4289 = vmatpush1.msra.mxu0 %v4269
        %4290 = vmatprep.subr.mxu0 0.0
        %4291 = vmatpush1.msra.mxu0 %v4270
        %4292 = vmatprep.subr.mxu0 0.0
        %4293 = vmatpush1.msra.mxu0 %v4271
        %4294 = vmatprep.subr.mxu0 0.0
        %4295 = vmatpush1.msra.mxu0 %v4272
        %4296 = vmatprep.subr.mxu0 0.0
        %4297 = vmatpush1.msra.mxu0 %v4273
        %4298 = vmatprep.subr.mxu0 0.0
        %4299 = vmatpush1.msra.mxu0 %v4274
        %4300 = vmatprep.subr.mxu0 0.0
        %4301 = vmatpush1.msra.mxu0 %v4275
        %4302 = vmatprep.subr.mxu0 0.0
        %4303 = vmatpush1.msra.mxu0 %v4276
        %4304 = vmatprep.subr.mxu0 0.0
        %4305 = vmatpush1.msra.mxu0 %v4277
        %4306 = vmatprep.subr.mxu0 0.0
        %4307 = vmatpush1.msra.mxu0 %v4278
        %4308 = vmatprep.subr.mxu0 0.0
        %4309 = vmatpush1.msra.mxu0 %v4279
        %4310 = vmatprep.subr.mxu0 0.0
        %4311 = vmatpush1.msra.mxu0 %v4280
        %4312 = vmatprep.subr.mxu0 0.0
        %4313 = vmatpush1.msra.mxu0 %v4286
        %4314 = vmatprep.subr.mxu0 0.0
        %4315 = vmatpush1.msra.mxu0 0.0
        %4316 = vmatprep.subr.mxu0 0.0
        %4317 = vmatpush1.msra.mxu0 0.0
        %4318 = vmatprep.subr.mxu0 0.0
        %4319 = vmatpush1.msra.mxu0 0.0
        %4320 = vmatprep.subr.mxu0 0.0
        %4321 = vmatpush1.msra.mxu0 0.0
        %4322 = vmatprep.subr.mxu0 0.0
        %4323 = vmatpush1.msra.mxu0 0.0
        %4324 = vmatprep.subr.mxu0 0.0
        %4325 = vmatpush1.msra.mxu0 0.0
        %4326 = vmatprep.subr.mxu0 0.0
        %4327 = vmatpush1.msra.mxu0 0.0
        %4328 = vmatprep.subr.mxu0 0.0
        %4329 = vmatpush1.msra.mxu0 0.0
        %4330 = vmatprep.subr.mxu0 0.0
        %4331 = vmatpush1.msra.mxu0 0.0
        %4332 = vmatprep.subr.mxu0 0.0
        %4333 = vmatpush1.msra.mxu0 0.0
        %4334 = vmatprep.subr.mxu0 0.0
        %4335 = vmatpush1.msra.mxu0 0.0
        %4336 = vmatprep.subr.mxu0 0.0
        %4337 = vmatpush1.msra.mxu0 0.0
        %4338 = vmatprep.subr.mxu0 0.0
        %4339 = vmatpush1.msra.mxu0 0.0
        %4340 = vmatprep.subr.mxu0 0.0
        %4341 = vmatpush1.msra.mxu0 0.0
        %4342 = vmatprep.subr.mxu0 0.0
        %4343 = vmatpush1.msra.mxu0 0.0
        %4344 = vmatprep.subr.mxu0 0.0
        %4345 = vmatpush1.msra.mxu0 0.0
        %4346 = vmatprep.subr.mxu0 0.0
        %4347 = vmatpush1.msra.mxu0 0.0
        %4348 = vmatprep.subr.mxu0 0.0
        %4349 = vmatpush1.msra.mxu0 0.0
        %4350 = vmatprep.subr.mxu0 0.0
        %4351 = vmatpush1.msra.mxu0 0.0
        %4352 = vmatprep.mubr.f32.mxu0 0.0
        %4353 = vmatmul.mubr.f32.gmra.mrb[0].mxu0 %v4283
        %v4354 = vpop.f32.mrb[0].mxu0
        %v4355 = vadd.f32 0.0, %v4354
        %v4356 = vpop.f32.mrb[0].mxu0
        %4357 = vdwg.mxu0
        %v4358 = vadd.f32 %v4267, %v4355
        %s4359 = scalar_lea.vmem %s5, 832
        %v4360 = vld [vmem:[%s4359] sm:$0xff]
        %v4361 = vld [vmem:[%s4359 + $0x8] sm:$0xff]
        %v4362 = vld [vmem:[%s4359 + $0x10] sm:$0xff]
        %v4363 = vld [vmem:[%s4359 + $0x18] sm:$0xff]
        %v4364 = vld [vmem:[%s4359 + $0x20] sm:$0xff]
        %v4365 = vld [vmem:[%s4359 + $0x28] sm:$0xff]
        %v4366 = vld [vmem:[%s4359 + $0x30] sm:$0xff]
        %v4367 = vld [vmem:[%s4359 + $0x38] sm:$0xff]
        %v4368 = vld [vmem:[%s4359 + $0x40] sm:$0xff]
        %v4369 = vld [vmem:[%s4359 + $0x48] sm:$0xff]
        %v4370 = vld [vmem:[%s4359 + $0x50] sm:$0xff]
        %v4371 = vld [vmem:[%s4359 + $0x58] sm:$0xff]
        %v4372 = vld [vmem:[%s4359 + $0x60] sm:$0xf]
        %v4374 = vsel %vm3661, %v3631, 0
        %v4377 = vsel %vm3664, %v4372, 0
        %4379 = vmatprep.subr.mxu0 0.0
        %4380 = vmatpush1.msra.mxu0 %v4360
        %4381 = vmatprep.subr.mxu0 0.0
        %4382 = vmatpush1.msra.mxu0 %v4361
        %4383 = vmatprep.subr.mxu0 0.0
        %4384 = vmatpush1.msra.mxu0 %v4362
        %4385 = vmatprep.subr.mxu0 0.0
        %4386 = vmatpush1.msra.mxu0 %v4363
        %4387 = vmatprep.subr.mxu0 0.0
        %4388 = vmatpush1.msra.mxu0 %v4364
        %4389 = vmatprep.subr.mxu0 0.0
        %4390 = vmatpush1.msra.mxu0 %v4365
        %4391 = vmatprep.subr.mxu0 0.0
        %4392 = vmatpush1.msra.mxu0 %v4366
        %4393 = vmatprep.subr.mxu0 0.0
        %4394 = vmatpush1.msra.mxu0 %v4367
        %4395 = vmatprep.subr.mxu0 0.0
        %4396 = vmatpush1.msra.mxu0 %v4368
        %4397 = vmatprep.subr.mxu0 0.0
        %4398 = vmatpush1.msra.mxu0 %v4369
        %4399 = vmatprep.subr.mxu0 0.0
        %4400 = vmatpush1.msra.mxu0 %v4370
        %4401 = vmatprep.subr.mxu0 0.0
        %4402 = vmatpush1.msra.mxu0 %v4371
        %4403 = vmatprep.subr.mxu0 0.0
        %4404 = vmatpush1.msra.mxu0 %v4377
        %4405 = vmatprep.subr.mxu0 0.0
        %4406 = vmatpush1.msra.mxu0 0.0
        %4407 = vmatprep.subr.mxu0 0.0
        %4408 = vmatpush1.msra.mxu0 0.0
        %4409 = vmatprep.subr.mxu0 0.0
        %4410 = vmatpush1.msra.mxu0 0.0
        %4411 = vmatprep.subr.mxu0 0.0
        %4412 = vmatpush1.msra.mxu0 0.0
        %4413 = vmatprep.subr.mxu0 0.0
        %4414 = vmatpush1.msra.mxu0 0.0
        %4415 = vmatprep.subr.mxu0 0.0
        %4416 = vmatpush1.msra.mxu0 0.0
        %4417 = vmatprep.subr.mxu0 0.0
        %4418 = vmatpush1.msra.mxu0 0.0
        %4419 = vmatprep.subr.mxu0 0.0
        %4420 = vmatpush1.msra.mxu0 0.0
        %4421 = vmatprep.subr.mxu0 0.0
        %4422 = vmatpush1.msra.mxu0 0.0
        %4423 = vmatprep.subr.mxu0 0.0
        %4424 = vmatpush1.msra.mxu0 0.0
        %4425 = vmatprep.subr.mxu0 0.0
        %4426 = vmatpush1.msra.mxu0 0.0
        %4427 = vmatprep.subr.mxu0 0.0
        %4428 = vmatpush1.msra.mxu0 0.0
        %4429 = vmatprep.subr.mxu0 0.0
        %4430 = vmatpush1.msra.mxu0 0.0
        %4431 = vmatprep.subr.mxu0 0.0
        %4432 = vmatpush1.msra.mxu0 0.0
        %4433 = vmatprep.subr.mxu0 0.0
        %4434 = vmatpush1.msra.mxu0 0.0
        %4435 = vmatprep.subr.mxu0 0.0
        %4436 = vmatpush1.msra.mxu0 0.0
        %4437 = vmatprep.subr.mxu0 0.0
        %4438 = vmatpush1.msra.mxu0 0.0
        %4439 = vmatprep.subr.mxu0 0.0
        %4440 = vmatpush1.msra.mxu0 0.0
        %4441 = vmatprep.subr.mxu0 0.0
        %4442 = vmatpush1.msra.mxu0 0.0
        %4443 = vmatprep.mubr.f32.mxu0 0.0
        %4444 = vmatmul.mubr.f32.gmra.mrb[0].mxu0 %v4374
        %v4445 = vpop.f32.mrb[0].mxu0
        %v4446 = vadd.f32 0.0, %v4445
        %v4447 = vpop.f32.mrb[0].mxu0
        %4448 = vdwg.mxu0
        %v4449 = vadd.f32 %v4358, %v4446
        %s4450 = scalar_lea.vmem %s5, 936
        %v4451 = vld [vmem:[%s4450] sm:$0xff]
        %v4452 = vld [vmem:[%s4450 + $0x8] sm:$0xff]
        %v4453 = vld [vmem:[%s4450 + $0x10] sm:$0xff]
        %v4454 = vld [vmem:[%s4450 + $0x18] sm:$0xff]
        %v4455 = vld [vmem:[%s4450 + $0x20] sm:$0xff]
        %v4456 = vld [vmem:[%s4450 + $0x28] sm:$0xff]
        %v4457 = vld [vmem:[%s4450 + $0x30] sm:$0xff]
        %v4458 = vld [vmem:[%s4450 + $0x38] sm:$0xff]
        %v4459 = vld [vmem:[%s4450 + $0x40] sm:$0xff]
        %v4460 = vld [vmem:[%s4450 + $0x48] sm:$0xff]
        %v4461 = vld [vmem:[%s4450 + $0x50] sm:$0xff]
        %v4462 = vld [vmem:[%s4450 + $0x58] sm:$0xff]
        %v4463 = vld [vmem:[%s4450 + $0x60] sm:$0xf]
        %v4464 = vrot.slane %v3631, 1
        %v4465 = vsel %vm3661, %v4464, 0
        %v4468 = vsel %vm3664, %v4463, 0
        %4470 = vmatprep.subr.mxu0 0.0
        %4471 = vmatpush1.msra.mxu0 %v4451
        %4472 = vmatprep.subr.mxu0 0.0
        %4473 = vmatpush1.msra.mxu0 %v4452
        %4474 = vmatprep.subr.mxu0 0.0
        %4475 = vmatpush1.msra.mxu0 %v4453
        %4476 = vmatprep.subr.mxu0 0.0
        %4477 = vmatpush1.msra.mxu0 %v4454
        %4478 = vmatprep.subr.mxu0 0.0
        %4479 = vmatpush1.msra.mxu0 %v4455
        %4480 = vmatprep.subr.mxu0 0.0
        %4481 = vmatpush1.msra.mxu0 %v4456
        %4482 = vmatprep.subr.mxu0 0.0
        %4483 = vmatpush1.msra.mxu0 %v4457
        %4484 = vmatprep.subr.mxu0 0.0
        %4485 = vmatpush1.msra.mxu0 %v4458
        %4486 = vmatprep.subr.mxu0 0.0
        %4487 = vmatpush1.msra.mxu0 %v4459
        %4488 = vmatprep.subr.mxu0 0.0
        %4489 = vmatpush1.msra.mxu0 %v4460
        %4490 = vmatprep.subr.mxu0 0.0
        %4491 = vmatpush1.msra.mxu0 %v4461
        %4492 = vmatprep.subr.mxu0 0.0
        %4493 = vmatpush1.msra.mxu0 %v4462
        %4494 = vmatprep.subr.mxu0 0.0
        %4495 = vmatpush1.msra.mxu0 %v4468
        %4496 = vmatprep.subr.mxu0 0.0
        %4497 = vmatpush1.msra.mxu0 0.0
        %4498 = vmatprep.subr.mxu0 0.0
        %4499 = vmatpush1.msra.mxu0 0.0
        %4500 = vmatprep.subr.mxu0 0.0
        %4501 = vmatpush1.msra.mxu0 0.0
        %4502 = vmatprep.subr.mxu0 0.0
        %4503 = vmatpush1.msra.mxu0 0.0
        %4504 = vmatprep.subr.mxu0 0.0
        %4505 = vmatpush1.msra.mxu0 0.0
        %4506 = vmatprep.subr.mxu0 0.0
        %4507 = vmatpush1.msra.mxu0 0.0
        %4508 = vmatprep.subr.mxu0 0.0
        %4509 = vmatpush1.msra.mxu0 0.0
        %4510 = vmatprep.subr.mxu0 0.0
        %4511 = vmatpush1.msra.mxu0 0.0
        %4512 = vmatprep.subr.mxu0 0.0
        %4513 = vmatpush1.msra.mxu0 0.0
        %4514 = vmatprep.subr.mxu0 0.0
        %4515 = vmatpush1.msra.mxu0 0.0
        %4516 = vmatprep.subr.mxu0 0.0
        %4517 = vmatpush1.msra.mxu0 0.0
        %4518 = vmatprep.subr.mxu0 0.0
        %4519 = vmatpush1.msra.mxu0 0.0
        %4520 = vmatprep.subr.mxu0 0.0
        %4521 = vmatpush1.msra.mxu0 0.0
        %4522 = vmatprep.subr.mxu0 0.0
        %4523 = vmatpush1.msra.mxu0 0.0
        %4524 = vmatprep.subr.mxu0 0.0
        %4525 = vmatpush1.msra.mxu0 0.0
        %4526 = vmatprep.subr.mxu0 0.0
        %4527 = vmatpush1.msra.mxu0 0.0
        %4528 = vmatprep.subr.mxu0 0.0
        %4529 = vmatpush1.msra.mxu0 0.0
        %4530 = vmatprep.subr.mxu0 0.0
        %4531 = vmatpush1.msra.mxu0 0.0
        %4532 = vmatprep.subr.mxu0 0.0
        %4533 = vmatpush1.msra.mxu0 0.0
        %4534 = vmatprep.mubr.f32.mxu0 0.0
        %4535 = vmatmul.mubr.f32.gmra.mrb[0].mxu0 %v4465
        %v4536 = vpop.f32.mrb[0].mxu0
        %v4537 = vadd.f32 0.0, %v4536
        %v4538 = vpop.f32.mrb[0].mxu0
        %4539 = vdwg.mxu0
        %v4540 = vadd.f32 %v4449, %v4537
        %s4541 = scalar_lea.vmem %s5, 1040
        %v4542 = vld [vmem:[%s4541] sm:$0xff]
        %v4543 = vld [vmem:[%s4541 + $0x8] sm:$0xff]
        %v4544 = vld [vmem:[%s4541 + $0x10] sm:$0xff]
        %v4545 = vld [vmem:[%s4541 + $0x18] sm:$0xff]
        %v4546 = vld [vmem:[%s4541 + $0x20] sm:$0xff]
        %v4547 = vld [vmem:[%s4541 + $0x28] sm:$0xff]
        %v4548 = vld [vmem:[%s4541 + $0x30] sm:$0xff]
        %v4549 = vld [vmem:[%s4541 + $0x38] sm:$0xff]
        %v4550 = vld [vmem:[%s4541 + $0x40] sm:$0xff]
        %v4551 = vld [vmem:[%s4541 + $0x48] sm:$0xff]
        %v4552 = vld [vmem:[%s4541 + $0x50] sm:$0xff]
        %v4553 = vld [vmem:[%s4541 + $0x58] sm:$0xff]
        %v4554 = vld [vmem:[%s4541 + $0x60] sm:$0xf]
        %v4555 = vrot.slane %v3631, 2
        %v4556 = vsel %vm3661, %v4555, 0
        %v4559 = vsel %vm3664, %v4554, 0
        %4561 = vmatprep.subr.mxu0 0.0
        %4562 = vmatpush1.msra.mxu0 %v4542
        %4563 = vmatprep.subr.mxu0 0.0
        %4564 = vmatpush1.msra.mxu0 %v4543
        %4565 = vmatprep.subr.mxu0 0.0
        %4566 = vmatpush1.msra.mxu0 %v4544
        %4567 = vmatprep.subr.mxu0 0.0
        %4568 = vmatpush1.msra.mxu0 %v4545
        %4569 = vmatprep.subr.mxu0 0.0
        %4570 = vmatpush1.msra.mxu0 %v4546
        %4571 = vmatprep.subr.mxu0 0.0
        %4572 = vmatpush1.msra.mxu0 %v4547
        %4573 = vmatprep.subr.mxu0 0.0
        %4574 = vmatpush1.msra.mxu0 %v4548
        %4575 = vmatprep.subr.mxu0 0.0
        %4576 = vmatpush1.msra.mxu0 %v4549
        %4577 = vmatprep.subr.mxu0 0.0
        %4578 = vmatpush1.msra.mxu0 %v4550
        %4579 = vmatprep.subr.mxu0 0.0
        %4580 = vmatpush1.msra.mxu0 %v4551
        %4581 = vmatprep.subr.mxu0 0.0
        %4582 = vmatpush1.msra.mxu0 %v4552
        %4583 = vmatprep.subr.mxu0 0.0
        %4584 = vmatpush1.msra.mxu0 %v4553
        %4585 = vmatprep.subr.mxu0 0.0
        %4586 = vmatpush1.msra.mxu0 %v4559
        %4587 = vmatprep.subr.mxu0 0.0
        %4588 = vmatpush1.msra.mxu0 0.0
        %4589 = vmatprep.subr.mxu0 0.0
        %4590 = vmatpush1.msra.mxu0 0.0
        %4591 = vmatprep.subr.mxu0 0.0
        %4592 = vmatpush1.msra.mxu0 0.0
        %4593 = vmatprep.subr.mxu0 0.0
        %4594 = vmatpush1.msra.mxu0 0.0
        %4595 = vmatprep.subr.mxu0 0.0
        %4596 = vmatpush1.msra.mxu0 0.0
        %4597 = vmatprep.subr.mxu0 0.0
        %4598 = vmatpush1.msra.mxu0 0.0
        %4599 = vmatprep.subr.mxu0 0.0
        %4600 = vmatpush1.msra.mxu0 0.0
        %4601 = vmatprep.subr.mxu0 0.0
        %4602 = vmatpush1.msra.mxu0 0.0
        %4603 = vmatprep.subr.mxu0 0.0
        %4604 = vmatpush1.msra.mxu0 0.0
        %4605 = vmatprep.subr.mxu0 0.0
        %4606 = vmatpush1.msra.mxu0 0.0
        %4607 = vmatprep.subr.mxu0 0.0
        %4608 = vmatpush1.msra.mxu0 0.0
        %4609 = vmatprep.subr.mxu0 0.0
        %4610 = vmatpush1.msra.mxu0 0.0
        %4611 = vmatprep.subr.mxu0 0.0
        %4612 = vmatpush1.msra.mxu0 0.0
        %4613 = vmatprep.subr.mxu0 0.0
        %4614 = vmatpush1.msra.mxu0 0.0
        %4615 = vmatprep.subr.mxu0 0.0
        %4616 = vmatpush1.msra.mxu0 0.0
        %4617 = vmatprep.subr.mxu0 0.0
        %4618 = vmatpush1.msra.mxu0 0.0
        %4619 = vmatprep.subr.mxu0 0.0
        %4620 = vmatpush1.msra.mxu0 0.0
        %4621 = vmatprep.subr.mxu0 0.0
        %4622 = vmatpush1.msra.mxu0 0.0
        %4623 = vmatprep.subr.mxu0 0.0
        %4624 = vmatpush1.msra.mxu0 0.0
        %4625 = vmatprep.mubr.f32.mxu0 0.0
        %4626 = vmatmul.mubr.f32.gmra.mrb[0].mxu0 %v4556
        %v4627 = vpop.f32.mrb[0].mxu0
        %v4628 = vadd.f32 0.0, %v4627
        %v4629 = vpop.f32.mrb[0].mxu0
        %4630 = vdwg.mxu0
        %v4631 = vadd.f32 %v4540, %v4628
        %s4632 = scalar_lea.vmem %s5, 1144
        %v4633 = vld [vmem:[%s4632] sm:$0xff]
        %v4634 = vld [vmem:[%s4632 + $0x8] sm:$0xff]
        %v4635 = vld [vmem:[%s4632 + $0x10] sm:$0xff]
        %v4636 = vld [vmem:[%s4632 + $0x18] sm:$0xff]
        %v4637 = vld [vmem:[%s4632 + $0x20] sm:$0xff]
        %v4638 = vld [vmem:[%s4632 + $0x28] sm:$0xff]
        %v4639 = vld [vmem:[%s4632 + $0x30] sm:$0xff]
        %v4640 = vld [vmem:[%s4632 + $0x38] sm:$0xff]
        %v4641 = vld [vmem:[%s4632 + $0x40] sm:$0xff]
        %v4642 = vld [vmem:[%s4632 + $0x48] sm:$0xff]
        %v4643 = vld [vmem:[%s4632 + $0x50] sm:$0xff]
        %v4644 = vld [vmem:[%s4632 + $0x58] sm:$0xff]
        %v4645 = vld [vmem:[%s4632 + $0x60] sm:$0xf]
        %v4646 = vrot.slane %v3631, 3
        %v4647 = vsel %vm3661, %v4646, 0
        %v4650 = vsel %vm3664, %v4645, 0
        %4652 = vmatprep.subr.mxu0 0.0
        %4653 = vmatpush1.msra.mxu0 %v4633
        %4654 = vmatprep.subr.mxu0 0.0
        %4655 = vmatpush1.msra.mxu0 %v4634
        %4656 = vmatprep.subr.mxu0 0.0
        %4657 = vmatpush1.msra.mxu0 %v4635
        %4658 = vmatprep.subr.mxu0 0.0
        %4659 = vmatpush1.msra.mxu0 %v4636
        %4660 = vmatprep.subr.mxu0 0.0
        %4661 = vmatpush1.msra.mxu0 %v4637
        %4662 = vmatprep.subr.mxu0 0.0
        %4663 = vmatpush1.msra.mxu0 %v4638
        %4664 = vmatprep.subr.mxu0 0.0
        %4665 = vmatpush1.msra.mxu0 %v4639
        %4666 = vmatprep.subr.mxu0 0.0
        %4667 = vmatpush1.msra.mxu0 %v4640
        %4668 = vmatprep.subr.mxu0 0.0
        %4669 = vmatpush1.msra.mxu0 %v4641
        %4670 = vmatprep.subr.mxu0 0.0
        %4671 = vmatpush1.msra.mxu0 %v4642
        %4672 = vmatprep.subr.mxu0 0.0
        %4673 = vmatpush1.msra.mxu0 %v4643
        %4674 = vmatprep.subr.mxu0 0.0
        %4675 = vmatpush1.msra.mxu0 %v4644
        %4676 = vmatprep.subr.mxu0 0.0
        %4677 = vmatpush1.msra.mxu0 %v4650
        %4678 = vmatprep.subr.mxu0 0.0
        %4679 = vmatpush1.msra.mxu0 0.0
        %4680 = vmatprep.subr.mxu0 0.0
        %4681 = vmatpush1.msra.mxu0 0.0
        %4682 = vmatprep.subr.mxu0 0.0
        %4683 = vmatpush1.msra.mxu0 0.0
        %4684 = vmatprep.subr.mxu0 0.0
        %4685 = vmatpush1.msra.mxu0 0.0
        %4686 = vmatprep.subr.mxu0 0.0
        %4687 = vmatpush1.msra.mxu0 0.0
        %4688 = vmatprep.subr.mxu0 0.0
        %4689 = vmatpush1.msra.mxu0 0.0
        %4690 = vmatprep.subr.mxu0 0.0
        %4691 = vmatpush1.msra.mxu0 0.0
        %4692 = vmatprep.subr.mxu0 0.0
        %4693 = vmatpush1.msra.mxu0 0.0
        %4694 = vmatprep.subr.mxu0 0.0
        %4695 = vmatpush1.msra.mxu0 0.0
        %4696 = vmatprep.subr.mxu0 0.0
        %4697 = vmatpush1.msra.mxu0 0.0
        %4698 = vmatprep.subr.mxu0 0.0
        %4699 = vmatpush1.msra.mxu0 0.0
        %4700 = vmatprep.subr.mxu0 0.0
        %4701 = vmatpush1.msra.mxu0 0.0
        %4702 = vmatprep.subr.mxu0 0.0
        %4703 = vmatpush1.msra.mxu0 0.0
        %4704 = vmatprep.subr.mxu0 0.0
        %4705 = vmatpush1.msra.mxu0 0.0
        %4706 = vmatprep.subr.mxu0 0.0
        %4707 = vmatpush1.msra.mxu0 0.0
        %4708 = vmatprep.subr.mxu0 0.0
        %4709 = vmatpush1.msra.mxu0 0.0
        %4710 = vmatprep.subr.mxu0 0.0
        %4711 = vmatpush1.msra.mxu0 0.0
        %4712 = vmatprep.subr.mxu0 0.0
        %4713 = vmatpush1.msra.mxu0 0.0
        %4714 = vmatprep.subr.mxu0 0.0
        %4715 = vmatpush1.msra.mxu0 0.0
        %4716 = vmatprep.mubr.f32.mxu0 0.0
        %4717 = vmatmul.mubr.f32.gmra.mrb[0].mxu0 %v4647
        %v4718 = vpop.f32.mrb[0].mxu0
        %v4719 = vadd.f32 0.0, %v4718
        %v4720 = vpop.f32.mrb[0].mxu0
        %4721 = vdwg.mxu0
        %v4722 = vadd.f32 %v4631, %v4719
        %s4723 = scalar_lea.vmem %s5, 1248
        %v4724 = vld [vmem:[%s4723] sm:$0xff]
        %v4725 = vld [vmem:[%s4723 + $0x8] sm:$0xff]
        %v4726 = vld [vmem:[%s4723 + $0x10] sm:$0xff]
        %v4727 = vld [vmem:[%s4723 + $0x18] sm:$0xff]
        %v4728 = vld [vmem:[%s4723 + $0x20] sm:$0xff]
        %v4729 = vld [vmem:[%s4723 + $0x28] sm:$0xff]
        %v4730 = vld [vmem:[%s4723 + $0x30] sm:$0xff]
        %v4731 = vld [vmem:[%s4723 + $0x38] sm:$0xff]
        %v4732 = vld [vmem:[%s4723 + $0x40] sm:$0xff]
        %v4733 = vld [vmem:[%s4723 + $0x48] sm:$0xff]
        %v4734 = vld [vmem:[%s4723 + $0x50] sm:$0xff]
        %v4735 = vld [vmem:[%s4723 + $0x58] sm:$0xff]
        %v4736 = vld [vmem:[%s4723 + $0x60] sm:$0xf]
        %v4737 = vrot.slane %v3631, 4
        %v4738 = vsel %vm3661, %v4737, 0
        %v4741 = vsel %vm3664, %v4736, 0
        %4743 = vmatprep.subr.mxu0 0.0
        %4744 = vmatpush1.msra.mxu0 %v4724
        %4745 = vmatprep.subr.mxu0 0.0
        %4746 = vmatpush1.msra.mxu0 %v4725
        %4747 = vmatprep.subr.mxu0 0.0
        %4748 = vmatpush1.msra.mxu0 %v4726
        %4749 = vmatprep.subr.mxu0 0.0
        %4750 = vmatpush1.msra.mxu0 %v4727
        %4751 = vmatprep.subr.mxu0 0.0
        %4752 = vmatpush1.msra.mxu0 %v4728
        %4753 = vmatprep.subr.mxu0 0.0
        %4754 = vmatpush1.msra.mxu0 %v4729
        %4755 = vmatprep.subr.mxu0 0.0
        %4756 = vmatpush1.msra.mxu0 %v4730
        %4757 = vmatprep.subr.mxu0 0.0
        %4758 = vmatpush1.msra.mxu0 %v4731
        %4759 = vmatprep.subr.mxu0 0.0
        %4760 = vmatpush1.msra.mxu0 %v4732
        %4761 = vmatprep.subr.mxu0 0.0
        %4762 = vmatpush1.msra.mxu0 %v4733
        %4763 = vmatprep.subr.mxu0 0.0
        %4764 = vmatpush1.msra.mxu0 %v4734
        %4765 = vmatprep.subr.mxu0 0.0
        %4766 = vmatpush1.msra.mxu0 %v4735
        %4767 = vmatprep.subr.mxu0 0.0
        %4768 = vmatpush1.msra.mxu0 %v4741
        %4769 = vmatprep.subr.mxu0 0.0
        %4770 = vmatpush1.msra.mxu0 0.0
        %4771 = vmatprep.subr.mxu0 0.0
        %4772 = vmatpush1.msra.mxu0 0.0
        %4773 = vmatprep.subr.mxu0 0.0
        %4774 = vmatpush1.msra.mxu0 0.0
        %4775 = vmatprep.subr.mxu0 0.0
        %4776 = vmatpush1.msra.mxu0 0.0
        %4777 = vmatprep.subr.mxu0 0.0
        %4778 = vmatpush1.msra.mxu0 0.0
        %4779 = vmatprep.subr.mxu0 0.0
        %4780 = vmatpush1.msra.mxu0 0.0
        %4781 = vmatprep.subr.mxu0 0.0
        %4782 = vmatpush1.msra.mxu0 0.0
        %4783 = vmatprep.subr.mxu0 0.0
        %4784 = vmatpush1.msra.mxu0 0.0
        %4785 = vmatprep.subr.mxu0 0.0
        %4786 = vmatpush1.msra.mxu0 0.0
        %4787 = vmatprep.subr.mxu0 0.0
        %4788 = vmatpush1.msra.mxu0 0.0
        %4789 = vmatprep.subr.mxu0 0.0
        %4790 = vmatpush1.msra.mxu0 0.0
        %4791 = vmatprep.subr.mxu0 0.0
        %4792 = vmatpush1.msra.mxu0 0.0
        %4793 = vmatprep.subr.mxu0 0.0
        %4794 = vmatpush1.msra.mxu0 0.0
        %4795 = vmatprep.subr.mxu0 0.0
        %4796 = vmatpush1.msra.mxu0 0.0
        %4797 = vmatprep.subr.mxu0 0.0
        %4798 = vmatpush1.msra.mxu0 0.0
        %4799 = vmatprep.subr.mxu0 0.0
        %4800 = vmatpush1.msra.mxu0 0.0
        %4801 = vmatprep.subr.mxu0 0.0
        %4802 = vmatpush1.msra.mxu0 0.0
        %4803 = vmatprep.subr.mxu0 0.0
        %4804 = vmatpush1.msra.mxu0 0.0
        %4805 = vmatprep.subr.mxu0 0.0
        %4806 = vmatpush1.msra.mxu0 0.0
        %4807 = vmatprep.mubr.f32.mxu0 0.0
        %4808 = vmatmul.mubr.f32.gmra.mrb[0].mxu0 %v4738
        %v4809 = vpop.f32.mrb[0].mxu0
        %v4810 = vadd.f32 0.0, %v4809
        %v4811 = vpop.f32.mrb[0].mxu0
        %4812 = vdwg.mxu0
        %v4813 = vadd.f32 %v4722, %v4810
        %s4814 = scalar_lea.vmem %s5, 1352
        %v4815 = vld [vmem:[%s4814] sm:$0xff]
        %v4816 = vld [vmem:[%s4814 + $0x8] sm:$0xff]
        %v4817 = vld [vmem:[%s4814 + $0x10] sm:$0xff]
        %v4818 = vld [vmem:[%s4814 + $0x18] sm:$0xff]
        %v4819 = vld [vmem:[%s4814 + $0x20] sm:$0xff]
        %v4820 = vld [vmem:[%s4814 + $0x28] sm:$0xff]
        %v4821 = vld [vmem:[%s4814 + $0x30] sm:$0xff]
        %v4822 = vld [vmem:[%s4814 + $0x38] sm:$0xff]
        %v4823 = vld [vmem:[%s4814 + $0x40] sm:$0xff]
        %v4824 = vld [vmem:[%s4814 + $0x48] sm:$0xff]
        %v4825 = vld [vmem:[%s4814 + $0x50] sm:$0xff]
        %v4826 = vld [vmem:[%s4814 + $0x58] sm:$0xff]
        %v4827 = vld [vmem:[%s4814 + $0x60] sm:$0xf]
        %v4828 = vrot.slane %v3631, 5
        %v4829 = vsel %vm3661, %v4828, 0
        %v4832 = vsel %vm3664, %v4827, 0
        %4834 = vmatprep.subr.mxu0 0.0
        %4835 = vmatpush1.msra.mxu0 %v4815
        %4836 = vmatprep.subr.mxu0 0.0
        %4837 = vmatpush1.msra.mxu0 %v4816
        %4838 = vmatprep.subr.mxu0 0.0
        %4839 = vmatpush1.msra.mxu0 %v4817
        %4840 = vmatprep.subr.mxu0 0.0
        %4841 = vmatpush1.msra.mxu0 %v4818
        %4842 = vmatprep.subr.mxu0 0.0
        %4843 = vmatpush1.msra.mxu0 %v4819
        %4844 = vmatprep.subr.mxu0 0.0
        %4845 = vmatpush1.msra.mxu0 %v4820
        %4846 = vmatprep.subr.mxu0 0.0
        %4847 = vmatpush1.msra.mxu0 %v4821
        %4848 = vmatprep.subr.mxu0 0.0
        %4849 = vmatpush1.msra.mxu0 %v4822
        %4850 = vmatprep.subr.mxu0 0.0
        %4851 = vmatpush1.msra.mxu0 %v4823
        %4852 = vmatprep.subr.mxu0 0.0
        %4853 = vmatpush1.msra.mxu0 %v4824
        %4854 = vmatprep.subr.mxu0 0.0
        %4855 = vmatpush1.msra.mxu0 %v4825
        %4856 = vmatprep.subr.mxu0 0.0
        %4857 = vmatpush1.msra.mxu0 %v4826
        %4858 = vmatprep.subr.mxu0 0.0
        %4859 = vmatpush1.msra.mxu0 %v4832
        %4860 = vmatprep.subr.mxu0 0.0
        %4861 = vmatpush1.msra.mxu0 0.0
        %4862 = vmatprep.subr.mxu0 0.0
        %4863 = vmatpush1.msra.mxu0 0.0
        %4864 = vmatprep.subr.mxu0 0.0
        %4865 = vmatpush1.msra.mxu0 0.0
        %4866 = vmatprep.subr.mxu0 0.0
        %4867 = vmatpush1.msra.mxu0 0.0
        %4868 = vmatprep.subr.mxu0 0.0
        %4869 = vmatpush1.msra.mxu0 0.0
        %4870 = vmatprep.subr.mxu0 0.0
        %4871 = vmatpush1.msra.mxu0 0.0
        %4872 = vmatprep.subr.mxu0 0.0
        %4873 = vmatpush1.msra.mxu0 0.0
        %4874 = vmatprep.subr.mxu0 0.0
        %4875 = vmatpush1.msra.mxu0 0.0
        %4876 = vmatprep.subr.mxu0 0.0
        %4877 = vmatpush1.msra.mxu0 0.0
        %4878 = vmatprep.subr.mxu0 0.0
        %4879 = vmatpush1.msra.mxu0 0.0
        %4880 = vmatprep.subr.mxu0 0.0
        %4881 = vmatpush1.msra.mxu0 0.0
        %4882 = vmatprep.subr.mxu0 0.0
        %4883 = vmatpush1.msra.mxu0 0.0
        %4884 = vmatprep.subr.mxu0 0.0
        %4885 = vmatpush1.msra.mxu0 0.0
        %4886 = vmatprep.subr.mxu0 0.0
        %4887 = vmatpush1.msra.mxu0 0.0
        %4888 = vmatprep.subr.mxu0 0.0
        %4889 = vmatpush1.msra.mxu0 0.0
        %4890 = vmatprep.subr.mxu0 0.0
        %4891 = vmatpush1.msra.mxu0 0.0
        %4892 = vmatprep.subr.mxu0 0.0
        %4893 = vmatpush1.msra.mxu0 0.0
        %4894 = vmatprep.subr.mxu0 0.0
        %4895 = vmatpush1.msra.mxu0 0.0
        %4896 = vmatprep.subr.mxu0 0.0
        %4897 = vmatpush1.msra.mxu0 0.0
        %4898 = vmatprep.mubr.f32.mxu0 0.0
        %4899 = vmatmul.mubr.f32.gmra.mrb[0].mxu0 %v4829
        %v4900 = vpop.f32.mrb[0].mxu0
        %v4901 = vadd.f32 0.0, %v4900
        %v4902 = vpop.f32.mrb[0].mxu0
        %4903 = vdwg.mxu0
        %v4904 = vadd.f32 %v4813, %v4901
        %s4905 = scalar_lea.vmem %s5, 1456
        %v4906 = vld [vmem:[%s4905] sm:$0xff]
        %v4907 = vld [vmem:[%s4905 + $0x8] sm:$0xff]
        %v4908 = vld [vmem:[%s4905 + $0x10] sm:$0xff]
        %v4909 = vld [vmem:[%s4905 + $0x18] sm:$0xff]
        %v4910 = vld [vmem:[%s4905 + $0x20] sm:$0xff]
        %v4911 = vld [vmem:[%s4905 + $0x28] sm:$0xff]
        %v4912 = vld [vmem:[%s4905 + $0x30] sm:$0xff]
        %v4913 = vld [vmem:[%s4905 + $0x38] sm:$0xff]
        %v4914 = vld [vmem:[%s4905 + $0x40] sm:$0xff]
        %v4915 = vld [vmem:[%s4905 + $0x48] sm:$0xff]
        %v4916 = vld [vmem:[%s4905 + $0x50] sm:$0xff]
        %v4917 = vld [vmem:[%s4905 + $0x58] sm:$0xff]
        %v4918 = vld [vmem:[%s4905 + $0x60] sm:$0xf]
        %v4919 = vrot.slane %v3631, 6
        %v4920 = vsel %vm3661, %v4919, 0
        %v4923 = vsel %vm3664, %v4918, 0
        %4925 = vmatprep.subr.mxu0 0.0
        %4926 = vmatpush1.msra.mxu0 %v4906
        %4927 = vmatprep.subr.mxu0 0.0
        %4928 = vmatpush1.msra.mxu0 %v4907
        %4929 = vmatprep.subr.mxu0 0.0
        %4930 = vmatpush1.msra.mxu0 %v4908
        %4931 = vmatprep.subr.mxu0 0.0
        %4932 = vmatpush1.msra.mxu0 %v4909
        %4933 = vmatprep.subr.mxu0 0.0
        %4934 = vmatpush1.msra.mxu0 %v4910
        %4935 = vmatprep.subr.mxu0 0.0
        %4936 = vmatpush1.msra.mxu0 %v4911
        %4937 = vmatprep.subr.mxu0 0.0
        %4938 = vmatpush1.msra.mxu0 %v4912
        %4939 = vmatprep.subr.mxu0 0.0
        %4940 = vmatpush1.msra.mxu0 %v4913
        %4941 = vmatprep.subr.mxu0 0.0
        %4942 = vmatpush1.msra.mxu0 %v4914
        %4943 = vmatprep.subr.mxu0 0.0
        %4944 = vmatpush1.msra.mxu0 %v4915
        %4945 = vmatprep.subr.mxu0 0.0
        %4946 = vmatpush1.msra.mxu0 %v4916
        %4947 = vmatprep.subr.mxu0 0.0
        %4948 = vmatpush1.msra.mxu0 %v4917
        %4949 = vmatprep.subr.mxu0 0.0
        %4950 = vmatpush1.msra.mxu0 %v4923
        %4951 = vmatprep.subr.mxu0 0.0
        %4952 = vmatpush1.msra.mxu0 0.0
        %4953 = vmatprep.subr.mxu0 0.0
        %4954 = vmatpush1.msra.mxu0 0.0
        %4955 = vmatprep.subr.mxu0 0.0
        %4956 = vmatpush1.msra.mxu0 0.0
        %4957 = vmatprep.subr.mxu0 0.0
        %4958 = vmatpush1.msra.mxu0 0.0
        %4959 = vmatprep.subr.mxu0 0.0
        %4960 = vmatpush1.msra.mxu0 0.0
        %4961 = vmatprep.subr.mxu0 0.0
        %4962 = vmatpush1.msra.mxu0 0.0
        %4963 = vmatprep.subr.mxu0 0.0
        %4964 = vmatpush1.msra.mxu0 0.0
        %4965 = vmatprep.subr.mxu0 0.0
        %4966 = vmatpush1.msra.mxu0 0.0
        %4967 = vmatprep.subr.mxu0 0.0
        %4968 = vmatpush1.msra.mxu0 0.0
        %4969 = vmatprep.subr.mxu0 0.0
        %4970 = vmatpush1.msra.mxu0 0.0
        %4971 = vmatprep.subr.mxu0 0.0
        %4972 = vmatpush1.msra.mxu0 0.0
        %4973 = vmatprep.subr.mxu0 0.0
        %4974 = vmatpush1.msra.mxu0 0.0
        %4975 = vmatprep.subr.mxu0 0.0
        %4976 = vmatpush1.msra.mxu0 0.0
        %4977 = vmatprep.subr.mxu0 0.0
        %4978 = vmatpush1.msra.mxu0 0.0
        %4979 = vmatprep.subr.mxu0 0.0
        %4980 = vmatpush1.msra.mxu0 0.0
        %4981 = vmatprep.subr.mxu0 0.0
        %4982 = vmatpush1.msra.mxu0 0.0
        %4983 = vmatprep.subr.mxu0 0.0
        %4984 = vmatpush1.msra.mxu0 0.0
        %4985 = vmatprep.subr.mxu0 0.0
        %4986 = vmatpush1.msra.mxu0 0.0
        %4987 = vmatprep.subr.mxu0 0.0
        %4988 = vmatpush1.msra.mxu0 0.0
        %4989 = vmatprep.mubr.f32.mxu0 0.0
        %4990 = vmatmul.mubr.f32.gmra.mrb[0].mxu0 %v4920
        %v4991 = vpop.f32.mrb[0].mxu0
        %v4992 = vadd.f32 0.0, %v4991
        %v4993 = vpop.f32.mrb[0].mxu0
        %4994 = vdwg.mxu0
        %v4995 = vadd.f32 %v4904, %v4992
        %s4996 = scalar_lea.vmem %s5, 1560
        %v4997 = vld [vmem:[%s4996] sm:$0xff]
        %v4998 = vld [vmem:[%s4996 + $0x8] sm:$0xff]
        %v4999 = vld [vmem:[%s4996 + $0x10] sm:$0xff]
        %v5000 = vld [vmem:[%s4996 + $0x18] sm:$0xff]
        %v5001 = vld [vmem:[%s4996 + $0x20] sm:$0xff]
        %v5002 = vld [vmem:[%s4996 + $0x28] sm:$0xff]
        %v5003 = vld [vmem:[%s4996 + $0x30] sm:$0xff]
        %v5004 = vld [vmem:[%s4996 + $0x38] sm:$0xff]
        %v5005 = vld [vmem:[%s4996 + $0x40] sm:$0xff]
        %v5006 = vld [vmem:[%s4996 + $0x48] sm:$0xff]
        %v5007 = vld [vmem:[%s4996 + $0x50] sm:$0xff]
        %v5008 = vld [vmem:[%s4996 + $0x58] sm:$0xff]
        %v5009 = vld [vmem:[%s4996 + $0x60] sm:$0xf]
        %v5010 = vrot.slane %v3631, 7
        %v5011 = vsel %vm3661, %v5010, 0
        %v5014 = vsel %vm3664, %v5009, 0
        %5016 = vmatprep.subr.mxu0 0.0
        %5017 = vmatpush1.msra.mxu0 %v4997
        %5018 = vmatprep.subr.mxu0 0.0
        %5019 = vmatpush1.msra.mxu0 %v4998
        %5020 = vmatprep.subr.mxu0 0.0
        %5021 = vmatpush1.msra.mxu0 %v4999
        %5022 = vmatprep.subr.mxu0 0.0
        %5023 = vmatpush1.msra.mxu0 %v5000
        %5024 = vmatprep.subr.mxu0 0.0
        %5025 = vmatpush1.msra.mxu0 %v5001
        %5026 = vmatprep.subr.mxu0 0.0
        %5027 = vmatpush1.msra.mxu0 %v5002
        %5028 = vmatprep.subr.mxu0 0.0
        %5029 = vmatpush1.msra.mxu0 %v5003
        %5030 = vmatprep.subr.mxu0 0.0
        %5031 = vmatpush1.msra.mxu0 %v5004
        %5032 = vmatprep.subr.mxu0 0.0
        %5033 = vmatpush1.msra.mxu0 %v5005
        %5034 = vmatprep.subr.mxu0 0.0
        %5035 = vmatpush1.msra.mxu0 %v5006
        %5036 = vmatprep.subr.mxu0 0.0
        %5037 = vmatpush1.msra.mxu0 %v5007
        %5038 = vmatprep.subr.mxu0 0.0
        %5039 = vmatpush1.msra.mxu0 %v5008
        %5040 = vmatprep.subr.mxu0 0.0
        %5041 = vmatpush1.msra.mxu0 %v5014
        %5042 = vmatprep.subr.mxu0 0.0
        %5043 = vmatpush1.msra.mxu0 0.0
        %5044 = vmatprep.subr.mxu0 0.0
        %5045 = vmatpush1.msra.mxu0 0.0
        %5046 = vmatprep.subr.mxu0 0.0
        %5047 = vmatpush1.msra.mxu0 0.0
        %5048 = vmatprep.subr.mxu0 0.0
        %5049 = vmatpush1.msra.mxu0 0.0
        %5050 = vmatprep.subr.mxu0 0.0
        %5051 = vmatpush1.msra.mxu0 0.0
        %5052 = vmatprep.subr.mxu0 0.0
        %5053 = vmatpush1.msra.mxu0 0.0
        %5054 = vmatprep.subr.mxu0 0.0
        %5055 = vmatpush1.msra.mxu0 0.0
        %5056 = vmatprep.subr.mxu0 0.0
        %5057 = vmatpush1.msra.mxu0 0.0
        %5058 = vmatprep.subr.mxu0 0.0
        %5059 = vmatpush1.msra.mxu0 0.0
        %5060 = vmatprep.subr.mxu0 0.0
        %5061 = vmatpush1.msra.mxu0 0.0
        %5062 = vmatprep.subr.mxu0 0.0
        %5063 = vmatpush1.msra.mxu0 0.0
        %5064 = vmatprep.subr.mxu0 0.0
        %5065 = vmatpush1.msra.mxu0 0.0
        %5066 = vmatprep.subr.mxu0 0.0
        %5067 = vmatpush1.msra.mxu0 0.0
        %5068 = vmatprep.subr.mxu0 0.0
        %5069 = vmatpush1.msra.mxu0 0.0
        %5070 = vmatprep.subr.mxu0 0.0
        %5071 = vmatpush1.msra.mxu0 0.0
        %5072 = vmatprep.subr.mxu0 0.0
        %5073 = vmatpush1.msra.mxu0 0.0
        %5074 = vmatprep.subr.mxu0 0.0
        %5075 = vmatpush1.msra.mxu0 0.0
        %5076 = vmatprep.subr.mxu0 0.0
        %5077 = vmatpush1.msra.mxu0 0.0
        %5078 = vmatprep.subr.mxu0 0.0
        %5079 = vmatpush1.msra.mxu0 0.0
        %5080 = vmatprep.mubr.f32.mxu0 0.0
        %5081 = vmatmul.mubr.f32.gmra.mrb[0].mxu0 %v5011
        %v5082 = vpop.f32.mrb[0].mxu0
        %v5083 = vadd.f32 0.0, %v5082
        %v5084 = vpop.f32.mrb[0].mxu0
        %5085 = vdwg.mxu0
        %v5086 = vadd.f32 %v4995, %v5083
        %v5087 = vld [vmem:[%s6] sm:$0x1]
        %v5088 = vadd.f32 %v5086, %v5087
        %v5089 = vmax.f32 %v5088, 0.0
        %v5090 = vld [vmem:[%s7] sm:$0xff]
        %v5091 = vld [vmem:[%s7 + $0x8] sm:$0xff]
        %v5092 = vld [vmem:[%s8] sm:$0x1]
        %v5094 = vsel %vm1692, %v5089, 0
        %5096 = vmatprep.subr.mxu0 0.0
        %5097 = vmatpush1.msra.mxu0 %v5090
        %5098 = vmatprep.subr.mxu0 0.0
        %5099 = vmatpush1.msra.mxu0 %v5091
        %5100 = vmatprep.subr.mxu0 0.0
        %5101 = vmatpush1.msra.mxu0 0.0
        %5102 = vmatprep.subr.mxu0 0.0
        %5103 = vmatpush1.msra.mxu0 0.0
        %5104 = vmatprep.subr.mxu0 0.0
        %5105 = vmatpush1.msra.mxu0 0.0
        %5106 = vmatprep.subr.mxu0 0.0
        %5107 = vmatpush1.msra.mxu0 0.0
        %5108 = vmatprep.subr.mxu0 0.0
        %5109 = vmatpush1.msra.mxu0 0.0
        %5110 = vmatprep.subr.mxu0 0.0
        %5111 = vmatpush1.msra.mxu0 0.0
        %5112 = vmatprep.subr.mxu0 0.0
        %5113 = vmatpush1.msra.mxu0 0.0
        %5114 = vmatprep.subr.mxu0 0.0
        %5115 = vmatpush1.msra.mxu0 0.0
        %5116 = vmatprep.subr.mxu0 0.0
        %5117 = vmatpush1.msra.mxu0 0.0
        %5118 = vmatprep.subr.mxu0 0.0
        %5119 = vmatpush1.msra.mxu0 0.0
        %5120 = vmatprep.subr.mxu0 0.0
        %5121 = vmatpush1.msra.mxu0 0.0
        %5122 = vmatprep.subr.mxu0 0.0
        %5123 = vmatpush1.msra.mxu0 0.0
        %5124 = vmatprep.subr.mxu0 0.0
        %5125 = vmatpush1.msra.mxu0 0.0
        %5126 = vmatprep.subr.mxu0 0.0
        %5127 = vmatpush1.msra.mxu0 0.0
        %5128 = vmatprep.subr.mxu0 0.0
        %5129 = vmatpush1.msra.mxu0 0.0
        %5130 = vmatprep.subr.mxu0 0.0
        %5131 = vmatpush1.msra.mxu0 0.0
        %5132 = vmatprep.subr.mxu0 0.0
        %5133 = vmatpush1.msra.mxu0 0.0
        %5134 = vmatprep.subr.mxu0 0.0
        %5135 = vmatpush1.msra.mxu0 0.0
        %5136 = vmatprep.subr.mxu0 0.0
        %5137 = vmatpush1.msra.mxu0 0.0
        %5138 = vmatprep.subr.mxu0 0.0
        %5139 = vmatpush1.msra.mxu0 0.0
        %5140 = vmatprep.subr.mxu0 0.0
        %5141 = vmatpush1.msra.mxu0 0.0
        %5142 = vmatprep.subr.mxu0 0.0
        %5143 = vmatpush1.msra.mxu0 0.0
        %5144 = vmatprep.subr.mxu0 0.0
        %5145 = vmatpush1.msra.mxu0 0.0
        %5146 = vmatprep.subr.mxu0 0.0
        %5147 = vmatpush1.msra.mxu0 0.0
        %5148 = vmatprep.subr.mxu0 0.0
        %5149 = vmatpush1.msra.mxu0 0.0
        %5150 = vmatprep.subr.mxu0 0.0
        %5151 = vmatpush1.msra.mxu0 0.0
        %5152 = vmatprep.subr.mxu0 0.0
        %5153 = vmatpush1.msra.mxu0 0.0
        %5154 = vmatprep.subr.mxu0 0.0
        %5155 = vmatpush1.msra.mxu0 0.0
        %5156 = vmatprep.subr.mxu0 0.0
        %5157 = vmatpush1.msra.mxu0 0.0
        %5158 = vmatprep.subr.mxu0 0.0
        %5159 = vmatpush1.msra.mxu0 0.0
        %5160 = vmatprep.mubr.f32.mxu0 0.0
        %5161 = vmatmul.mubr.f32.gmra.mrb[0].mxu0 %v5094
        %v5162 = vpop.f32.mrb[0].mxu0
        %v5163 = vadd.f32 %v5092, %v5162
        %v5164 = vpop.f32.mrb[0].mxu0
        %5165 = vdwg.mxu0
        %vm5166 = vcmask 40960
        %5167 = vst.msk [vmem:[%s324] sm:$0x1] %vm5166, %v5163
        %s5168 = sand.u32 %s225, 1
        %s5169 = scalar_lea.sflag [#allocation3], %s5168
        %s5170 = sand.u32 %s225, 1
        %s5171 = scalar_lea.vmem [#allocation2], %s5170
        // Predicated region
        $region57: #{spec_cnn_forward.1} parent=55 // pred_check
          %p5172 = pneg %p235
        $region58: #{spec_cnn_forward.1} parent=55 // pred_check_branch
          %5174 = sbr.rel (%p5172) target = $region60
        $region59: #{spec_cnn_forward.1} parent=55 // pred_region
          %s5176 = ssub.s32 16, 16
          %5177 = vsyncadd %s5169, %s5176
          %s5178 = smul.addr %s23, 16
          %s5179 = scalar_lea.hbm %s9, %s5178
          %s5181 = sshll.u32 %s5171, 4
          %s5182 = int_to_ptr.vmem [resolvable:$true] %s5181
          %5184 = dma.vmem_to_hbm [thread:$0]  %s5182, 16, %s5179, %s5169
        $region60: #{spec_cnn_forward.1} parent=55 // pred_fallthru
          _
      $region56: #{spec_cnn_forward.1} parent=5 // pred_fallthru
        _
      %p5185 = scmp.le.s32.totalorder 2, %s18
      // Predicated region
      $region61: #{spec_cnn_forward.1} parent=5 // pred_check
        %p5186 = pneg %p5185
      $region62: #{spec_cnn_forward.1} parent=5 // pred_check_branch
        %5188 = sbr.rel (%p5186) target = $region64
      $region63: #{spec_cnn_forward.1} parent=5 // pred_region
        %s5189 = ssub.s32 %s18, 2
        // Predicated region
        $region65: #{spec_cnn_forward.1} parent=63 // pred_check
          %p5190 = pneg %p241
        $region66: #{spec_cnn_forward.1} parent=63 // pred_check_branch
          %5192 = sbr.rel (%p5190) target = $region68
        $region67: #{spec_cnn_forward.1} parent=63 // pred_region
          %s5193 = sand.u32 %s226, 1
          %s5194 = scalar_lea.sflag [#allocation3], %s5193
          %s5195 = sand.u32 %s226, 1
          %s5196 = scalar_lea.vmem [#allocation2], %s5195
          %5197 = dma.done %s5194, 16
        $region68: #{spec_cnn_forward.1} parent=63 // pred_fallthru
          _
      $region64: #{spec_cnn_forward.1} parent=5 // pred_fallthru
        _
    $region6: #{spec_cnn_forward.1} parent=1 // loop_footer
      %s22 = sadd.s32 1, %s18
    $region7: #{spec_cnn_forward.1} parent=1 // loop_footer_branch
      %17 = sbr.rel target = $region3
    $region8: #{spec_cnn_forward.1} parent=1 // loop_exit
      _
    %5198 = vsyncpa [#allocation3], 1
    %s5199 = scalar_lea.sflag [#allocation3], 1
    %5200 = vsyncpa %s5199, 1

</llo_original>
